<compile_context>
chip_gen: v5e
topology: v5e:2x2
jax: 0.10.0
libtpu: 0.0.40
codegen_flags: <defaults>
</compile_context>

<pallas_src>
import functools

import jax
import jax.numpy as jnp
from jax import lax
from jax.experimental import pallas as pl
from jax.experimental.pallas import tpu as pltpu

K = 5          # kernel_size
PAD = K // 2   # 'same' padding for odd kernel


def _toeplitz_conv_weights(w_oihw, width):
    """Fold the kx taps + x-'same' padding of a conv into banded matmul weights.

    Returns T of shape (kH, width*I, width*O) with
        T[ky, xin*I + c, xout*O + o] = w[o, c, ky, xin - xout + PAD]
    (zero where xin - xout + PAD falls outside [0, kW)), so that for an input
    whose rows are zero-padded by PAD above/below and whose lanes are laid out
    as (x, in_channel):
        out[y, xout*O + o] = sum_ky  rows[y + ky] @ T[ky]
    equals the 'same' cross-correlation computed by nn.Conv2d / lax.conv.
    """
    O, I, kH, kW = w_oihw.shape
    w_t = jnp.transpose(w_oihw, (2, 3, 1, 0))                # (kH, kW, I, O)
    xin = jnp.arange(width)[:, None]
    xout = jnp.arange(width)[None, :]
    kx = xin - xout + (kW // 2)                              # (width, width)
    valid = (kx >= 0) & (kx < kW)
    t = w_t[:, jnp.clip(kx, 0, kW - 1)]                      # (kH, W, W, I, O)
    t = jnp.where(valid[None, :, :, None, None], t, 0.0)
    t = jnp.transpose(t, (0, 1, 3, 2, 4))                    # (kH, xin, I, xout, O)
    return t.reshape(kH, width * I, width * O)


def _gru_kernel(a_ref, h_ref, t_ref, out_ref, *, nb, h_rows, w_ch):
    """One grid step = `nb` batch elements.

    a_ref   : (nb*h_rows, 3*w_ch) f32   [z_pre | r_pre | hx_pre], biases folded
    h_ref   : (nb*h_rows, w_ch)   f32   previous state, lane-dense (x, c)
    t_ref   : (K*w_ch, w_ch)      bf16  banded U_h weights, one block per ky
    out_ref : (nb*h_rows, w_ch)   f32   new state
    """
    a = a_ref[...]
    h = h_ref[...]

    # Gate blocks sit on whole-vreg lane boundaries (w_ch = 512 here).
    z = jax.nn.sigmoid(a[:, :w_ch])
    r = jax.nn.sigmoid(a[:, w_ch:2 * w_ch])
    hx = a[:, 2 * w_ch:]

    rh = r * h                                               # f32

    # PAD zero rows above/below each batch element; the x-direction padding is
    # already folded into the banded weights as structural zeros.
    zpad = jnp.zeros((PAD, w_ch), jnp.float32)
    rh_pad = [
        jnp.concatenate(
            [zpad, rh[b * h_rows:(b + 1) * h_rows, :], zpad], axis=0)
        for b in range(nb)
    ]                                                        # (h_rows+2*PAD, w_ch)

    # U_h * (r*h) conv as K accumulated MXU matmuls over sublane row windows.
    acc = hx                                                 # f32 accumulator
    for ky in range(K):
        if nb == 1:
            lhs = rh_pad[0][ky:ky + h_rows, :]
        else:
            lhs = jnp.concatenate(
                [rh_pad[b][ky:ky + h_rows, :] for b in range(nb)], axis=0)
        acc = acc + jnp.dot(lhs.astype(jnp.bfloat16),
                            t_ref[ky * w_ch:(ky + 1) * w_ch, :],
                            preferred_element_type=jnp.float32)

    h_tilde = jnp.tanh(acc)
    out_ref[...] = (1.0 - z) * h + z * h_tilde


def gru_forward(x_nchw, h_nchw, params):
    """Wrapper: NCHW in / NCHW out, parameters in PyTorch layouts."""
    x = jnp.transpose(x_nchw, (0, 2, 3, 1)).astype(jnp.float32)   # NHWC
    h = jnp.transpose(h_nchw, (0, 2, 3, 1)).astype(jnp.float32)   # NHWC
    N, H, W, Cin = x.shape
    Ch = h.shape[-1]
    w_ch = W * Ch

    def conv(a, w_oihw):
        w = jnp.transpose(w_oihw, (2, 3, 1, 0))                   # HWIO
        return lax.conv_general_dilated(
            a, w, window_strides=(1, 1), padding='SAME',
            dimension_numbers=('NHWC', 'HWIO', 'NHWC'))

    # ---- hoisted data-independent paths (one fused conv per source) -------
    w_zrh = jnp.concatenate(
        [params['w_z'], params['w_r'], params['w_h']], axis=0)    # (3Ch,Cin,K,K)
    u_zr = jnp.concatenate([params['u_z'], params['u_r']], axis=0)  # (2Ch,Ch,K,K)
    cx = conv(x, w_zrh)                                           # (N,H,W,3Ch)
    chh = conv(h, u_zr)                                           # (N,H,W,2Ch)

    z_pre = cx[..., :Ch] + chh[..., :Ch] + params['bias_z']
    r_pre = cx[..., Ch:2 * Ch] + chh[..., Ch:] + params['bias_r']
    hx_pre = cx[..., 2 * Ch:] + params['bias_h']

    # Lane-dense packing: rows = (n, y); lanes = (x, c).  Gate blocks at lane
    # offsets 0 / w_ch / 2*w_ch (whole-vreg aligned for w_ch = 512).
    a_zrh = jnp.concatenate(
        [z_pre.reshape(N * H, w_ch),
         r_pre.reshape(N * H, w_ch),
         hx_pre.reshape(N * H, w_ch)], axis=1)                    # (N*H, 3*w_ch)
    h_dense = h.reshape(N * H, w_ch)                              # (N*H, w_ch)

    # Banded (Toeplitz) weights for the data-dependent U_h * (r*h) conv.
    t_h = _toeplitz_conv_weights(params['u_h'], W)                # (K, w_ch, w_ch)
    t_h = t_h.reshape(K * w_ch, w_ch).astype(jnp.bfloat16)

    # Batch blocking: largest divisor of N whose per-step working set stays
    # modest (keeps v7x's 64 MiB VMEM safe at larger sizes); at N=2 this is a
    # single grid step, so there is no useless 2-deep pipeline.
    per_elem_bytes = H * (5 * w_ch) * 4          # a_zrh + h + out, f32
    nb = 1
    for cand in range(N, 0, -1):
        if N % cand == 0 and cand * per_elem_bytes <= 8 * 1024 * 1024:
            nb = cand
            break
    grid = (N // nb,)

    kernel = functools.partial(_gru_kernel, nb=nb, h_rows=H, w_ch=w_ch)

    grid_spec = pltpu.PrefetchScalarGridSpec(
        num_scalar_prefetch=0,
        grid=grid,
        in_specs=[
            pl.BlockSpec((nb * H, 3 * w_ch), lambda i: (i, 0)),   # pre-activations
            pl.BlockSpec((nb * H, w_ch), lambda i: (i, 0)),       # previous state
            pl.BlockSpec((K * w_ch, w_ch), lambda i: (0, 0)),     # banded U_h
        ],
        out_specs=pl.BlockSpec((nb * H, w_ch), lambda i: (i, 0)),
    )

    out = pl.pallas_call(
        kernel,
        grid_spec=grid_spec,
        out_shape=jax.ShapeDtypeStruct((N * H, w_ch), jnp.float32),
        compiler_params=pltpu.CompilerParams(
            dimension_semantics=("parallel",)),
    )(a_zrh, h_dense, t_h)

    # (N*H, W*Ch) -> (N, H, W, Ch) -> NCHW (pure layout plumbing, no compute).
    new_state = jnp.transpose(out.reshape(N, H, W, Ch), (0, 3, 1, 2))
    return new_state, new_state


# ---------------- pure-JAX reference (for a sanity check) ----------------
def _conv_same(x_nchw, w_oihw):
    return lax.conv_general_dilated(
        x_nchw, w_oihw, window_strides=(1, 1), padding='SAME',
        dimension_numbers=('NCHW', 'OIHW', 'NCHW'))


def gru_ref(x, h, p):
    def b(v):
        return v.reshape(1, -1, 1, 1)
    z = jax.nn.sigmoid(_conv_same(x, p['w_z']) + _conv_same(h, p['u_z']) + b(p['bias_z']))
    r = jax.nn.sigmoid(_conv_same(x, p['w_r']) + _conv_same(h, p['u_r']) + b(p['bias_r']))
    h_t = jnp.tanh(_conv_same(x, p['w_h']) + _conv_same(r * h, p['u_h']) + b(p['bias_h']))
    return (1.0 - z) * h + z * h_t


if __name__ == "__main__":
    N, Cin, H, W = 2, 4, 16, 16
    Ch = 32

    key = jax.random.PRNGKey(0)
    ks = jax.random.split(key, 11)

    def init_w(k, out_ch, in_ch):
        bound = 1.0 / jnp.sqrt(in_ch * K * K)
        return jax.random.uniform(k, (out_ch, in_ch, K, K), jnp.float32,
                                  minval=-bound, maxval=bound)

    params = {
        'w_z': init_w(ks[0], Ch, Cin), 'u_z': init_w(ks[1], Ch, Ch),
        'w_r': init_w(ks[2], Ch, Cin), 'u_r': init_w(ks[3], Ch, Ch),
        'w_h': init_w(ks[4], Ch, Cin), 'u_h': init_w(ks[5], Ch, Ch),
        'bias_z': 0.1 * jax.random.normal(ks[8], (Ch,), jnp.float32),
        'bias_r': 0.1 * jax.random.normal(ks[9], (Ch,), jnp.float32),
        'bias_h': 0.1 * jax.random.normal(ks[10], (Ch,), jnp.float32),
    }

    x = jax.random.normal(ks[6], (N, Cin, H, W), jnp.float32)
    h = jax.random.normal(ks[7], (N, Ch, H, W), jnp.float32)

    fwd = jax.jit(gru_forward)
    new_state, _ = fwd(x, h, params)
    new_state = jax.block_until_ready(new_state)

    ref = jax.block_until_ready(gru_ref(x, h, params))
    err = float(jnp.max(jnp.abs(new_state - ref)))
    assert new_state.shape == (N, Ch, H, W)
    # bf16 MXU operands (f32 accumulation) on the recurrent path vs. the f32
    # reference: a few 1e-3 absolute error on the gated output is expected.
    assert err < 5e-2, f"mismatch vs reference: max abs err = {err}"

    print("KERNEL_OK")
</pallas_src>

<mosaic_0001>
module attributes {stable_mosaic.version = 11 : i64} {
  func.func @_gru_kernel(%arg0: i32, %arg1: memref<32x1536xf32, #tpu.memory_space<vmem>>, %arg2: memref<32x512xf32, #tpu.memory_space<vmem>>, %arg3: memref<2560x512xbf16, #tpu.memory_space<vmem>>, %arg4: memref<32x512xf32, #tpu.memory_space<vmem>>) attributes {dimension_semantics = [#tpu.dimension_semantics<parallel>], iteration_bounds = array<i64: 1>, scalar_prefetch = 0 : i64, scratch_operands = 0 : i64, tpu.core_type = #tpu.core_type<tc>, window_params = [{transform_indices = @transform_0, window_bounds = array<i64: 32, 1536>}, {transform_indices = @transform_1, window_bounds = array<i64: 32, 512>}, {pipeline_mode = #tpu.pipeline_mode<synchronous>, transform_indices = @transform_2, window_bounds = array<i64: 2560, 512>}, {transform_indices = @transform_3, window_bounds = array<i64: 32, 512>}]} {
    %c0 = arith.constant 0 : index
    %c0_0 = arith.constant 0 : index
    %0 = vector.load %arg1[%c0, %c0_0] : memref<32x1536xf32, #tpu.memory_space<vmem>>, vector<32x1536xf32>
    %c0_1 = arith.constant 0 : index
    %c0_2 = arith.constant 0 : index
    %1 = vector.load %arg2[%c0_1, %c0_2] : memref<32x512xf32, #tpu.memory_space<vmem>>, vector<32x512xf32>
    %2 = vector.extract_strided_slice %0 {offsets = [0, 0], sizes = [32, 512], strides = [1, 1]} : vector<32x1536xf32> to vector<32x512xf32>
    %3 = arith.negf %2 : vector<32x512xf32>
    %4 = math.exp %3 : vector<32x512xf32>
    %cst = arith.constant 1.000000e+00 : f32
    %5 = vector.broadcast %cst : f32 to vector<32x512xf32>
    %6 = arith.addf %5, %4 : vector<32x512xf32>
    %7 = arith.divf %5, %6 : vector<32x512xf32>
    %8 = vector.extract_strided_slice %0 {offsets = [0, 512], sizes = [32, 512], strides = [1, 1]} : vector<32x1536xf32> to vector<32x512xf32>
    %9 = arith.negf %8 : vector<32x512xf32>
    %10 = math.exp %9 : vector<32x512xf32>
    %cst_3 = arith.constant 1.000000e+00 : f32
    %11 = vector.broadcast %cst_3 : f32 to vector<32x512xf32>
    %12 = arith.addf %11, %10 : vector<32x512xf32>
    %13 = arith.divf %11, %12 : vector<32x512xf32>
    %14 = vector.extract_strided_slice %0 {offsets = [0, 1024], sizes = [32, 512], strides = [1, 1]} : vector<32x1536xf32> to vector<32x512xf32>
    %15 = arith.mulf %13, %1 : vector<32x512xf32>
    %cst_4 = arith.constant 0.000000e+00 : f32
    %16 = vector.broadcast %cst_4 : f32 to vector<2x512xf32>
    %17 = vector.extract_strided_slice %15 {offsets = [0, 0], sizes = [16, 512], strides = [1, 1]} : vector<32x512xf32> to vector<16x512xf32>
    %18 = tpu.concatenate %16, %17, %16 in 0 : vector<2x512xf32>, vector<16x512xf32>, vector<2x512xf32> -> vector<20x512xf32>
    %19 = vector.extract_strided_slice %15 {offsets = [16, 0], sizes = [16, 512], strides = [1, 1]} : vector<32x512xf32> to vector<16x512xf32>
    %20 = tpu.concatenate %16, %19, %16 in 0 : vector<2x512xf32>, vector<16x512xf32>, vector<2x512xf32> -> vector<20x512xf32>
    %21 = vector.extract_strided_slice %18 {offsets = [0, 0], sizes = [16, 512], strides = [1, 1]} : vector<20x512xf32> to vector<16x512xf32>
    %22 = vector.extract_strided_slice %20 {offsets = [0, 0], sizes = [16, 512], strides = [1, 1]} : vector<20x512xf32> to vector<16x512xf32>
    %23 = tpu.concatenate %21, %22 in 0 : vector<16x512xf32>, vector<16x512xf32> -> vector<32x512xf32>
    %24 = arith.truncf %23 : vector<32x512xf32> to vector<32x512xbf16>
    %c0_5 = arith.constant 0 : index
    %c0_6 = arith.constant 0 : index
    %25 = vector.load %arg3[%c0_5, %c0_6] : memref<2560x512xbf16, #tpu.memory_space<vmem>>, vector<512x512xbf16>
    %cst_7 = arith.constant dense<0.000000e+00> : vector<32x512xf32>
    %26 = tpu.matmul %24, %25, %cst_7 {dimension_numbers = #tpu.dot_dimension_numbers<[1], [0], [0], [1], [0, 0, 1, 1], [], []>} : vector<32x512xbf16>, vector<512x512xbf16>, vector<32x512xf32> -> vector<32x512xf32>
    %27 = arith.addf %14, %26 : vector<32x512xf32>
    %28 = vector.extract_strided_slice %18 {offsets = [1, 0], sizes = [16, 512], strides = [1, 1]} : vector<20x512xf32> to vector<16x512xf32>
    %29 = vector.extract_strided_slice %20 {offsets = [1, 0], sizes = [16, 512], strides = [1, 1]} : vector<20x512xf32> to vector<16x512xf32>
    %30 = tpu.concatenate %28, %29 in 0 : vector<16x512xf32>, vector<16x512xf32> -> vector<32x512xf32>
    %31 = arith.truncf %30 : vector<32x512xf32> to vector<32x512xbf16>
    %c512 = arith.constant 512 : index
    %c0_8 = arith.constant 0 : index
    %32 = vector.load %arg3[%c512, %c0_8] : memref<2560x512xbf16, #tpu.memory_space<vmem>>, vector<512x512xbf16>
    %cst_9 = arith.constant dense<0.000000e+00> : vector<32x512xf32>
    %33 = tpu.matmul %31, %32, %cst_9 {dimension_numbers = #tpu.dot_dimension_numbers<[1], [0], [0], [1], [0, 0, 1, 1], [], []>} : vector<32x512xbf16>, vector<512x512xbf16>, vector<32x512xf32> -> vector<32x512xf32>
    %34 = arith.addf %27, %33 : vector<32x512xf32>
    %35 = vector.extract_strided_slice %18 {offsets = [2, 0], sizes = [16, 512], strides = [1, 1]} : vector<20x512xf32> to vector<16x512xf32>
    %36 = vector.extract_strided_slice %20 {offsets = [2, 0], sizes = [16, 512], strides = [1, 1]} : vector<20x512xf32> to vector<16x512xf32>
    %37 = tpu.concatenate %35, %36 in 0 : vector<16x512xf32>, vector<16x512xf32> -> vector<32x512xf32>
    %38 = arith.truncf %37 : vector<32x512xf32> to vector<32x512xbf16>
    %c1024 = arith.constant 1024 : index
    %c0_10 = arith.constant 0 : index
    %39 = vector.load %arg3[%c1024, %c0_10] : memref<2560x512xbf16, #tpu.memory_space<vmem>>, vector<512x512xbf16>
    %cst_11 = arith.constant dense<0.000000e+00> : vector<32x512xf32>
    %40 = tpu.matmul %38, %39, %cst_11 {dimension_numbers = #tpu.dot_dimension_numbers<[1], [0], [0], [1], [0, 0, 1, 1], [], []>} : vector<32x512xbf16>, vector<512x512xbf16>, vector<32x512xf32> -> vector<32x512xf32>
    %41 = arith.addf %34, %40 : vector<32x512xf32>
    %42 = vector.extract_strided_slice %18 {offsets = [3, 0], sizes = [16, 512], strides = [1, 1]} : vector<20x512xf32> to vector<16x512xf32>
    %43 = vector.extract_strided_slice %20 {offsets = [3, 0], sizes = [16, 512], strides = [1, 1]} : vector<20x512xf32> to vector<16x512xf32>
    %44 = tpu.concatenate %42, %43 in 0 : vector<16x512xf32>, vector<16x512xf32> -> vector<32x512xf32>
    %45 = arith.truncf %44 : vector<32x512xf32> to vector<32x512xbf16>
    %c1536 = arith.constant 1536 : index
    %c0_12 = arith.constant 0 : index
    %46 = vector.load %arg3[%c1536, %c0_12] : memref<2560x512xbf16, #tpu.memory_space<vmem>>, vector<512x512xbf16>
    %cst_13 = arith.constant dense<0.000000e+00> : vector<32x512xf32>
    %47 = tpu.matmul %45, %46, %cst_13 {dimension_numbers = #tpu.dot_dimension_numbers<[1], [0], [0], [1], [0, 0, 1, 1], [], []>} : vector<32x512xbf16>, vector<512x512xbf16>, vector<32x512xf32> -> vector<32x512xf32>
    %48 = arith.addf %41, %47 : vector<32x512xf32>
    %49 = vector.extract_strided_slice %18 {offsets = [4, 0], sizes = [16, 512], strides = [1, 1]} : vector<20x512xf32> to vector<16x512xf32>
    %50 = vector.extract_strided_slice %20 {offsets = [4, 0], sizes = [16, 512], strides = [1, 1]} : vector<20x512xf32> to vector<16x512xf32>
    %51 = tpu.concatenate %49, %50 in 0 : vector<16x512xf32>, vector<16x512xf32> -> vector<32x512xf32>
    %52 = arith.truncf %51 : vector<32x512xf32> to vector<32x512xbf16>
    %c2048 = arith.constant 2048 : index
    %c0_14 = arith.constant 0 : index
    %53 = vector.load %arg3[%c2048, %c0_14] : memref<2560x512xbf16, #tpu.memory_space<vmem>>, vector<512x512xbf16>
    %cst_15 = arith.constant dense<0.000000e+00> : vector<32x512xf32>
    %54 = tpu.matmul %52, %53, %cst_15 {dimension_numbers = #tpu.dot_dimension_numbers<[1], [0], [0], [1], [0, 0, 1, 1], [], []>} : vector<32x512xbf16>, vector<512x512xbf16>, vector<32x512xf32> -> vector<32x512xf32>
    %55 = arith.addf %48, %54 : vector<32x512xf32>
    %56 = math.tanh %55 : vector<32x512xf32>
    %cst_16 = arith.constant 1.000000e+00 : f32
    %57 = vector.broadcast %cst_16 : f32 to vector<32x512xf32>
    %58 = arith.subf %57, %7 : vector<32x512xf32>
    %59 = arith.mulf %58, %1 : vector<32x512xf32>
    %60 = arith.mulf %7, %56 : vector<32x512xf32>
    %61 = arith.addf %59, %60 : vector<32x512xf32>
    %c0_17 = arith.constant 0 : index
    %c0_18 = arith.constant 0 : index
    %62 = vector.load %arg4[%c0_17, %c0_18] : memref<32x512xf32, #tpu.memory_space<vmem>>, vector<32x512xf32>
    tpu.vector_store %arg4[%c0_17, %c0_18], %61 {strides = array<i32>} : memref<32x512xf32, #tpu.memory_space<vmem>>, vector<32x512xf32>,
    return
  }
  func.func @transform_0(%arg0: i32) -> (i32, i32) {
    %c0_i32 = arith.constant 0 : i32
    %c0_i32_0 = arith.constant 0 : i32
    return %arg0, %c0_i32 : i32, i32
  }
  func.func @transform_1(%arg0: i32) -> (i32, i32) {
    %c0_i32 = arith.constant 0 : i32
    %c0_i32_0 = arith.constant 0 : i32
    return %arg0, %c0_i32 : i32, i32
  }
  func.func @transform_2(%arg0: i32) -> (i32, i32) {
    %c0_i32 = arith.constant 0 : i32
    %c0_i32_0 = arith.constant 0 : i32
    %c0_i32_1 = arith.constant 0 : i32
    return %c0_i32, %c0_i32_0 : i32, i32
  }
  func.func @transform_3(%arg0: i32) -> (i32, i32) {
    %c0_i32 = arith.constant 0 : i32
    %c0_i32_0 = arith.constant 0 : i32
    return %arg0, %c0_i32 : i32, i32
  }
}

</mosaic_0001>

<llo_original>
// kernel: gru_forward.1
$region0: #{gru_forward.1}
  #allocation0 [shape = 'u32[]', space=smem, size = 0x4, offset = 0x4, fixed_abs, tag = 'smem constant byte address 0x4 - core index']
  #allocation1 [shape = 'u32[72,128]{1,0:T(1,128)}', space=vmem, size = 0x9000, scoped, tag = 'internal scratch']
  %s0 = inlined_call_operand.vmem [shape: f32[32,1536], index: 0, kind: input, shape index: {}]
  %s1 = inlined_call_operand.vmem [shape: f32[32,512], index: 1, kind: input, shape index: {}]
  %s2 = inlined_call_operand.vmem [shape: bf16[2560,512], index: 2, kind: input, shape index: {}]
  %s3 = inlined_call_operand.vmem [shape: f32[32,512], index: 3, kind: output, shape index: {}]
  %s4 = sld [smem:[#allocation0]]
  $region22: #{gru_forward.1} parent=0
    _
  %s6 = ssub.s32 1, %s4
  %s7 = scalar_select 0, %s6, %s4
  // Predicated region
  $region2: #{gru_forward.1} parent=0 // pred_check
    _
  $region3: #{gru_forward.1} parent=0 // pred_check_branch
    %9 = sbr.rel (0) target = $region5
  $region4: #{gru_forward.1} parent=0 // pred_region
    _
  $region5: #{gru_forward.1} parent=0 // pred_fallthru
    _
  // Predicated region
  $region6: #{gru_forward.1} parent=0 // pred_check
    _
  $region7: #{gru_forward.1} parent=0 // pred_check_branch
    %11 = sbr.rel (0) target = $region9
  $region8: #{gru_forward.1} parent=0 // pred_region
    _
  $region9: #{gru_forward.1} parent=0 // pred_fallthru
    _
  // Predicated region
  $region10: #{gru_forward.1} parent=0 // pred_check
    _
  $region11: #{gru_forward.1} parent=0 // pred_check_branch
    %13 = sbr.rel (0) target = $region13
  $region12: #{gru_forward.1} parent=0 // pred_region
    _
  $region13: #{gru_forward.1} parent=0 // pred_fallthru
    _
  %v14 = vld [vmem:[%s0] sm:$0xff]
  %v15 = vld [vmem:[%s0 + $0x8] sm:$0xff]
  %v16 = vld [vmem:[%s0 + $0x10] sm:$0xff]
  %v17 = vld [vmem:[%s0 + $0x18] sm:$0xff]
  %v18 = vld [vmem:[%s0 + $0x20] sm:$0xff]
  %v19 = vld [vmem:[%s0 + $0x28] sm:$0xff]
  %v20 = vld [vmem:[%s0 + $0x30] sm:$0xff]
  %v21 = vld [vmem:[%s0 + $0x38] sm:$0xff]
  %v22 = vld [vmem:[%s0 + $0x40] sm:$0xff]
  %v23 = vld [vmem:[%s0 + $0x48] sm:$0xff]
  %v24 = vld [vmem:[%s0 + $0x50] sm:$0xff]
  %v25 = vld [vmem:[%s0 + $0x58] sm:$0xff]
  %v26 = vld [vmem:[%s0 + $0x60] sm:$0xff]
  %v27 = vld [vmem:[%s0 + $0x68] sm:$0xff]
  %v28 = vld [vmem:[%s0 + $0x70] sm:$0xff]
  %v29 = vld [vmem:[%s0 + $0x78] sm:$0xff]
  %v30 = vld [vmem:[%s0 + $0x80] sm:$0xff]
  %v31 = vld [vmem:[%s0 + $0x88] sm:$0xff]
  %v32 = vld [vmem:[%s0 + $0x90] sm:$0xff]
  %v33 = vld [vmem:[%s0 + $0x98] sm:$0xff]
  %v34 = vld [vmem:[%s0 + $0xa0] sm:$0xff]
  %v35 = vld [vmem:[%s0 + $0xa8] sm:$0xff]
  %v36 = vld [vmem:[%s0 + $0xb0] sm:$0xff]
  %v37 = vld [vmem:[%s0 + $0xb8] sm:$0xff]
  %v38 = vld [vmem:[%s0 + $0xc0] sm:$0xff]
  %v39 = vld [vmem:[%s0 + $0xc8] sm:$0xff]
  %v40 = vld [vmem:[%s0 + $0xd0] sm:$0xff]
  %v41 = vld [vmem:[%s0 + $0xd8] sm:$0xff]
  %v42 = vld [vmem:[%s0 + $0xe0] sm:$0xff]
  %v43 = vld [vmem:[%s0 + $0xe8] sm:$0xff]
  %v44 = vld [vmem:[%s0 + $0xf0] sm:$0xff]
  %v45 = vld [vmem:[%s0 + $0xf8] sm:$0xff]
  %v46 = vld [vmem:[%s0 + $0x100] sm:$0xff]
  %v47 = vld [vmem:[%s0 + $0x108] sm:$0xff]
  %v48 = vld [vmem:[%s0 + $0x110] sm:$0xff]
  %v49 = vld [vmem:[%s0 + $0x118] sm:$0xff]
  %v50 = vld [vmem:[%s0 + $0x120] sm:$0xff]
  %v51 = vld [vmem:[%s0 + $0x128] sm:$0xff]
  %v52 = vld [vmem:[%s0 + $0x130] sm:$0xff]
  %v53 = vld [vmem:[%s0 + $0x138] sm:$0xff]
  %v54 = vld [vmem:[%s0 + $0x140] sm:$0xff]
  %v55 = vld [vmem:[%s0 + $0x148] sm:$0xff]
  %v56 = vld [vmem:[%s0 + $0x150] sm:$0xff]
  %v57 = vld [vmem:[%s0 + $0x158] sm:$0xff]
  %v58 = vld [vmem:[%s0 + $0x160] sm:$0xff]
  %v59 = vld [vmem:[%s0 + $0x168] sm:$0xff]
  %v60 = vld [vmem:[%s0 + $0x170] sm:$0xff]
  %v61 = vld [vmem:[%s0 + $0x178] sm:$0xff]
  %v62 = vld [vmem:[%s1] sm:$0xff]
  %v63 = vld [vmem:[%s1 + $0x8] sm:$0xff]
  %v64 = vld [vmem:[%s1 + $0x10] sm:$0xff]
  %v65 = vld [vmem:[%s1 + $0x18] sm:$0xff]
  %v66 = vld [vmem:[%s1 + $0x20] sm:$0xff]
  %v67 = vld [vmem:[%s1 + $0x28] sm:$0xff]
  %v68 = vld [vmem:[%s1 + $0x30] sm:$0xff]
  %v69 = vld [vmem:[%s1 + $0x38] sm:$0xff]
  %v70 = vld [vmem:[%s1 + $0x40] sm:$0xff]
  %v71 = vld [vmem:[%s1 + $0x48] sm:$0xff]
  %v72 = vld [vmem:[%s1 + $0x50] sm:$0xff]
  %v73 = vld [vmem:[%s1 + $0x58] sm:$0xff]
  %v74 = vld [vmem:[%s1 + $0x60] sm:$0xff]
  %v75 = vld [vmem:[%s1 + $0x68] sm:$0xff]
  %v76 = vld [vmem:[%s1 + $0x70] sm:$0xff]
  %v77 = vld [vmem:[%s1 + $0x78] sm:$0xff]
  %v78 = vxor.u32 %v14, 2147483648
  %v79 = vxor.u32 %v15, 2147483648
  %v80 = vxor.u32 %v16, 2147483648
  %v81 = vxor.u32 %v17, 2147483648
  %v82 = vxor.u32 %v26, 2147483648
  %v83 = vxor.u32 %v27, 2147483648
  %v84 = vxor.u32 %v28, 2147483648
  %v85 = vxor.u32 %v29, 2147483648
  %v86 = vxor.u32 %v38, 2147483648
  %v87 = vxor.u32 %v39, 2147483648
  %v88 = vxor.u32 %v40, 2147483648
  %v89 = vxor.u32 %v41, 2147483648
  %v90 = vxor.u32 %v50, 2147483648
  %v91 = vxor.u32 %v51, 2147483648
  %v92 = vxor.u32 %v52, 2147483648
  %v93 = vxor.u32 %v53, 2147483648
  %v94 = vmul.f32 %v78, 1.442695
  %v95 = vpow.pop %v94
  %v96 = vmul.f32 %v79, 1.442695
  %v97 = vpow.pop %v96
  %v98 = vmul.f32 %v80, 1.442695
  %v99 = vpow.pop %v98
  %v100 = vmul.f32 %v81, 1.442695
  %v101 = vpow.pop %v100
  %v102 = vmul.f32 %v82, 1.442695
  %v103 = vpow.pop %v102
  %v104 = vmul.f32 %v83, 1.442695
  %v105 = vpow.pop %v104
  %v106 = vmul.f32 %v84, 1.442695
  %v107 = vpow.pop %v106
  %v108 = vmul.f32 %v85, 1.442695
  %v109 = vpow.pop %v108
  %v110 = vmul.f32 %v86, 1.442695
  %v111 = vpow.pop %v110
  %v112 = vmul.f32 %v87, 1.442695
  %v113 = vpow.pop %v112
  %v114 = vmul.f32 %v88, 1.442695
  %v115 = vpow.pop %v114
  %v116 = vmul.f32 %v89, 1.442695
  %v117 = vpow.pop %v116
  %v118 = vmul.f32 %v90, 1.442695
  %v119 = vpow.pop %v118
  %v120 = vmul.f32 %v91, 1.442695
  %v121 = vpow.pop %v120
  %v122 = vmul.f32 %v92, 1.442695
  %v123 = vpow.pop %v122
  %v124 = vmul.f32 %v93, 1.442695
  %v125 = vpow.pop %v124
  %v126 = vadd.f32 %v95, 1.0
  %v127 = vadd.f32 %v97, 1.0
  %v128 = vadd.f32 %v99, 1.0
  %v129 = vadd.f32 %v101, 1.0
  %v130 = vadd.f32 %v103, 1.0
  %v131 = vadd.f32 %v105, 1.0
  %v132 = vadd.f32 %v107, 1.0
  %v133 = vadd.f32 %v109, 1.0
  %v134 = vadd.f32 %v111, 1.0
  %v135 = vadd.f32 %v113, 1.0
  %v136 = vadd.f32 %v115, 1.0
  %v137 = vadd.f32 %v117, 1.0
  %v138 = vadd.f32 %v119, 1.0
  %v139 = vadd.f32 %v121, 1.0
  %v140 = vadd.f32 %v123, 1.0
  %v141 = vadd.f32 %v125, 1.0
  %v142 = vrcp.pop %v126
  %v143 = vmul.f32 %v126, %v142
  %v144 = vsub.f32 1.0, %v143
  %v145 = vmul.f32 %v142, %v144
  %v146 = vadd.f32 %v142, %v145
  %vm147 = vweird.f32 %v126
  %vm148 = vweird.f32 %v142
  %vm149 = vmor %vm147, %vm148
  %v150 = vsel %vm149, %v142, %v146
  %v151 = vand.u32 2147483647, %v126
  %vm152 = vcmp.eq.f32.partialorder %v151, 8.507059e+37
  %v153 = vand.u32 %v126, 2147483648
  %v154 = vor.u32 1.1754944e-38, %v153
  %v155 = vsel %vm152, %v154, %v150
  %v156 = vmul.f32 1.0, %v155
  %v157 = vrcp.pop %v127
  %v158 = vmul.f32 %v127, %v157
  %v159 = vsub.f32 1.0, %v158
  %v160 = vmul.f32 %v157, %v159
  %v161 = vadd.f32 %v157, %v160
  %vm162 = vweird.f32 %v127
  %vm163 = vweird.f32 %v157
  %vm164 = vmor %vm162, %vm163
  %v165 = vsel %vm164, %v157, %v161
  %v166 = vand.u32 2147483647, %v127
  %vm167 = vcmp.eq.f32.partialorder %v166, 8.507059e+37
  %v168 = vand.u32 %v127, 2147483648
  %v169 = vor.u32 1.1754944e-38, %v168
  %v170 = vsel %vm167, %v169, %v165
  %v171 = vmul.f32 1.0, %v170
  %v172 = vrcp.pop %v128
  %v173 = vmul.f32 %v128, %v172
  %v174 = vsub.f32 1.0, %v173
  %v175 = vmul.f32 %v172, %v174
  %v176 = vadd.f32 %v172, %v175
  %vm177 = vweird.f32 %v128
  %vm178 = vweird.f32 %v172
  %vm179 = vmor %vm177, %vm178
  %v180 = vsel %vm179, %v172, %v176
  %v181 = vand.u32 2147483647, %v128
  %vm182 = vcmp.eq.f32.partialorder %v181, 8.507059e+37
  %v183 = vand.u32 %v128, 2147483648
  %v184 = vor.u32 1.1754944e-38, %v183
  %v185 = vsel %vm182, %v184, %v180
  %v186 = vmul.f32 1.0, %v185
  %v187 = vrcp.pop %v129
  %v188 = vmul.f32 %v129, %v187
  %v189 = vsub.f32 1.0, %v188
  %v190 = vmul.f32 %v187, %v189
  %v191 = vadd.f32 %v187, %v190
  %vm192 = vweird.f32 %v129
  %vm193 = vweird.f32 %v187
  %vm194 = vmor %vm192, %vm193
  %v195 = vsel %vm194, %v187, %v191
  %v196 = vand.u32 2147483647, %v129
  %vm197 = vcmp.eq.f32.partialorder %v196, 8.507059e+37
  %v198 = vand.u32 %v129, 2147483648
  %v199 = vor.u32 1.1754944e-38, %v198
  %v200 = vsel %vm197, %v199, %v195
  %v201 = vmul.f32 1.0, %v200
  %v202 = vrcp.pop %v130
  %v203 = vmul.f32 %v130, %v202
  %v204 = vsub.f32 1.0, %v203
  %v205 = vmul.f32 %v202, %v204
  %v206 = vadd.f32 %v202, %v205
  %vm207 = vweird.f32 %v130
  %vm208 = vweird.f32 %v202
  %vm209 = vmor %vm207, %vm208
  %v210 = vsel %vm209, %v202, %v206
  %v211 = vand.u32 2147483647, %v130
  %vm212 = vcmp.eq.f32.partialorder %v211, 8.507059e+37
  %v213 = vand.u32 %v130, 2147483648
  %v214 = vor.u32 1.1754944e-38, %v213
  %v215 = vsel %vm212, %v214, %v210
  %v216 = vmul.f32 1.0, %v215
  %v217 = vrcp.pop %v131
  %v218 = vmul.f32 %v131, %v217
  %v219 = vsub.f32 1.0, %v218
  %v220 = vmul.f32 %v217, %v219
  %v221 = vadd.f32 %v217, %v220
  %vm222 = vweird.f32 %v131
  %vm223 = vweird.f32 %v217
  %vm224 = vmor %vm222, %vm223
  %v225 = vsel %vm224, %v217, %v221
  %v226 = vand.u32 2147483647, %v131
  %vm227 = vcmp.eq.f32.partialorder %v226, 8.507059e+37
  %v228 = vand.u32 %v131, 2147483648
  %v229 = vor.u32 1.1754944e-38, %v228
  %v230 = vsel %vm227, %v229, %v225
  %v231 = vmul.f32 1.0, %v230
  %v232 = vrcp.pop %v132
  %v233 = vmul.f32 %v132, %v232
  %v234 = vsub.f32 1.0, %v233
  %v235 = vmul.f32 %v232, %v234
  %v236 = vadd.f32 %v232, %v235
  %vm237 = vweird.f32 %v132
  %vm238 = vweird.f32 %v232
  %vm239 = vmor %vm237, %vm238
  %v240 = vsel %vm239, %v232, %v236
  %v241 = vand.u32 2147483647, %v132
  %vm242 = vcmp.eq.f32.partialorder %v241, 8.507059e+37
  %v243 = vand.u32 %v132, 2147483648
  %v244 = vor.u32 1.1754944e-38, %v243
  %v245 = vsel %vm242, %v244, %v240
  %v246 = vmul.f32 1.0, %v245
  %v247 = vrcp.pop %v133
  %v248 = vmul.f32 %v133, %v247
  %v249 = vsub.f32 1.0, %v248
  %v250 = vmul.f32 %v247, %v249
  %v251 = vadd.f32 %v247, %v250
  %vm252 = vweird.f32 %v133
  %vm253 = vweird.f32 %v247
  %vm254 = vmor %vm252, %vm253
  %v255 = vsel %vm254, %v247, %v251
  %v256 = vand.u32 2147483647, %v133
  %vm257 = vcmp.eq.f32.partialorder %v256, 8.507059e+37
  %v258 = vand.u32 %v133, 2147483648
  %v259 = vor.u32 1.1754944e-38, %v258
  %v260 = vsel %vm257, %v259, %v255
  %v261 = vmul.f32 1.0, %v260
  %v262 = vrcp.pop %v134
  %v263 = vmul.f32 %v134, %v262
  %v264 = vsub.f32 1.0, %v263
  %v265 = vmul.f32 %v262, %v264
  %v266 = vadd.f32 %v262, %v265
  %vm267 = vweird.f32 %v134
  %vm268 = vweird.f32 %v262
  %vm269 = vmor %vm267, %vm268
  %v270 = vsel %vm269, %v262, %v266
  %v271 = vand.u32 2147483647, %v134
  %vm272 = vcmp.eq.f32.partialorder %v271, 8.507059e+37
  %v273 = vand.u32 %v134, 2147483648
  %v274 = vor.u32 1.1754944e-38, %v273
  %v275 = vsel %vm272, %v274, %v270
  %v276 = vmul.f32 1.0, %v275
  %v277 = vrcp.pop %v135
  %v278 = vmul.f32 %v135, %v277
  %v279 = vsub.f32 1.0, %v278
  %v280 = vmul.f32 %v277, %v279
  %v281 = vadd.f32 %v277, %v280
  %vm282 = vweird.f32 %v135
  %vm283 = vweird.f32 %v277
  %vm284 = vmor %vm282, %vm283
  %v285 = vsel %vm284, %v277, %v281
  %v286 = vand.u32 2147483647, %v135
  %vm287 = vcmp.eq.f32.partialorder %v286, 8.507059e+37
  %v288 = vand.u32 %v135, 2147483648
  %v289 = vor.u32 1.1754944e-38, %v288
  %v290 = vsel %vm287, %v289, %v285
  %v291 = vmul.f32 1.0, %v290
  %v292 = vrcp.pop %v136
  %v293 = vmul.f32 %v136, %v292
  %v294 = vsub.f32 1.0, %v293
  %v295 = vmul.f32 %v292, %v294
  %v296 = vadd.f32 %v292, %v295
  %vm297 = vweird.f32 %v136
  %vm298 = vweird.f32 %v292
  %vm299 = vmor %vm297, %vm298
  %v300 = vsel %vm299, %v292, %v296
  %v301 = vand.u32 2147483647, %v136
  %vm302 = vcmp.eq.f32.partialorder %v301, 8.507059e+37
  %v303 = vand.u32 %v136, 2147483648
  %v304 = vor.u32 1.1754944e-38, %v303
  %v305 = vsel %vm302, %v304, %v300
  %v306 = vmul.f32 1.0, %v305
  %v307 = vrcp.pop %v137
  %v308 = vmul.f32 %v137, %v307
  %v309 = vsub.f32 1.0, %v308
  %v310 = vmul.f32 %v307, %v309
  %v311 = vadd.f32 %v307, %v310
  %vm312 = vweird.f32 %v137
  %vm313 = vweird.f32 %v307
  %vm314 = vmor %vm312, %vm313
  %v315 = vsel %vm314, %v307, %v311
  %v316 = vand.u32 2147483647, %v137
  %vm317 = vcmp.eq.f32.partialorder %v316, 8.507059e+37
  %v318 = vand.u32 %v137, 2147483648
  %v319 = vor.u32 1.1754944e-38, %v318
  %v320 = vsel %vm317, %v319, %v315
  %v321 = vmul.f32 1.0, %v320
  %v322 = vrcp.pop %v138
  %v323 = vmul.f32 %v138, %v322
  %v324 = vsub.f32 1.0, %v323
  %v325 = vmul.f32 %v322, %v324
  %v326 = vadd.f32 %v322, %v325
  %vm327 = vweird.f32 %v138
  %vm328 = vweird.f32 %v322
  %vm329 = vmor %vm327, %vm328
  %v330 = vsel %vm329, %v322, %v326
  %v331 = vand.u32 2147483647, %v138
  %vm332 = vcmp.eq.f32.partialorder %v331, 8.507059e+37
  %v333 = vand.u32 %v138, 2147483648
  %v334 = vor.u32 1.1754944e-38, %v333
  %v335 = vsel %vm332, %v334, %v330
  %v336 = vmul.f32 1.0, %v335
  %v337 = vrcp.pop %v139
  %v338 = vmul.f32 %v139, %v337
  %v339 = vsub.f32 1.0, %v338
  %v340 = vmul.f32 %v337, %v339
  %v341 = vadd.f32 %v337, %v340
  %vm342 = vweird.f32 %v139
  %vm343 = vweird.f32 %v337
  %vm344 = vmor %vm342, %vm343
  %v345 = vsel %vm344, %v337, %v341
  %v346 = vand.u32 2147483647, %v139
  %vm347 = vcmp.eq.f32.partialorder %v346, 8.507059e+37
  %v348 = vand.u32 %v139, 2147483648
  %v349 = vor.u32 1.1754944e-38, %v348
  %v350 = vsel %vm347, %v349, %v345
  %v351 = vmul.f32 1.0, %v350
  %v352 = vrcp.pop %v140
  %v353 = vmul.f32 %v140, %v352
  %v354 = vsub.f32 1.0, %v353
  %v355 = vmul.f32 %v352, %v354
  %v356 = vadd.f32 %v352, %v355
  %vm357 = vweird.f32 %v140
  %vm358 = vweird.f32 %v352
  %vm359 = vmor %vm357, %vm358
  %v360 = vsel %vm359, %v352, %v356
  %v361 = vand.u32 2147483647, %v140
  %vm362 = vcmp.eq.f32.partialorder %v361, 8.507059e+37
  %v363 = vand.u32 %v140, 2147483648
  %v364 = vor.u32 1.1754944e-38, %v363
  %v365 = vsel %vm362, %v364, %v360
  %v366 = vmul.f32 1.0, %v365
  %v367 = vrcp.pop %v141
  %v368 = vmul.f32 %v141, %v367
  %v369 = vsub.f32 1.0, %v368
  %v370 = vmul.f32 %v367, %v369
  %v371 = vadd.f32 %v367, %v370
  %vm372 = vweird.f32 %v141
  %vm373 = vweird.f32 %v367
  %vm374 = vmor %vm372, %vm373
  %v375 = vsel %vm374, %v367, %v371
  %v376 = vand.u32 2147483647, %v141
  %vm377 = vcmp.eq.f32.partialorder %v376, 8.507059e+37
  %v378 = vand.u32 %v141, 2147483648
  %v379 = vor.u32 1.1754944e-38, %v378
  %v380 = vsel %vm377, %v379, %v375
  %v381 = vmul.f32 1.0, %v380
  %v382 = vxor.u32 %v18, 2147483648
  %v383 = vxor.u32 %v19, 2147483648
  %v384 = vxor.u32 %v20, 2147483648
  %v385 = vxor.u32 %v21, 2147483648
  %v386 = vxor.u32 %v30, 2147483648
  %v387 = vxor.u32 %v31, 2147483648
  %v388 = vxor.u32 %v32, 2147483648
  %v389 = vxor.u32 %v33, 2147483648
  %v390 = vxor.u32 %v42, 2147483648
  %v391 = vxor.u32 %v43, 2147483648
  %v392 = vxor.u32 %v44, 2147483648
  %v393 = vxor.u32 %v45, 2147483648
  %v394 = vxor.u32 %v54, 2147483648
  %v395 = vxor.u32 %v55, 2147483648
  %v396 = vxor.u32 %v56, 2147483648
  %v397 = vxor.u32 %v57, 2147483648
  %v398 = vmul.f32 %v382, 1.442695
  %v399 = vpow.pop %v398
  %v400 = vmul.f32 %v383, 1.442695
  %v401 = vpow.pop %v400
  %v402 = vmul.f32 %v384, 1.442695
  %v403 = vpow.pop %v402
  %v404 = vmul.f32 %v385, 1.442695
  %v405 = vpow.pop %v404
  %v406 = vmul.f32 %v386, 1.442695
  %v407 = vpow.pop %v406
  %v408 = vmul.f32 %v387, 1.442695
  %v409 = vpow.pop %v408
  %v410 = vmul.f32 %v388, 1.442695
  %v411 = vpow.pop %v410
  %v412 = vmul.f32 %v389, 1.442695
  %v413 = vpow.pop %v412
  %v414 = vmul.f32 %v390, 1.442695
  %v415 = vpow.pop %v414
  %v416 = vmul.f32 %v391, 1.442695
  %v417 = vpow.pop %v416
  %v418 = vmul.f32 %v392, 1.442695
  %v419 = vpow.pop %v418
  %v420 = vmul.f32 %v393, 1.442695
  %v421 = vpow.pop %v420
  %v422 = vmul.f32 %v394, 1.442695
  %v423 = vpow.pop %v422
  %v424 = vmul.f32 %v395, 1.442695
  %v425 = vpow.pop %v424
  %v426 = vmul.f32 %v396, 1.442695
  %v427 = vpow.pop %v426
  %v428 = vmul.f32 %v397, 1.442695
  %v429 = vpow.pop %v428
  %v430 = vadd.f32 %v399, 1.0
  %v431 = vadd.f32 %v401, 1.0
  %v432 = vadd.f32 %v403, 1.0
  %v433 = vadd.f32 %v405, 1.0
  %v434 = vadd.f32 %v407, 1.0
  %v435 = vadd.f32 %v409, 1.0
  %v436 = vadd.f32 %v411, 1.0
  %v437 = vadd.f32 %v413, 1.0
  %v438 = vadd.f32 %v415, 1.0
  %v439 = vadd.f32 %v417, 1.0
  %v440 = vadd.f32 %v419, 1.0
  %v441 = vadd.f32 %v421, 1.0
  %v442 = vadd.f32 %v423, 1.0
  %v443 = vadd.f32 %v425, 1.0
  %v444 = vadd.f32 %v427, 1.0
  %v445 = vadd.f32 %v429, 1.0
  %v446 = vrcp.pop %v430
  %v447 = vmul.f32 %v430, %v446
  %v448 = vsub.f32 1.0, %v447
  %v449 = vmul.f32 %v446, %v448
  %v450 = vadd.f32 %v446, %v449
  %vm451 = vweird.f32 %v430
  %vm452 = vweird.f32 %v446
  %vm453 = vmor %vm451, %vm452
  %v454 = vsel %vm453, %v446, %v450
  %v455 = vand.u32 2147483647, %v430
  %vm456 = vcmp.eq.f32.partialorder %v455, 8.507059e+37
  %v457 = vand.u32 %v430, 2147483648
  %v458 = vor.u32 1.1754944e-38, %v457
  %v459 = vsel %vm456, %v458, %v454
  %v460 = vmul.f32 1.0, %v459
  %v461 = vrcp.pop %v431
  %v462 = vmul.f32 %v431, %v461
  %v463 = vsub.f32 1.0, %v462
  %v464 = vmul.f32 %v461, %v463
  %v465 = vadd.f32 %v461, %v464
  %vm466 = vweird.f32 %v431
  %vm467 = vweird.f32 %v461
  %vm468 = vmor %vm466, %vm467
  %v469 = vsel %vm468, %v461, %v465
  %v470 = vand.u32 2147483647, %v431
  %vm471 = vcmp.eq.f32.partialorder %v470, 8.507059e+37
  %v472 = vand.u32 %v431, 2147483648
  %v473 = vor.u32 1.1754944e-38, %v472
  %v474 = vsel %vm471, %v473, %v469
  %v475 = vmul.f32 1.0, %v474
  %v476 = vrcp.pop %v432
  %v477 = vmul.f32 %v432, %v476
  %v478 = vsub.f32 1.0, %v477
  %v479 = vmul.f32 %v476, %v478
  %v480 = vadd.f32 %v476, %v479
  %vm481 = vweird.f32 %v432
  %vm482 = vweird.f32 %v476
  %vm483 = vmor %vm481, %vm482
  %v484 = vsel %vm483, %v476, %v480
  %v485 = vand.u32 2147483647, %v432
  %vm486 = vcmp.eq.f32.partialorder %v485, 8.507059e+37
  %v487 = vand.u32 %v432, 2147483648
  %v488 = vor.u32 1.1754944e-38, %v487
  %v489 = vsel %vm486, %v488, %v484
  %v490 = vmul.f32 1.0, %v489
  %v491 = vrcp.pop %v433
  %v492 = vmul.f32 %v433, %v491
  %v493 = vsub.f32 1.0, %v492
  %v494 = vmul.f32 %v491, %v493
  %v495 = vadd.f32 %v491, %v494
  %vm496 = vweird.f32 %v433
  %vm497 = vweird.f32 %v491
  %vm498 = vmor %vm496, %vm497
  %v499 = vsel %vm498, %v491, %v495
  %v500 = vand.u32 2147483647, %v433
  %vm501 = vcmp.eq.f32.partialorder %v500, 8.507059e+37
  %v502 = vand.u32 %v433, 2147483648
  %v503 = vor.u32 1.1754944e-38, %v502
  %v504 = vsel %vm501, %v503, %v499
  %v505 = vmul.f32 1.0, %v504
  %v506 = vrcp.pop %v434
  %v507 = vmul.f32 %v434, %v506
  %v508 = vsub.f32 1.0, %v507
  %v509 = vmul.f32 %v506, %v508
  %v510 = vadd.f32 %v506, %v509
  %vm511 = vweird.f32 %v434
  %vm512 = vweird.f32 %v506
  %vm513 = vmor %vm511, %vm512
  %v514 = vsel %vm513, %v506, %v510
  %v515 = vand.u32 2147483647, %v434
  %vm516 = vcmp.eq.f32.partialorder %v515, 8.507059e+37
  %v517 = vand.u32 %v434, 2147483648
  %v518 = vor.u32 1.1754944e-38, %v517
  %v519 = vsel %vm516, %v518, %v514
  %v520 = vmul.f32 1.0, %v519
  %v521 = vrcp.pop %v435
  %v522 = vmul.f32 %v435, %v521
  %v523 = vsub.f32 1.0, %v522
  %v524 = vmul.f32 %v521, %v523
  %v525 = vadd.f32 %v521, %v524
  %vm526 = vweird.f32 %v435
  %vm527 = vweird.f32 %v521
  %vm528 = vmor %vm526, %vm527
  %v529 = vsel %vm528, %v521, %v525
  %v530 = vand.u32 2147483647, %v435
  %vm531 = vcmp.eq.f32.partialorder %v530, 8.507059e+37
  %v532 = vand.u32 %v435, 2147483648
  %v533 = vor.u32 1.1754944e-38, %v532
  %v534 = vsel %vm531, %v533, %v529
  %v535 = vmul.f32 1.0, %v534
  %v536 = vrcp.pop %v436
  %v537 = vmul.f32 %v436, %v536
  %v538 = vsub.f32 1.0, %v537
  %v539 = vmul.f32 %v536, %v538
  %v540 = vadd.f32 %v536, %v539
  %vm541 = vweird.f32 %v436
  %vm542 = vweird.f32 %v536
  %vm543 = vmor %vm541, %vm542
  %v544 = vsel %vm543, %v536, %v540
  %v545 = vand.u32 2147483647, %v436
  %vm546 = vcmp.eq.f32.partialorder %v545, 8.507059e+37
  %v547 = vand.u32 %v436, 2147483648
  %v548 = vor.u32 1.1754944e-38, %v547
  %v549 = vsel %vm546, %v548, %v544
  %v550 = vmul.f32 1.0, %v549
  %v551 = vrcp.pop %v437
  %v552 = vmul.f32 %v437, %v551
  %v553 = vsub.f32 1.0, %v552
  %v554 = vmul.f32 %v551, %v553
  %v555 = vadd.f32 %v551, %v554
  %vm556 = vweird.f32 %v437
  %vm557 = vweird.f32 %v551
  %vm558 = vmor %vm556, %vm557
  %v559 = vsel %vm558, %v551, %v555
  %v560 = vand.u32 2147483647, %v437
  %vm561 = vcmp.eq.f32.partialorder %v560, 8.507059e+37
  %v562 = vand.u32 %v437, 2147483648
  %v563 = vor.u32 1.1754944e-38, %v562
  %v564 = vsel %vm561, %v563, %v559
  %v565 = vmul.f32 1.0, %v564
  %v566 = vrcp.pop %v438
  %v567 = vmul.f32 %v438, %v566
  %v568 = vsub.f32 1.0, %v567
  %v569 = vmul.f32 %v566, %v568
  %v570 = vadd.f32 %v566, %v569
  %vm571 = vweird.f32 %v438
  %vm572 = vweird.f32 %v566
  %vm573 = vmor %vm571, %vm572
  %v574 = vsel %vm573, %v566, %v570
  %v575 = vand.u32 2147483647, %v438
  %vm576 = vcmp.eq.f32.partialorder %v575, 8.507059e+37
  %v577 = vand.u32 %v438, 2147483648
  %v578 = vor.u32 1.1754944e-38, %v577
  %v579 = vsel %vm576, %v578, %v574
  %v580 = vmul.f32 1.0, %v579
  %v581 = vrcp.pop %v439
  %v582 = vmul.f32 %v439, %v581
  %v583 = vsub.f32 1.0, %v582
  %v584 = vmul.f32 %v581, %v583
  %v585 = vadd.f32 %v581, %v584
  %vm586 = vweird.f32 %v439
  %vm587 = vweird.f32 %v581
  %vm588 = vmor %vm586, %vm587
  %v589 = vsel %vm588, %v581, %v585
  %v590 = vand.u32 2147483647, %v439
  %vm591 = vcmp.eq.f32.partialorder %v590, 8.507059e+37
  %v592 = vand.u32 %v439, 2147483648
  %v593 = vor.u32 1.1754944e-38, %v592
  %v594 = vsel %vm591, %v593, %v589
  %v595 = vmul.f32 1.0, %v594
  %v596 = vrcp.pop %v440
  %v597 = vmul.f32 %v440, %v596
  %v598 = vsub.f32 1.0, %v597
  %v599 = vmul.f32 %v596, %v598
  %v600 = vadd.f32 %v596, %v599
  %vm601 = vweird.f32 %v440
  %vm602 = vweird.f32 %v596
  %vm603 = vmor %vm601, %vm602
  %v604 = vsel %vm603, %v596, %v600
  %v605 = vand.u32 2147483647, %v440
  %vm606 = vcmp.eq.f32.partialorder %v605, 8.507059e+37
  %v607 = vand.u32 %v440, 2147483648
  %v608 = vor.u32 1.1754944e-38, %v607
  %v609 = vsel %vm606, %v608, %v604
  %v610 = vmul.f32 1.0, %v609
  %v611 = vrcp.pop %v441
  %v612 = vmul.f32 %v441, %v611
  %v613 = vsub.f32 1.0, %v612
  %v614 = vmul.f32 %v611, %v613
  %v615 = vadd.f32 %v611, %v614
  %vm616 = vweird.f32 %v441
  %vm617 = vweird.f32 %v611
  %vm618 = vmor %vm616, %vm617
  %v619 = vsel %vm618, %v611, %v615
  %v620 = vand.u32 2147483647, %v441
  %vm621 = vcmp.eq.f32.partialorder %v620, 8.507059e+37
  %v622 = vand.u32 %v441, 2147483648
  %v623 = vor.u32 1.1754944e-38, %v622
  %v624 = vsel %vm621, %v623, %v619
  %v625 = vmul.f32 1.0, %v624
  %v626 = vrcp.pop %v442
  %v627 = vmul.f32 %v442, %v626
  %v628 = vsub.f32 1.0, %v627
  %v629 = vmul.f32 %v626, %v628
  %v630 = vadd.f32 %v626, %v629
  %vm631 = vweird.f32 %v442
  %vm632 = vweird.f32 %v626
  %vm633 = vmor %vm631, %vm632
  %v634 = vsel %vm633, %v626, %v630
  %v635 = vand.u32 2147483647, %v442
  %vm636 = vcmp.eq.f32.partialorder %v635, 8.507059e+37
  %v637 = vand.u32 %v442, 2147483648
  %v638 = vor.u32 1.1754944e-38, %v637
  %v639 = vsel %vm636, %v638, %v634
  %v640 = vmul.f32 1.0, %v639
  %v641 = vrcp.pop %v443
  %v642 = vmul.f32 %v443, %v641
  %v643 = vsub.f32 1.0, %v642
  %v644 = vmul.f32 %v641, %v643
  %v645 = vadd.f32 %v641, %v644
  %vm646 = vweird.f32 %v443
  %vm647 = vweird.f32 %v641
  %vm648 = vmor %vm646, %vm647
  %v649 = vsel %vm648, %v641, %v645
  %v650 = vand.u32 2147483647, %v443
  %vm651 = vcmp.eq.f32.partialorder %v650, 8.507059e+37
  %v652 = vand.u32 %v443, 2147483648
  %v653 = vor.u32 1.1754944e-38, %v652
  %v654 = vsel %vm651, %v653, %v649
  %v655 = vmul.f32 1.0, %v654
  %v656 = vrcp.pop %v444
  %v657 = vmul.f32 %v444, %v656
  %v658 = vsub.f32 1.0, %v657
  %v659 = vmul.f32 %v656, %v658
  %v660 = vadd.f32 %v656, %v659
  %vm661 = vweird.f32 %v444
  %vm662 = vweird.f32 %v656
  %vm663 = vmor %vm661, %vm662
  %v664 = vsel %vm663, %v656, %v660
  %v665 = vand.u32 2147483647, %v444
  %vm666 = vcmp.eq.f32.partialorder %v665, 8.507059e+37
  %v667 = vand.u32 %v444, 2147483648
  %v668 = vor.u32 1.1754944e-38, %v667
  %v669 = vsel %vm666, %v668, %v664
  %v670 = vmul.f32 1.0, %v669
  %v671 = vrcp.pop %v445
  %v672 = vmul.f32 %v445, %v671
  %v673 = vsub.f32 1.0, %v672
  %v674 = vmul.f32 %v671, %v673
  %v675 = vadd.f32 %v671, %v674
  %vm676 = vweird.f32 %v445
  %vm677 = vweird.f32 %v671
  %vm678 = vmor %vm676, %vm677
  %v679 = vsel %vm678, %v671, %v675
  %v680 = vand.u32 2147483647, %v445
  %vm681 = vcmp.eq.f32.partialorder %v680, 8.507059e+37
  %v682 = vand.u32 %v445, 2147483648
  %v683 = vor.u32 1.1754944e-38, %v682
  %v684 = vsel %vm681, %v683, %v679
  %v685 = vmul.f32 1.0, %v684
  %v686 = vmul.f32 %v460, %v62
  %v687 = vmul.f32 %v475, %v63
  %v688 = vmul.f32 %v490, %v64
  %v689 = vmul.f32 %v505, %v65
  %v690 = vmul.f32 %v520, %v66
  %v691 = vmul.f32 %v535, %v67
  %v692 = vmul.f32 %v550, %v68
  %v693 = vmul.f32 %v565, %v69
  %v694 = vmul.f32 %v580, %v70
  %v695 = vmul.f32 %v595, %v71
  %v696 = vmul.f32 %v610, %v72
  %v697 = vmul.f32 %v625, %v73
  %v698 = vmul.f32 %v640, %v74
  %v699 = vmul.f32 %v655, %v75
  %v700 = vmul.f32 %v670, %v76
  %v701 = vmul.f32 %v685, %v77
  %vm710 = vcmask 1041408
  %v711 = vrot.slane %v686, 6
  %v712 = vrot.slane %v687, 6
  %v713 = vrot.slane %v688, 6
  %v714 = vrot.slane %v689, 6
  %v715 = vrot.slane %v690, 6
  %v716 = vsel %vm710, %v711, %v715
  %v717 = vrot.slane %v691, 6
  %v718 = vsel %vm710, %v712, %v717
  %v719 = vrot.slane %v692, 6
  %v720 = vsel %vm710, %v713, %v719
  %v721 = vrot.slane %v693, 6
  %v722 = vsel %vm710, %v714, %v721
  %v735 = vsel %vm710, 0.0, %v711
  %v736 = vsel %vm710, 0.0, %v712
  %v737 = vsel %vm710, 0.0, %v713
  %v738 = vsel %vm710, 0.0, %v714
  %v739 = vsel %vm710, %v715, 0.0
  %v740 = vsel %vm710, %v717, 0.0
  %v741 = vsel %vm710, %v719, 0.0
  %v742 = vsel %vm710, %v721, 0.0
  %v751 = vrot.slane %v694, 6
  %v752 = vrot.slane %v695, 6
  %v753 = vrot.slane %v696, 6
  %v754 = vrot.slane %v697, 6
  %v755 = vrot.slane %v698, 6
  %v756 = vsel %vm710, %v751, %v755
  %v757 = vrot.slane %v699, 6
  %v758 = vsel %vm710, %v752, %v757
  %v759 = vrot.slane %v700, 6
  %v760 = vsel %vm710, %v753, %v759
  %v761 = vrot.slane %v701, 6
  %v762 = vsel %vm710, %v754, %v761
  %v775 = vsel %vm710, 0.0, %v751
  %v776 = vsel %vm710, 0.0, %v752
  %v777 = vsel %vm710, 0.0, %v753
  %v778 = vsel %vm710, 0.0, %v754
  %v779 = vsel %vm710, %v755, 0.0
  %v780 = vsel %vm710, %v757, 0.0
  %v781 = vsel %vm710, %v759, 0.0
  %v782 = vsel %vm710, %v761, 0.0
  %v783 = vpack.c.bf16 %v716, %v735
  %v784 = vpack.c.bf16 %v718, %v736
  %v785 = vpack.c.bf16 %v720, %v737
  %v786 = vpack.c.bf16 %v722, %v738
  %v787 = vpack.c.bf16 %v756, %v775
  %v788 = vpack.c.bf16 %v758, %v776
  %v789 = vpack.c.bf16 %v760, %v777
  %v790 = vpack.c.bf16 %v762, %v778
  %v791 = vld [vmem:[%s2] sm:$0xff]
  %v792 = vld [vmem:[%s2 + $0x8] sm:$0xff]
  %v793 = vld [vmem:[%s2 + $0x10] sm:$0xff]
  %v794 = vld [vmem:[%s2 + $0x18] sm:$0xff]
  %v795 = vld [vmem:[%s2 + $0x20] sm:$0xff]
  %v796 = vld [vmem:[%s2 + $0x28] sm:$0xff]
  %v797 = vld [vmem:[%s2 + $0x30] sm:$0xff]
  %v798 = vld [vmem:[%s2 + $0x38] sm:$0xff]
  %v799 = vld [vmem:[%s2 + $0x40] sm:$0xff]
  %v800 = vld [vmem:[%s2 + $0x48] sm:$0xff]
  %v801 = vld [vmem:[%s2 + $0x50] sm:$0xff]
  %v802 = vld [vmem:[%s2 + $0x58] sm:$0xff]
  %v803 = vld [vmem:[%s2 + $0x60] sm:$0xff]
  %v804 = vld [vmem:[%s2 + $0x68] sm:$0xff]
  %v805 = vld [vmem:[%s2 + $0x70] sm:$0xff]
  %v806 = vld [vmem:[%s2 + $0x78] sm:$0xff]
  %v807 = vld [vmem:[%s2 + $0x80] sm:$0xff]
  %v808 = vld [vmem:[%s2 + $0x88] sm:$0xff]
  %v809 = vld [vmem:[%s2 + $0x90] sm:$0xff]
  %v810 = vld [vmem:[%s2 + $0x98] sm:$0xff]
  %v811 = vld [vmem:[%s2 + $0xa0] sm:$0xff]
  %v812 = vld [vmem:[%s2 + $0xa8] sm:$0xff]
  %v813 = vld [vmem:[%s2 + $0xb0] sm:$0xff]
  %v814 = vld [vmem:[%s2 + $0xb8] sm:$0xff]
  %v815 = vld [vmem:[%s2 + $0xc0] sm:$0xff]
  %v816 = vld [vmem:[%s2 + $0xc8] sm:$0xff]
  %v817 = vld [vmem:[%s2 + $0xd0] sm:$0xff]
  %v818 = vld [vmem:[%s2 + $0xd8] sm:$0xff]
  %v819 = vld [vmem:[%s2 + $0xe0] sm:$0xff]
  %v820 = vld [vmem:[%s2 + $0xe8] sm:$0xff]
  %v821 = vld [vmem:[%s2 + $0xf0] sm:$0xff]
  %v822 = vld [vmem:[%s2 + $0xf8] sm:$0xff]
  %v823 = vld [vmem:[%s2 + $0x100] sm:$0xff]
  %v824 = vld [vmem:[%s2 + $0x108] sm:$0xff]
  %v825 = vld [vmem:[%s2 + $0x110] sm:$0xff]
  %v826 = vld [vmem:[%s2 + $0x118] sm:$0xff]
  %v827 = vld [vmem:[%s2 + $0x120] sm:$0xff]
  %v828 = vld [vmem:[%s2 + $0x128] sm:$0xff]
  %v829 = vld [vmem:[%s2 + $0x130] sm:$0xff]
  %v830 = vld [vmem:[%s2 + $0x138] sm:$0xff]
  %v831 = vld [vmem:[%s2 + $0x140] sm:$0xff]
  %v832 = vld [vmem:[%s2 + $0x148] sm:$0xff]
  %v833 = vld [vmem:[%s2 + $0x150] sm:$0xff]
  %v834 = vld [vmem:[%s2 + $0x158] sm:$0xff]
  %v835 = vld [vmem:[%s2 + $0x160] sm:$0xff]
  %v836 = vld [vmem:[%s2 + $0x168] sm:$0xff]
  %v837 = vld [vmem:[%s2 + $0x170] sm:$0xff]
  %v838 = vld [vmem:[%s2 + $0x178] sm:$0xff]
  %v839 = vld [vmem:[%s2 + $0x180] sm:$0xff]
  %v840 = vld [vmem:[%s2 + $0x188] sm:$0xff]
  %v841 = vld [vmem:[%s2 + $0x190] sm:$0xff]
  %v842 = vld [vmem:[%s2 + $0x198] sm:$0xff]
  %v843 = vld [vmem:[%s2 + $0x1a0] sm:$0xff]
  %v844 = vld [vmem:[%s2 + $0x1a8] sm:$0xff]
  %v845 = vld [vmem:[%s2 + $0x1b0] sm:$0xff]
  %v846 = vld [vmem:[%s2 + $0x1b8] sm:$0xff]
  %v847 = vld [vmem:[%s2 + $0x1c0] sm:$0xff]
  %v848 = vld [vmem:[%s2 + $0x1c8] sm:$0xff]
  %v849 = vld [vmem:[%s2 + $0x1d0] sm:$0xff]
  %v850 = vld [vmem:[%s2 + $0x1d8] sm:$0xff]
  %v851 = vld [vmem:[%s2 + $0x1e0] sm:$0xff]
  %v852 = vld [vmem:[%s2 + $0x1e8] sm:$0xff]
  %v853 = vld [vmem:[%s2 + $0x1f0] sm:$0xff]
  %v854 = vld [vmem:[%s2 + $0x1f8] sm:$0xff]
  %v855 = vld [vmem:[%s2 + $0x200] sm:$0xff]
  %v856 = vld [vmem:[%s2 + $0x208] sm:$0xff]
  %v857 = vld [vmem:[%s2 + $0x210] sm:$0xff]
  %v858 = vld [vmem:[%s2 + $0x218] sm:$0xff]
  %v859 = vld [vmem:[%s2 + $0x220] sm:$0xff]
  %v860 = vld [vmem:[%s2 + $0x228] sm:$0xff]
  %v861 = vld [vmem:[%s2 + $0x230] sm:$0xff]
  %v862 = vld [vmem:[%s2 + $0x238] sm:$0xff]
  %v863 = vld [vmem:[%s2 + $0x240] sm:$0xff]
  %v864 = vld [vmem:[%s2 + $0x248] sm:$0xff]
  %v865 = vld [vmem:[%s2 + $0x250] sm:$0xff]
  %v866 = vld [vmem:[%s2 + $0x258] sm:$0xff]
  %v867 = vld [vmem:[%s2 + $0x260] sm:$0xff]
  %v868 = vld [vmem:[%s2 + $0x268] sm:$0xff]
  %v869 = vld [vmem:[%s2 + $0x270] sm:$0xff]
  %v870 = vld [vmem:[%s2 + $0x278] sm:$0xff]
  %v871 = vld [vmem:[%s2 + $0x280] sm:$0xff]
  %v872 = vld [vmem:[%s2 + $0x288] sm:$0xff]
  %v873 = vld [vmem:[%s2 + $0x290] sm:$0xff]
  %v874 = vld [vmem:[%s2 + $0x298] sm:$0xff]
  %v875 = vld [vmem:[%s2 + $0x2a0] sm:$0xff]
  %v876 = vld [vmem:[%s2 + $0x2a8] sm:$0xff]
  %v877 = vld [vmem:[%s2 + $0x2b0] sm:$0xff]
  %v878 = vld [vmem:[%s2 + $0x2b8] sm:$0xff]
  %v879 = vld [vmem:[%s2 + $0x2c0] sm:$0xff]
  %v880 = vld [vmem:[%s2 + $0x2c8] sm:$0xff]
  %v881 = vld [vmem:[%s2 + $0x2d0] sm:$0xff]
  %v882 = vld [vmem:[%s2 + $0x2d8] sm:$0xff]
  %v883 = vld [vmem:[%s2 + $0x2e0] sm:$0xff]
  %v884 = vld [vmem:[%s2 + $0x2e8] sm:$0xff]
  %v885 = vld [vmem:[%s2 + $0x2f0] sm:$0xff]
  %v886 = vld [vmem:[%s2 + $0x2f8] sm:$0xff]
  %v887 = vld [vmem:[%s2 + $0x300] sm:$0xff]
  %v888 = vld [vmem:[%s2 + $0x308] sm:$0xff]
  %v889 = vld [vmem:[%s2 + $0x310] sm:$0xff]
  %v890 = vld [vmem:[%s2 + $0x318] sm:$0xff]
  %v891 = vld [vmem:[%s2 + $0x320] sm:$0xff]
  %v892 = vld [vmem:[%s2 + $0x328] sm:$0xff]
  %v893 = vld [vmem:[%s2 + $0x330] sm:$0xff]
  %v894 = vld [vmem:[%s2 + $0x338] sm:$0xff]
  %v895 = vld [vmem:[%s2 + $0x340] sm:$0xff]
  %v896 = vld [vmem:[%s2 + $0x348] sm:$0xff]
  %v897 = vld [vmem:[%s2 + $0x350] sm:$0xff]
  %v898 = vld [vmem:[%s2 + $0x358] sm:$0xff]
  %v899 = vld [vmem:[%s2 + $0x360] sm:$0xff]
  %v900 = vld [vmem:[%s2 + $0x368] sm:$0xff]
  %v901 = vld [vmem:[%s2 + $0x370] sm:$0xff]
  %v902 = vld [vmem:[%s2 + $0x378] sm:$0xff]
  %v903 = vld [vmem:[%s2 + $0x380] sm:$0xff]
  %v904 = vld [vmem:[%s2 + $0x388] sm:$0xff]
  %v905 = vld [vmem:[%s2 + $0x390] sm:$0xff]
  %v906 = vld [vmem:[%s2 + $0x398] sm:$0xff]
  %v907 = vld [vmem:[%s2 + $0x3a0] sm:$0xff]
  %v908 = vld [vmem:[%s2 + $0x3a8] sm:$0xff]
  %v909 = vld [vmem:[%s2 + $0x3b0] sm:$0xff]
  %v910 = vld [vmem:[%s2 + $0x3b8] sm:$0xff]
  %v911 = vld [vmem:[%s2 + $0x3c0] sm:$0xff]
  %v912 = vld [vmem:[%s2 + $0x3c8] sm:$0xff]
  %v913 = vld [vmem:[%s2 + $0x3d0] sm:$0xff]
  %v914 = vld [vmem:[%s2 + $0x3d8] sm:$0xff]
  %v915 = vld [vmem:[%s2 + $0x3e0] sm:$0xff]
  %v916 = vld [vmem:[%s2 + $0x3e8] sm:$0xff]
  %v917 = vld [vmem:[%s2 + $0x3f0] sm:$0xff]
  %v918 = vld [vmem:[%s2 + $0x3f8] sm:$0xff]
  %v1047 = vunpack.c.l.b16 %v791
  %v1048 = vunpack.c.h.b16 %v791
  %v1049 = vunpack.c.l.b16 %v792
  %v1050 = vunpack.c.h.b16 %v792
  %v1051 = vunpack.c.l.b16 %v793
  %v1052 = vunpack.c.h.b16 %v793
  %v1053 = vunpack.c.l.b16 %v794
  %v1054 = vunpack.c.h.b16 %v794
  %v1055 = vunpack.c.l.b16 %v795
  %v1056 = vunpack.c.h.b16 %v795
  %v1057 = vunpack.c.l.b16 %v796
  %v1058 = vunpack.c.h.b16 %v796
  %v1059 = vunpack.c.l.b16 %v797
  %v1060 = vunpack.c.h.b16 %v797
  %v1061 = vunpack.c.l.b16 %v798
  %v1062 = vunpack.c.h.b16 %v798
  %v1063 = vunpack.c.l.b16 %v799
  %v1064 = vunpack.c.h.b16 %v799
  %v1065 = vunpack.c.l.b16 %v800
  %v1066 = vunpack.c.h.b16 %v800
  %v1067 = vunpack.c.l.b16 %v801
  %v1068 = vunpack.c.h.b16 %v801
  %v1069 = vunpack.c.l.b16 %v802
  %v1070 = vunpack.c.h.b16 %v802
  %v1071 = vunpack.c.l.b16 %v803
  %v1072 = vunpack.c.h.b16 %v803
  %v1073 = vunpack.c.l.b16 %v804
  %v1074 = vunpack.c.h.b16 %v804
  %v1075 = vunpack.c.l.b16 %v805
  %v1076 = vunpack.c.h.b16 %v805
  %v1077 = vunpack.c.l.b16 %v806
  %v1078 = vunpack.c.h.b16 %v806
  %v1079 = vunpack.c.l.b16 %v807
  %v1080 = vunpack.c.h.b16 %v807
  %v1081 = vunpack.c.l.b16 %v808
  %v1082 = vunpack.c.h.b16 %v808
  %v1083 = vunpack.c.l.b16 %v809
  %v1084 = vunpack.c.h.b16 %v809
  %v1085 = vunpack.c.l.b16 %v810
  %v1086 = vunpack.c.h.b16 %v810
  %v1087 = vunpack.c.l.b16 %v811
  %v1088 = vunpack.c.h.b16 %v811
  %v1089 = vunpack.c.l.b16 %v812
  %v1090 = vunpack.c.h.b16 %v812
  %v1091 = vunpack.c.l.b16 %v813
  %v1092 = vunpack.c.h.b16 %v813
  %v1093 = vunpack.c.l.b16 %v814
  %v1094 = vunpack.c.h.b16 %v814
  %v1095 = vunpack.c.l.b16 %v815
  %v1096 = vunpack.c.h.b16 %v815
  %v1097 = vunpack.c.l.b16 %v816
  %v1098 = vunpack.c.h.b16 %v816
  %v1099 = vunpack.c.l.b16 %v817
  %v1100 = vunpack.c.h.b16 %v817
  %v1101 = vunpack.c.l.b16 %v818
  %v1102 = vunpack.c.h.b16 %v818
  %v1103 = vunpack.c.l.b16 %v819
  %v1104 = vunpack.c.h.b16 %v819
  %v1105 = vunpack.c.l.b16 %v820
  %v1106 = vunpack.c.h.b16 %v820
  %v1107 = vunpack.c.l.b16 %v821
  %v1108 = vunpack.c.h.b16 %v821
  %v1109 = vunpack.c.l.b16 %v822
  %v1110 = vunpack.c.h.b16 %v822
  %v1111 = vunpack.c.l.b16 %v823
  %v1112 = vunpack.c.h.b16 %v823
  %v1113 = vunpack.c.l.b16 %v824
  %v1114 = vunpack.c.h.b16 %v824
  %v1115 = vunpack.c.l.b16 %v825
  %v1116 = vunpack.c.h.b16 %v825
  %v1117 = vunpack.c.l.b16 %v826
  %v1118 = vunpack.c.h.b16 %v826
  %v1119 = vunpack.c.l.b16 %v827
  %v1120 = vunpack.c.h.b16 %v827
  %v1121 = vunpack.c.l.b16 %v828
  %v1122 = vunpack.c.h.b16 %v828
  %v1123 = vunpack.c.l.b16 %v829
  %v1124 = vunpack.c.h.b16 %v829
  %v1125 = vunpack.c.l.b16 %v830
  %v1126 = vunpack.c.h.b16 %v830
  %v1127 = vunpack.c.l.b16 %v831
  %v1128 = vunpack.c.h.b16 %v831
  %v1129 = vunpack.c.l.b16 %v832
  %v1130 = vunpack.c.h.b16 %v832
  %v1131 = vunpack.c.l.b16 %v833
  %v1132 = vunpack.c.h.b16 %v833
  %v1133 = vunpack.c.l.b16 %v834
  %v1134 = vunpack.c.h.b16 %v834
  %v1135 = vunpack.c.l.b16 %v835
  %v1136 = vunpack.c.h.b16 %v835
  %v1137 = vunpack.c.l.b16 %v836
  %v1138 = vunpack.c.h.b16 %v836
  %v1139 = vunpack.c.l.b16 %v837
  %v1140 = vunpack.c.h.b16 %v837
  %v1141 = vunpack.c.l.b16 %v838
  %v1142 = vunpack.c.h.b16 %v838
  %v1143 = vunpack.c.l.b16 %v839
  %v1144 = vunpack.c.h.b16 %v839
  %v1145 = vunpack.c.l.b16 %v840
  %v1146 = vunpack.c.h.b16 %v840
  %v1147 = vunpack.c.l.b16 %v841
  %v1148 = vunpack.c.h.b16 %v841
  %v1149 = vunpack.c.l.b16 %v842
  %v1150 = vunpack.c.h.b16 %v842
  %v1151 = vunpack.c.l.b16 %v843
  %v1152 = vunpack.c.h.b16 %v843
  %v1153 = vunpack.c.l.b16 %v844
  %v1154 = vunpack.c.h.b16 %v844
  %v1155 = vunpack.c.l.b16 %v845
  %v1156 = vunpack.c.h.b16 %v845
  %v1157 = vunpack.c.l.b16 %v846
  %v1158 = vunpack.c.h.b16 %v846
  %v1159 = vunpack.c.l.b16 %v847
  %v1160 = vunpack.c.h.b16 %v847
  %v1161 = vunpack.c.l.b16 %v848
  %v1162 = vunpack.c.h.b16 %v848
  %v1163 = vunpack.c.l.b16 %v849
  %v1164 = vunpack.c.h.b16 %v849
  %v1165 = vunpack.c.l.b16 %v850
  %v1166 = vunpack.c.h.b16 %v850
  %v1167 = vunpack.c.l.b16 %v851
  %v1168 = vunpack.c.h.b16 %v851
  %v1169 = vunpack.c.l.b16 %v852
  %v1170 = vunpack.c.h.b16 %v852
  %v1171 = vunpack.c.l.b16 %v853
  %v1172 = vunpack.c.h.b16 %v853
  %v1173 = vunpack.c.l.b16 %v854
  %v1174 = vunpack.c.h.b16 %v854
  %v1175 = vunpack.c.l.b16 %v855
  %v1176 = vunpack.c.h.b16 %v855
  %v1177 = vunpack.c.l.b16 %v856
  %v1178 = vunpack.c.h.b16 %v856
  %v1179 = vunpack.c.l.b16 %v857
  %v1180 = vunpack.c.h.b16 %v857
  %v1181 = vunpack.c.l.b16 %v858
  %v1182 = vunpack.c.h.b16 %v858
  %v1183 = vunpack.c.l.b16 %v859
  %v1184 = vunpack.c.h.b16 %v859
  %v1185 = vunpack.c.l.b16 %v860
  %v1186 = vunpack.c.h.b16 %v860
  %v1187 = vunpack.c.l.b16 %v861
  %v1188 = vunpack.c.h.b16 %v861
  %v1189 = vunpack.c.l.b16 %v862
  %v1190 = vunpack.c.h.b16 %v862
  %v1191 = vunpack.c.l.b16 %v863
  %v1192 = vunpack.c.h.b16 %v863
  %v1193 = vunpack.c.l.b16 %v864
  %v1194 = vunpack.c.h.b16 %v864
  %v1195 = vunpack.c.l.b16 %v865
  %v1196 = vunpack.c.h.b16 %v865
  %v1197 = vunpack.c.l.b16 %v866
  %v1198 = vunpack.c.h.b16 %v866
  %v1199 = vunpack.c.l.b16 %v867
  %v1200 = vunpack.c.h.b16 %v867
  %v1201 = vunpack.c.l.b16 %v868
  %v1202 = vunpack.c.h.b16 %v868
  %v1203 = vunpack.c.l.b16 %v869
  %v1204 = vunpack.c.h.b16 %v869
  %v1205 = vunpack.c.l.b16 %v870
  %v1206 = vunpack.c.h.b16 %v870
  %v1207 = vunpack.c.l.b16 %v871
  %v1208 = vunpack.c.h.b16 %v871
  %v1209 = vunpack.c.l.b16 %v872
  %v1210 = vunpack.c.h.b16 %v872
  %v1211 = vunpack.c.l.b16 %v873
  %v1212 = vunpack.c.h.b16 %v873
  %v1213 = vunpack.c.l.b16 %v874
  %v1214 = vunpack.c.h.b16 %v874
  %v1215 = vunpack.c.l.b16 %v875
  %v1216 = vunpack.c.h.b16 %v875
  %v1217 = vunpack.c.l.b16 %v876
  %v1218 = vunpack.c.h.b16 %v876
  %v1219 = vunpack.c.l.b16 %v877
  %v1220 = vunpack.c.h.b16 %v877
  %v1221 = vunpack.c.l.b16 %v878
  %v1222 = vunpack.c.h.b16 %v878
  %v1223 = vunpack.c.l.b16 %v879
  %v1224 = vunpack.c.h.b16 %v879
  %v1225 = vunpack.c.l.b16 %v880
  %v1226 = vunpack.c.h.b16 %v880
  %v1227 = vunpack.c.l.b16 %v881
  %v1228 = vunpack.c.h.b16 %v881
  %v1229 = vunpack.c.l.b16 %v882
  %v1230 = vunpack.c.h.b16 %v882
  %v1231 = vunpack.c.l.b16 %v883
  %v1232 = vunpack.c.h.b16 %v883
  %v1233 = vunpack.c.l.b16 %v884
  %v1234 = vunpack.c.h.b16 %v884
  %v1235 = vunpack.c.l.b16 %v885
  %v1236 = vunpack.c.h.b16 %v885
  %v1237 = vunpack.c.l.b16 %v886
  %v1238 = vunpack.c.h.b16 %v886
  %v1239 = vunpack.c.l.b16 %v887
  %v1240 = vunpack.c.h.b16 %v887
  %v1241 = vunpack.c.l.b16 %v888
  %v1242 = vunpack.c.h.b16 %v888
  %v1243 = vunpack.c.l.b16 %v889
  %v1244 = vunpack.c.h.b16 %v889
  %v1245 = vunpack.c.l.b16 %v890
  %v1246 = vunpack.c.h.b16 %v890
  %v1247 = vunpack.c.l.b16 %v891
  %v1248 = vunpack.c.h.b16 %v891
  %v1249 = vunpack.c.l.b16 %v892
  %v1250 = vunpack.c.h.b16 %v892
  %v1251 = vunpack.c.l.b16 %v893
  %v1252 = vunpack.c.h.b16 %v893
  %v1253 = vunpack.c.l.b16 %v894
  %v1254 = vunpack.c.h.b16 %v894
  %v1255 = vunpack.c.l.b16 %v895
  %v1256 = vunpack.c.h.b16 %v895
  %v1257 = vunpack.c.l.b16 %v896
  %v1258 = vunpack.c.h.b16 %v896
  %v1259 = vunpack.c.l.b16 %v897
  %v1260 = vunpack.c.h.b16 %v897
  %v1261 = vunpack.c.l.b16 %v898
  %v1262 = vunpack.c.h.b16 %v898
  %v1263 = vunpack.c.l.b16 %v899
  %v1264 = vunpack.c.h.b16 %v899
  %v1265 = vunpack.c.l.b16 %v900
  %v1266 = vunpack.c.h.b16 %v900
  %v1267 = vunpack.c.l.b16 %v901
  %v1268 = vunpack.c.h.b16 %v901
  %v1269 = vunpack.c.l.b16 %v902
  %v1270 = vunpack.c.h.b16 %v902
  %v1271 = vunpack.c.l.b16 %v903
  %v1272 = vunpack.c.h.b16 %v903
  %v1273 = vunpack.c.l.b16 %v904
  %v1274 = vunpack.c.h.b16 %v904
  %v1275 = vunpack.c.l.b16 %v905
  %v1276 = vunpack.c.h.b16 %v905
  %v1277 = vunpack.c.l.b16 %v906
  %v1278 = vunpack.c.h.b16 %v906
  %v1279 = vunpack.c.l.b16 %v907
  %v1280 = vunpack.c.h.b16 %v907
  %v1281 = vunpack.c.l.b16 %v908
  %v1282 = vunpack.c.h.b16 %v908
  %v1283 = vunpack.c.l.b16 %v909
  %v1284 = vunpack.c.h.b16 %v909
  %v1285 = vunpack.c.l.b16 %v910
  %v1286 = vunpack.c.h.b16 %v910
  %v1287 = vunpack.c.l.b16 %v911
  %v1288 = vunpack.c.h.b16 %v911
  %v1289 = vunpack.c.l.b16 %v912
  %v1290 = vunpack.c.h.b16 %v912
  %v1291 = vunpack.c.l.b16 %v913
  %v1292 = vunpack.c.h.b16 %v913
  %v1293 = vunpack.c.l.b16 %v914
  %v1294 = vunpack.c.h.b16 %v914
  %v1295 = vunpack.c.l.b16 %v915
  %v1296 = vunpack.c.h.b16 %v915
  %v1297 = vunpack.c.l.b16 %v916
  %v1298 = vunpack.c.h.b16 %v916
  %v1299 = vunpack.c.l.b16 %v917
  %v1300 = vunpack.c.h.b16 %v917
  %v1301 = vunpack.c.l.b16 %v918
  %v1302 = vunpack.c.h.b16 %v918
  %v1303 = vpack.c.b16 %v1051, %v1047
  %v1304 = vpack.c.b16 %v1052, %v1048
  %v1305 = vpack.c.b16 %v1053, %v1049
  %v1306 = vpack.c.b16 %v1054, %v1050
  %v1307 = vpack.c.b16 %v1059, %v1055
  %v1308 = vpack.c.b16 %v1060, %v1056
  %v1309 = vpack.c.b16 %v1061, %v1057
  %v1310 = vpack.c.b16 %v1062, %v1058
  %v1311 = vpack.c.b16 %v1067, %v1063
  %v1312 = vpack.c.b16 %v1068, %v1064
  %v1313 = vpack.c.b16 %v1069, %v1065
  %v1314 = vpack.c.b16 %v1070, %v1066
  %v1315 = vpack.c.b16 %v1075, %v1071
  %v1316 = vpack.c.b16 %v1076, %v1072
  %v1317 = vpack.c.b16 %v1077, %v1073
  %v1318 = vpack.c.b16 %v1078, %v1074
  %v1319 = vpack.c.b16 %v1083, %v1079
  %v1320 = vpack.c.b16 %v1084, %v1080
  %v1321 = vpack.c.b16 %v1085, %v1081
  %v1322 = vpack.c.b16 %v1086, %v1082
  %v1323 = vpack.c.b16 %v1091, %v1087
  %v1324 = vpack.c.b16 %v1092, %v1088
  %v1325 = vpack.c.b16 %v1093, %v1089
  %v1326 = vpack.c.b16 %v1094, %v1090
  %v1327 = vpack.c.b16 %v1099, %v1095
  %v1328 = vpack.c.b16 %v1100, %v1096
  %v1329 = vpack.c.b16 %v1101, %v1097
  %v1330 = vpack.c.b16 %v1102, %v1098
  %v1331 = vpack.c.b16 %v1107, %v1103
  %v1332 = vpack.c.b16 %v1108, %v1104
  %v1333 = vpack.c.b16 %v1109, %v1105
  %v1334 = vpack.c.b16 %v1110, %v1106
  %v1335 = vpack.c.b16 %v1115, %v1111
  %v1336 = vpack.c.b16 %v1116, %v1112
  %v1337 = vpack.c.b16 %v1117, %v1113
  %v1338 = vpack.c.b16 %v1118, %v1114
  %v1339 = vpack.c.b16 %v1123, %v1119
  %v1340 = vpack.c.b16 %v1124, %v1120
  %v1341 = vpack.c.b16 %v1125, %v1121
  %v1342 = vpack.c.b16 %v1126, %v1122
  %v1343 = vpack.c.b16 %v1131, %v1127
  %v1344 = vpack.c.b16 %v1132, %v1128
  %v1345 = vpack.c.b16 %v1133, %v1129
  %v1346 = vpack.c.b16 %v1134, %v1130
  %v1347 = vpack.c.b16 %v1139, %v1135
  %v1348 = vpack.c.b16 %v1140, %v1136
  %v1349 = vpack.c.b16 %v1141, %v1137
  %v1350 = vpack.c.b16 %v1142, %v1138
  %v1351 = vpack.c.b16 %v1147, %v1143
  %v1352 = vpack.c.b16 %v1148, %v1144
  %v1353 = vpack.c.b16 %v1149, %v1145
  %v1354 = vpack.c.b16 %v1150, %v1146
  %v1355 = vpack.c.b16 %v1155, %v1151
  %v1356 = vpack.c.b16 %v1156, %v1152
  %v1357 = vpack.c.b16 %v1157, %v1153
  %v1358 = vpack.c.b16 %v1158, %v1154
  %v1359 = vpack.c.b16 %v1163, %v1159
  %v1360 = vpack.c.b16 %v1164, %v1160
  %v1361 = vpack.c.b16 %v1165, %v1161
  %v1362 = vpack.c.b16 %v1166, %v1162
  %v1363 = vpack.c.b16 %v1171, %v1167
  %v1364 = vpack.c.b16 %v1172, %v1168
  %v1365 = vpack.c.b16 %v1173, %v1169
  %v1366 = vpack.c.b16 %v1174, %v1170
  %v1367 = vpack.c.b16 %v1179, %v1175
  %v1368 = vpack.c.b16 %v1180, %v1176
  %v1369 = vpack.c.b16 %v1181, %v1177
  %v1370 = vpack.c.b16 %v1182, %v1178
  %v1371 = vpack.c.b16 %v1187, %v1183
  %v1372 = vpack.c.b16 %v1188, %v1184
  %v1373 = vpack.c.b16 %v1189, %v1185
  %v1374 = vpack.c.b16 %v1190, %v1186
  %v1375 = vpack.c.b16 %v1195, %v1191
  %v1376 = vpack.c.b16 %v1196, %v1192
  %v1377 = vpack.c.b16 %v1197, %v1193
  %v1378 = vpack.c.b16 %v1198, %v1194
  %v1379 = vpack.c.b16 %v1203, %v1199
  %v1380 = vpack.c.b16 %v1204, %v1200
  %v1381 = vpack.c.b16 %v1205, %v1201
  %v1382 = vpack.c.b16 %v1206, %v1202
  %v1383 = vpack.c.b16 %v1211, %v1207
  %v1384 = vpack.c.b16 %v1212, %v1208
  %v1385 = vpack.c.b16 %v1213, %v1209
  %v1386 = vpack.c.b16 %v1214, %v1210
  %v1387 = vpack.c.b16 %v1219, %v1215
  %v1388 = vpack.c.b16 %v1220, %v1216
  %v1389 = vpack.c.b16 %v1221, %v1217
  %v1390 = vpack.c.b16 %v1222, %v1218
  %v1391 = vpack.c.b16 %v1227, %v1223
  %v1392 = vpack.c.b16 %v1228, %v1224
  %v1393 = vpack.c.b16 %v1229, %v1225
  %v1394 = vpack.c.b16 %v1230, %v1226
  %v1395 = vpack.c.b16 %v1235, %v1231
  %v1396 = vpack.c.b16 %v1236, %v1232
  %v1397 = vpack.c.b16 %v1237, %v1233
  %v1398 = vpack.c.b16 %v1238, %v1234
  %v1399 = vpack.c.b16 %v1243, %v1239
  %v1400 = vpack.c.b16 %v1244, %v1240
  %v1401 = vpack.c.b16 %v1245, %v1241
  %v1402 = vpack.c.b16 %v1246, %v1242
  %v1403 = vpack.c.b16 %v1251, %v1247
  %v1404 = vpack.c.b16 %v1252, %v1248
  %v1405 = vpack.c.b16 %v1253, %v1249
  %v1406 = vpack.c.b16 %v1254, %v1250
  %v1407 = vpack.c.b16 %v1259, %v1255
  %v1408 = vpack.c.b16 %v1260, %v1256
  %v1409 = vpack.c.b16 %v1261, %v1257
  %v1410 = vpack.c.b16 %v1262, %v1258
  %v1411 = vpack.c.b16 %v1267, %v1263
  %v1412 = vpack.c.b16 %v1268, %v1264
  %v1413 = vpack.c.b16 %v1269, %v1265
  %v1414 = vpack.c.b16 %v1270, %v1266
  %v1415 = vpack.c.b16 %v1275, %v1271
  %v1416 = vpack.c.b16 %v1276, %v1272
  %v1417 = vpack.c.b16 %v1277, %v1273
  %v1418 = vpack.c.b16 %v1278, %v1274
  %v1419 = vpack.c.b16 %v1283, %v1279
  %v1420 = vpack.c.b16 %v1284, %v1280
  %v1421 = vpack.c.b16 %v1285, %v1281
  %v1422 = vpack.c.b16 %v1286, %v1282
  %v1423 = vpack.c.b16 %v1291, %v1287
  %v1424 = vpack.c.b16 %v1292, %v1288
  %v1425 = vpack.c.b16 %v1293, %v1289
  %v1426 = vpack.c.b16 %v1294, %v1290
  %v1427 = vpack.c.b16 %v1299, %v1295
  %v1428 = vpack.c.b16 %v1300, %v1296
  %v1429 = vpack.c.b16 %v1301, %v1297
  %v1430 = vpack.c.b16 %v1302, %v1298
  %1559 = vmatpush.bf16.msra.mxu0 %v1331
  %1560 = vmatpush.bf16.msra.mxu0 %v1327
  %1561 = vmatpush.bf16.msra.mxu0 %v1323
  %1562 = vmatpush.bf16.msra.mxu0 %v1319
  %1563 = vmatpush.bf16.msra.mxu0 %v1315
  %1564 = vmatpush.bf16.msra.mxu0 %v1311
  %1565 = vmatpush.bf16.msra.mxu0 %v1307
  %1566 = vmatpush.bf16.msra.mxu0 %v1303
  %1567 = vmatmul.bf16.gmra.mxu0 %v783
  %v1568 = vpop.f32.mrf.mxu0
  %v1569 = vadd.f32 0.0, %v1568
  %v1570 = vpop.f32.mrf.mxu0
  %v1571 = vadd.f32 0.0, %v1570
  %1572 = vmatmul.bf16.gmra.mxu0 %v787
  %v1573 = vpop.f32.mrf.mxu0
  %v1574 = vadd.f32 0.0, %v1573
  %v1575 = vpop.f32.mrf.mxu0
  %v1576 = vadd.f32 0.0, %v1575
  %1577 = vdwg.mxu0
  %1578 = vmatpush.bf16.msra.mxu0 %v1363
  %1579 = vmatpush.bf16.msra.mxu0 %v1359
  %1580 = vmatpush.bf16.msra.mxu0 %v1355
  %1581 = vmatpush.bf16.msra.mxu0 %v1351
  %1582 = vmatpush.bf16.msra.mxu0 %v1347
  %1583 = vmatpush.bf16.msra.mxu0 %v1343
  %1584 = vmatpush.bf16.msra.mxu0 %v1339
  %1585 = vmatpush.bf16.msra.mxu0 %v1335
  %1586 = vmatmul.bf16.gmra.mxu0 %v784
  %v1587 = vpop.f32.mrf.mxu0
  %v1588 = vadd.f32 %v1569, %v1587
  %v1589 = vpop.f32.mrf.mxu0
  %v1590 = vadd.f32 %v1571, %v1589
  %1591 = vmatmul.bf16.gmra.mxu0 %v788
  %v1592 = vpop.f32.mrf.mxu0
  %v1593 = vadd.f32 %v1574, %v1592
  %v1594 = vpop.f32.mrf.mxu0
  %v1595 = vadd.f32 %v1576, %v1594
  %1596 = vdwg.mxu0
  %1597 = vmatpush.bf16.msra.mxu0 %v1395
  %1598 = vmatpush.bf16.msra.mxu0 %v1391
  %1599 = vmatpush.bf16.msra.mxu0 %v1387
  %1600 = vmatpush.bf16.msra.mxu0 %v1383
  %1601 = vmatpush.bf16.msra.mxu0 %v1379
  %1602 = vmatpush.bf16.msra.mxu0 %v1375
  %1603 = vmatpush.bf16.msra.mxu0 %v1371
  %1604 = vmatpush.bf16.msra.mxu0 %v1367
  %1605 = vmatmul.bf16.gmra.mxu0 %v785
  %v1606 = vpop.f32.mrf.mxu0
  %v1607 = vadd.f32 %v1588, %v1606
  %v1608 = vpop.f32.mrf.mxu0
  %v1609 = vadd.f32 %v1590, %v1608
  %1610 = vmatmul.bf16.gmra.mxu0 %v789
  %v1611 = vpop.f32.mrf.mxu0
  %v1612 = vadd.f32 %v1593, %v1611
  %v1613 = vpop.f32.mrf.mxu0
  %v1614 = vadd.f32 %v1595, %v1613
  %1615 = vdwg.mxu0
  %1616 = vmatpush.bf16.msra.mxu0 %v1427
  %1617 = vmatpush.bf16.msra.mxu0 %v1423
  %1618 = vmatpush.bf16.msra.mxu0 %v1419
  %1619 = vmatpush.bf16.msra.mxu0 %v1415
  %1620 = vmatpush.bf16.msra.mxu0 %v1411
  %1621 = vmatpush.bf16.msra.mxu0 %v1407
  %1622 = vmatpush.bf16.msra.mxu0 %v1403
  %1623 = vmatpush.bf16.msra.mxu0 %v1399
  %1624 = vmatmul.bf16.gmra.mxu0 %v786
  %v1625 = vpop.f32.mrf.mxu0
  %v1626 = vadd.f32 %v1607, %v1625
  %v1627 = vpop.f32.mrf.mxu0
  %v1628 = vadd.f32 %v1609, %v1627
  %1629 = vmatmul.bf16.gmra.mxu0 %v790
  %v1630 = vpop.f32.mrf.mxu0
  %v1631 = vadd.f32 %v1612, %v1630
  %v1632 = vpop.f32.mrf.mxu0
  %v1633 = vadd.f32 %v1614, %v1632
  %1634 = vdwg.mxu0
  %1635 = vmatpush.bf16.msra.mxu0 %v1332
  %1636 = vmatpush.bf16.msra.mxu0 %v1328
  %1637 = vmatpush.bf16.msra.mxu0 %v1324
  %1638 = vmatpush.bf16.msra.mxu0 %v1320
  %1639 = vmatpush.bf16.msra.mxu0 %v1316
  %1640 = vmatpush.bf16.msra.mxu0 %v1312
  %1641 = vmatpush.bf16.msra.mxu0 %v1308
  %1642 = vmatpush.bf16.msra.mxu0 %v1304
  %1643 = vmatmul.bf16.gmra.mxu0 %v783
  %v1644 = vpop.f32.mrf.mxu0
  %v1645 = vadd.f32 0.0, %v1644
  %v1646 = vpop.f32.mrf.mxu0
  %v1647 = vadd.f32 0.0, %v1646
  %1648 = vmatmul.bf16.gmra.mxu0 %v787
  %v1649 = vpop.f32.mrf.mxu0
  %v1650 = vadd.f32 0.0, %v1649
  %v1651 = vpop.f32.mrf.mxu0
  %v1652 = vadd.f32 0.0, %v1651
  %1653 = vdwg.mxu0
  %1654 = vmatpush.bf16.msra.mxu0 %v1364
  %1655 = vmatpush.bf16.msra.mxu0 %v1360
  %1656 = vmatpush.bf16.msra.mxu0 %v1356
  %1657 = vmatpush.bf16.msra.mxu0 %v1352
  %1658 = vmatpush.bf16.msra.mxu0 %v1348
  %1659 = vmatpush.bf16.msra.mxu0 %v1344
  %1660 = vmatpush.bf16.msra.mxu0 %v1340
  %1661 = vmatpush.bf16.msra.mxu0 %v1336
  %1662 = vmatmul.bf16.gmra.mxu0 %v784
  %v1663 = vpop.f32.mrf.mxu0
  %v1664 = vadd.f32 %v1645, %v1663
  %v1665 = vpop.f32.mrf.mxu0
  %v1666 = vadd.f32 %v1647, %v1665
  %1667 = vmatmul.bf16.gmra.mxu0 %v788
  %v1668 = vpop.f32.mrf.mxu0
  %v1669 = vadd.f32 %v1650, %v1668
  %v1670 = vpop.f32.mrf.mxu0
  %v1671 = vadd.f32 %v1652, %v1670
  %1672 = vdwg.mxu0
  %1673 = vmatpush.bf16.msra.mxu0 %v1396
  %1674 = vmatpush.bf16.msra.mxu0 %v1392
  %1675 = vmatpush.bf16.msra.mxu0 %v1388
  %1676 = vmatpush.bf16.msra.mxu0 %v1384
  %1677 = vmatpush.bf16.msra.mxu0 %v1380
  %1678 = vmatpush.bf16.msra.mxu0 %v1376
  %1679 = vmatpush.bf16.msra.mxu0 %v1372
  %1680 = vmatpush.bf16.msra.mxu0 %v1368
  %1681 = vmatmul.bf16.gmra.mxu0 %v785
  %v1682 = vpop.f32.mrf.mxu0
  %v1683 = vadd.f32 %v1664, %v1682
  %v1684 = vpop.f32.mrf.mxu0
  %v1685 = vadd.f32 %v1666, %v1684
  %1686 = vmatmul.bf16.gmra.mxu0 %v789
  %v1687 = vpop.f32.mrf.mxu0
  %v1688 = vadd.f32 %v1669, %v1687
  %v1689 = vpop.f32.mrf.mxu0
  %v1690 = vadd.f32 %v1671, %v1689
  %1691 = vdwg.mxu0
  %1692 = vmatpush.bf16.msra.mxu0 %v1428
  %1693 = vmatpush.bf16.msra.mxu0 %v1424
  %1694 = vmatpush.bf16.msra.mxu0 %v1420
  %1695 = vmatpush.bf16.msra.mxu0 %v1416
  %1696 = vmatpush.bf16.msra.mxu0 %v1412
  %1697 = vmatpush.bf16.msra.mxu0 %v1408
  %1698 = vmatpush.bf16.msra.mxu0 %v1404
  %1699 = vmatpush.bf16.msra.mxu0 %v1400
  %1700 = vmatmul.bf16.gmra.mxu0 %v786
  %v1701 = vpop.f32.mrf.mxu0
  %v1702 = vadd.f32 %v1683, %v1701
  %v1703 = vpop.f32.mrf.mxu0
  %v1704 = vadd.f32 %v1685, %v1703
  %1705 = vmatmul.bf16.gmra.mxu0 %v790
  %v1706 = vpop.f32.mrf.mxu0
  %v1707 = vadd.f32 %v1688, %v1706
  %v1708 = vpop.f32.mrf.mxu0
  %v1709 = vadd.f32 %v1690, %v1708
  %1710 = vdwg.mxu0
  %1711 = vmatpush.bf16.msra.mxu0 %v1333
  %1712 = vmatpush.bf16.msra.mxu0 %v1329
  %1713 = vmatpush.bf16.msra.mxu0 %v1325
  %1714 = vmatpush.bf16.msra.mxu0 %v1321
  %1715 = vmatpush.bf16.msra.mxu0 %v1317
  %1716 = vmatpush.bf16.msra.mxu0 %v1313
  %1717 = vmatpush.bf16.msra.mxu0 %v1309
  %1718 = vmatpush.bf16.msra.mxu0 %v1305
  %1719 = vmatmul.bf16.gmra.mxu0 %v783
  %v1720 = vpop.f32.mrf.mxu0
  %v1721 = vadd.f32 0.0, %v1720
  %v1722 = vpop.f32.mrf.mxu0
  %v1723 = vadd.f32 0.0, %v1722
  %1724 = vmatmul.bf16.gmra.mxu0 %v787
  %v1725 = vpop.f32.mrf.mxu0
  %v1726 = vadd.f32 0.0, %v1725
  %v1727 = vpop.f32.mrf.mxu0
  %v1728 = vadd.f32 0.0, %v1727
  %1729 = vdwg.mxu0
  %1730 = vmatpush.bf16.msra.mxu0 %v1365
  %1731 = vmatpush.bf16.msra.mxu0 %v1361
  %1732 = vmatpush.bf16.msra.mxu0 %v1357
  %1733 = vmatpush.bf16.msra.mxu0 %v1353
  %1734 = vmatpush.bf16.msra.mxu0 %v1349
  %1735 = vmatpush.bf16.msra.mxu0 %v1345
  %1736 = vmatpush.bf16.msra.mxu0 %v1341
  %1737 = vmatpush.bf16.msra.mxu0 %v1337
  %1738 = vmatmul.bf16.gmra.mxu0 %v784
  %v1739 = vpop.f32.mrf.mxu0
  %v1740 = vadd.f32 %v1721, %v1739
  %v1741 = vpop.f32.mrf.mxu0
  %v1742 = vadd.f32 %v1723, %v1741
  %1743 = vmatmul.bf16.gmra.mxu0 %v788
  %v1744 = vpop.f32.mrf.mxu0
  %v1745 = vadd.f32 %v1726, %v1744
  %v1746 = vpop.f32.mrf.mxu0
  %v1747 = vadd.f32 %v1728, %v1746
  %1748 = vdwg.mxu0
  %1749 = vmatpush.bf16.msra.mxu0 %v1397
  %1750 = vmatpush.bf16.msra.mxu0 %v1393
  %1751 = vmatpush.bf16.msra.mxu0 %v1389
  %1752 = vmatpush.bf16.msra.mxu0 %v1385
  %1753 = vmatpush.bf16.msra.mxu0 %v1381
  %1754 = vmatpush.bf16.msra.mxu0 %v1377
  %1755 = vmatpush.bf16.msra.mxu0 %v1373
  %1756 = vmatpush.bf16.msra.mxu0 %v1369
  %1757 = vmatmul.bf16.gmra.mxu0 %v785
  %v1758 = vpop.f32.mrf.mxu0
  %v1759 = vadd.f32 %v1740, %v1758
  %v1760 = vpop.f32.mrf.mxu0
  %v1761 = vadd.f32 %v1742, %v1760
  %1762 = vmatmul.bf16.gmra.mxu0 %v789
  %v1763 = vpop.f32.mrf.mxu0
  %v1764 = vadd.f32 %v1745, %v1763
  %v1765 = vpop.f32.mrf.mxu0
  %v1766 = vadd.f32 %v1747, %v1765
  %1767 = vdwg.mxu0
  %1768 = vmatpush.bf16.msra.mxu0 %v1429
  %1769 = vmatpush.bf16.msra.mxu0 %v1425
  %1770 = vmatpush.bf16.msra.mxu0 %v1421
  %1771 = vmatpush.bf16.msra.mxu0 %v1417
  %1772 = vmatpush.bf16.msra.mxu0 %v1413
  %1773 = vmatpush.bf16.msra.mxu0 %v1409
  %1774 = vmatpush.bf16.msra.mxu0 %v1405
  %1775 = vmatpush.bf16.msra.mxu0 %v1401
  %1776 = vmatmul.bf16.gmra.mxu0 %v786
  %v1777 = vpop.f32.mrf.mxu0
  %v1778 = vadd.f32 %v1759, %v1777
  %v1779 = vpop.f32.mrf.mxu0
  %v1780 = vadd.f32 %v1761, %v1779
  %1781 = vmatmul.bf16.gmra.mxu0 %v790
  %v1782 = vpop.f32.mrf.mxu0
  %v1783 = vadd.f32 %v1764, %v1782
  %v1784 = vpop.f32.mrf.mxu0
  %v1785 = vadd.f32 %v1766, %v1784
  %1786 = vdwg.mxu0
  %1787 = vmatpush.bf16.msra.mxu0 %v1334
  %1788 = vmatpush.bf16.msra.mxu0 %v1330
  %1789 = vmatpush.bf16.msra.mxu0 %v1326
  %1790 = vmatpush.bf16.msra.mxu0 %v1322
  %1791 = vmatpush.bf16.msra.mxu0 %v1318
  %1792 = vmatpush.bf16.msra.mxu0 %v1314
  %1793 = vmatpush.bf16.msra.mxu0 %v1310
  %1794 = vmatpush.bf16.msra.mxu0 %v1306
  %1795 = vmatmul.bf16.gmra.mxu0 %v783
  %v1796 = vpop.f32.mrf.mxu0
  %v1797 = vadd.f32 0.0, %v1796
  %v1798 = vpop.f32.mrf.mxu0
  %v1799 = vadd.f32 0.0, %v1798
  %1800 = vmatmul.bf16.gmra.mxu0 %v787
  %v1801 = vpop.f32.mrf.mxu0
  %v1802 = vadd.f32 0.0, %v1801
  %v1803 = vpop.f32.mrf.mxu0
  %v1804 = vadd.f32 0.0, %v1803
  %1805 = vdwg.mxu0
  %1806 = vmatpush.bf16.msra.mxu0 %v1366
  %1807 = vmatpush.bf16.msra.mxu0 %v1362
  %1808 = vmatpush.bf16.msra.mxu0 %v1358
  %1809 = vmatpush.bf16.msra.mxu0 %v1354
  %1810 = vmatpush.bf16.msra.mxu0 %v1350
  %1811 = vmatpush.bf16.msra.mxu0 %v1346
  %1812 = vmatpush.bf16.msra.mxu0 %v1342
  %1813 = vmatpush.bf16.msra.mxu0 %v1338
  %1814 = vmatmul.bf16.gmra.mxu0 %v784
  %v1815 = vpop.f32.mrf.mxu0
  %v1816 = vadd.f32 %v1797, %v1815
  %v1817 = vpop.f32.mrf.mxu0
  %v1818 = vadd.f32 %v1799, %v1817
  %1819 = vmatmul.bf16.gmra.mxu0 %v788
  %v1820 = vpop.f32.mrf.mxu0
  %v1821 = vadd.f32 %v1802, %v1820
  %v1822 = vpop.f32.mrf.mxu0
  %v1823 = vadd.f32 %v1804, %v1822
  %1824 = vdwg.mxu0
  %1825 = vmatpush.bf16.msra.mxu0 %v1398
  %1826 = vmatpush.bf16.msra.mxu0 %v1394
  %1827 = vmatpush.bf16.msra.mxu0 %v1390
  %1828 = vmatpush.bf16.msra.mxu0 %v1386
  %1829 = vmatpush.bf16.msra.mxu0 %v1382
  %1830 = vmatpush.bf16.msra.mxu0 %v1378
  %1831 = vmatpush.bf16.msra.mxu0 %v1374
  %1832 = vmatpush.bf16.msra.mxu0 %v1370
  %1833 = vmatmul.bf16.gmra.mxu0 %v785
  %v1834 = vpop.f32.mrf.mxu0
  %v1835 = vadd.f32 %v1816, %v1834
  %v1836 = vpop.f32.mrf.mxu0
  %v1837 = vadd.f32 %v1818, %v1836
  %1838 = vmatmul.bf16.gmra.mxu0 %v789
  %v1839 = vpop.f32.mrf.mxu0
  %v1840 = vadd.f32 %v1821, %v1839
  %v1841 = vpop.f32.mrf.mxu0
  %v1842 = vadd.f32 %v1823, %v1841
  %1843 = vdwg.mxu0
  %1844 = vmatpush.bf16.msra.mxu0 %v1430
  %1845 = vmatpush.bf16.msra.mxu0 %v1426
  %1846 = vmatpush.bf16.msra.mxu0 %v1422
  %1847 = vmatpush.bf16.msra.mxu0 %v1418
  %1848 = vmatpush.bf16.msra.mxu0 %v1414
  %1849 = vmatpush.bf16.msra.mxu0 %v1410
  %1850 = vmatpush.bf16.msra.mxu0 %v1406
  %1851 = vmatpush.bf16.msra.mxu0 %v1402
  %1852 = vmatmul.bf16.gmra.mxu0 %v786
  %v1853 = vpop.f32.mrf.mxu0
  %v1854 = vadd.f32 %v1835, %v1853
  %v1855 = vpop.f32.mrf.mxu0
  %v1856 = vadd.f32 %v1837, %v1855
  %1857 = vmatmul.bf16.gmra.mxu0 %v790
  %v1858 = vpop.f32.mrf.mxu0
  %v1859 = vadd.f32 %v1840, %v1858
  %v1860 = vpop.f32.mrf.mxu0
  %v1861 = vadd.f32 %v1842, %v1860
  %1862 = vdwg.mxu0
  %v1863 = vadd.f32 %v22, %v1626
  %v1864 = vadd.f32 %v23, %v1702
  %v1865 = vadd.f32 %v24, %v1778
  %v1866 = vadd.f32 %v25, %v1854
  %v1867 = vadd.f32 %v34, %v1628
  %v1868 = vadd.f32 %v35, %v1704
  %v1869 = vadd.f32 %v36, %v1780
  %v1870 = vadd.f32 %v37, %v1856
  %v1871 = vadd.f32 %v46, %v1631
  %v1872 = vadd.f32 %v47, %v1707
  %v1873 = vadd.f32 %v48, %v1783
  %v1874 = vadd.f32 %v49, %v1859
  %v1875 = vadd.f32 %v58, %v1633
  %v1876 = vadd.f32 %v59, %v1709
  %v1877 = vadd.f32 %v60, %v1785
  %v1878 = vadd.f32 %v61, %v1861
  %vm1887 = vcmask 1046528
  %v1888 = vrot.slane %v735, 1
  %v1889 = vrot.slane %v716, 1
  %v1890 = vsel %vm1887, %v1888, %v1889
  %v1891 = vrot.slane %v736, 1
  %v1892 = vrot.slane %v718, 1
  %v1893 = vsel %vm1887, %v1891, %v1892
  %v1894 = vrot.slane %v737, 1
  %v1895 = vrot.slane %v720, 1
  %v1896 = vsel %vm1887, %v1894, %v1895
  %v1897 = vrot.slane %v738, 1
  %v1898 = vrot.slane %v722, 1
  %v1899 = vsel %vm1887, %v1897, %v1898
  %v1900 = vrot.slane %v739, 1
  %v1901 = vsel %vm1887, %v1889, %v1900
  %v1902 = vrot.slane %v740, 1
  %v1903 = vsel %vm1887, %v1892, %v1902
  %v1904 = vrot.slane %v741, 1
  %v1905 = vsel %vm1887, %v1895, %v1904
  %v1906 = vrot.slane %v742, 1
  %v1907 = vsel %vm1887, %v1898, %v1906
  %v1924 = vrot.slane %v775, 1
  %v1925 = vrot.slane %v756, 1
  %v1926 = vsel %vm1887, %v1924, %v1925
  %v1927 = vrot.slane %v776, 1
  %v1928 = vrot.slane %v758, 1
  %v1929 = vsel %vm1887, %v1927, %v1928
  %v1930 = vrot.slane %v777, 1
  %v1931 = vrot.slane %v760, 1
  %v1932 = vsel %vm1887, %v1930, %v1931
  %v1933 = vrot.slane %v778, 1
  %v1934 = vrot.slane %v762, 1
  %v1935 = vsel %vm1887, %v1933, %v1934
  %v1936 = vrot.slane %v779, 1
  %v1937 = vsel %vm1887, %v1925, %v1936
  %v1938 = vrot.slane %v780, 1
  %v1939 = vsel %vm1887, %v1928, %v1938
  %v1940 = vrot.slane %v781, 1
  %v1941 = vsel %vm1887, %v1931, %v1940
  %v1942 = vrot.slane %v782, 1
  %v1943 = vsel %vm1887, %v1934, %v1942
  %v1952 = vpack.c.bf16 %v1901, %v1890
  %v1953 = vpack.c.bf16 %v1903, %v1893
  %v1954 = vpack.c.bf16 %v1905, %v1896
  %v1955 = vpack.c.bf16 %v1907, %v1899
  %v1956 = vpack.c.bf16 %v1937, %v1926
  %v1957 = vpack.c.bf16 %v1939, %v1929
  %v1958 = vpack.c.bf16 %v1941, %v1932
  %v1959 = vpack.c.bf16 %v1943, %v1935
  %v1960 = vld [vmem:[%s2 + $0x400] sm:$0xff]
  %v1961 = vld [vmem:[%s2 + $0x408] sm:$0xff]
  %v1962 = vld [vmem:[%s2 + $0x410] sm:$0xff]
  %v1963 = vld [vmem:[%s2 + $0x418] sm:$0xff]
  %v1964 = vld [vmem:[%s2 + $0x420] sm:$0xff]
  %v1965 = vld [vmem:[%s2 + $0x428] sm:$0xff]
  %v1966 = vld [vmem:[%s2 + $0x430] sm:$0xff]
  %v1967 = vld [vmem:[%s2 + $0x438] sm:$0xff]
  %v1968 = vld [vmem:[%s2 + $0x440] sm:$0xff]
  %v1969 = vld [vmem:[%s2 + $0x448] sm:$0xff]
  %v1970 = vld [vmem:[%s2 + $0x450] sm:$0xff]
  %v1971 = vld [vmem:[%s2 + $0x458] sm:$0xff]
  %v1972 = vld [vmem:[%s2 + $0x460] sm:$0xff]
  %v1973 = vld [vmem:[%s2 + $0x468] sm:$0xff]
  %v1974 = vld [vmem:[%s2 + $0x470] sm:$0xff]
  %v1975 = vld [vmem:[%s2 + $0x478] sm:$0xff]
  %v1976 = vld [vmem:[%s2 + $0x480] sm:$0xff]
  %v1977 = vld [vmem:[%s2 + $0x488] sm:$0xff]
  %v1978 = vld [vmem:[%s2 + $0x490] sm:$0xff]
  %v1979 = vld [vmem:[%s2 + $0x498] sm:$0xff]
  %v1980 = vld [vmem:[%s2 + $0x4a0] sm:$0xff]
  %v1981 = vld [vmem:[%s2 + $0x4a8] sm:$0xff]
  %v1982 = vld [vmem:[%s2 + $0x4b0] sm:$0xff]
  %v1983 = vld [vmem:[%s2 + $0x4b8] sm:$0xff]
  %v1984 = vld [vmem:[%s2 + $0x4c0] sm:$0xff]
  %v1985 = vld [vmem:[%s2 + $0x4c8] sm:$0xff]
  %v1986 = vld [vmem:[%s2 + $0x4d0] sm:$0xff]
  %v1987 = vld [vmem:[%s2 + $0x4d8] sm:$0xff]
  %v1988 = vld [vmem:[%s2 + $0x4e0] sm:$0xff]
  %v1989 = vld [vmem:[%s2 + $0x4e8] sm:$0xff]
  %v1990 = vld [vmem:[%s2 + $0x4f0] sm:$0xff]
  %v1991 = vld [vmem:[%s2 + $0x4f8] sm:$0xff]
  %v1992 = vld [vmem:[%s2 + $0x500] sm:$0xff]
  %v1993 = vld [vmem:[%s2 + $0x508] sm:$0xff]
  %v1994 = vld [vmem:[%s2 + $0x510] sm:$0xff]
  %v1995 = vld [vmem:[%s2 + $0x518] sm:$0xff]
  %v1996 = vld [vmem:[%s2 + $0x520] sm:$0xff]
  %v1997 = vld [vmem:[%s2 + $0x528] sm:$0xff]
  %v1998 = vld [vmem:[%s2 + $0x530] sm:$0xff]
  %v1999 = vld [vmem:[%s2 + $0x538] sm:$0xff]
  %v2000 = vld [vmem:[%s2 + $0x540] sm:$0xff]
  %v2001 = vld [vmem:[%s2 + $0x548] sm:$0xff]
  %v2002 = vld [vmem:[%s2 + $0x550] sm:$0xff]
  %v2003 = vld [vmem:[%s2 + $0x558] sm:$0xff]
  %v2004 = vld [vmem:[%s2 + $0x560] sm:$0xff]
  %v2005 = vld [vmem:[%s2 + $0x568] sm:$0xff]
  %v2006 = vld [vmem:[%s2 + $0x570] sm:$0xff]
  %v2007 = vld [vmem:[%s2 + $0x578] sm:$0xff]
  %v2008 = vld [vmem:[%s2 + $0x580] sm:$0xff]
  %v2009 = vld [vmem:[%s2 + $0x588] sm:$0xff]
  %v2010 = vld [vmem:[%s2 + $0x590] sm:$0xff]
  %v2011 = vld [vmem:[%s2 + $0x598] sm:$0xff]
  %v2012 = vld [vmem:[%s2 + $0x5a0] sm:$0xff]
  %v2013 = vld [vmem:[%s2 + $0x5a8] sm:$0xff]
  %v2014 = vld [vmem:[%s2 + $0x5b0] sm:$0xff]
  %v2015 = vld [vmem:[%s2 + $0x5b8] sm:$0xff]
  %v2016 = vld [vmem:[%s2 + $0x5c0] sm:$0xff]
  %v2017 = vld [vmem:[%s2 + $0x5c8] sm:$0xff]
  %v2018 = vld [vmem:[%s2 + $0x5d0] sm:$0xff]
  %v2019 = vld [vmem:[%s2 + $0x5d8] sm:$0xff]
  %v2020 = vld [vmem:[%s2 + $0x5e0] sm:$0xff]
  %v2021 = vld [vmem:[%s2 + $0x5e8] sm:$0xff]
  %v2022 = vld [vmem:[%s2 + $0x5f0] sm:$0xff]
  %v2023 = vld [vmem:[%s2 + $0x5f8] sm:$0xff]
  %v2024 = vld [vmem:[%s2 + $0x600] sm:$0xff]
  %v2025 = vld [vmem:[%s2 + $0x608] sm:$0xff]
  %v2026 = vld [vmem:[%s2 + $0x610] sm:$0xff]
  %v2027 = vld [vmem:[%s2 + $0x618] sm:$0xff]
  %v2028 = vld [vmem:[%s2 + $0x620] sm:$0xff]
  %v2029 = vld [vmem:[%s2 + $0x628] sm:$0xff]
  %v2030 = vld [vmem:[%s2 + $0x630] sm:$0xff]
  %v2031 = vld [vmem:[%s2 + $0x638] sm:$0xff]
  %v2032 = vld [vmem:[%s2 + $0x640] sm:$0xff]
  %v2033 = vld [vmem:[%s2 + $0x648] sm:$0xff]
  %v2034 = vld [vmem:[%s2 + $0x650] sm:$0xff]
  %v2035 = vld [vmem:[%s2 + $0x658] sm:$0xff]
  %v2036 = vld [vmem:[%s2 + $0x660] sm:$0xff]
  %v2037 = vld [vmem:[%s2 + $0x668] sm:$0xff]
  %v2038 = vld [vmem:[%s2 + $0x670] sm:$0xff]
  %v2039 = vld [vmem:[%s2 + $0x678] sm:$0xff]
  %v2040 = vld [vmem:[%s2 + $0x680] sm:$0xff]
  %v2041 = vld [vmem:[%s2 + $0x688] sm:$0xff]
  %v2042 = vld [vmem:[%s2 + $0x690] sm:$0xff]
  %v2043 = vld [vmem:[%s2 + $0x698] sm:$0xff]
  %v2044 = vld [vmem:[%s2 + $0x6a0] sm:$0xff]
  %v2045 = vld [vmem:[%s2 + $0x6a8] sm:$0xff]
  %v2046 = vld [vmem:[%s2 + $0x6b0] sm:$0xff]
  %v2047 = vld [vmem:[%s2 + $0x6b8] sm:$0xff]
  %v2048 = vld [vmem:[%s2 + $0x6c0] sm:$0xff]
  %v2049 = vld [vmem:[%s2 + $0x6c8] sm:$0xff]
  %v2050 = vld [vmem:[%s2 + $0x6d0] sm:$0xff]
  %v2051 = vld [vmem:[%s2 + $0x6d8] sm:$0xff]
  %v2052 = vld [vmem:[%s2 + $0x6e0] sm:$0xff]
  %v2053 = vld [vmem:[%s2 + $0x6e8] sm:$0xff]
  %v2054 = vld [vmem:[%s2 + $0x6f0] sm:$0xff]
  %v2055 = vld [vmem:[%s2 + $0x6f8] sm:$0xff]
  %v2056 = vld [vmem:[%s2 + $0x700] sm:$0xff]
  %v2057 = vld [vmem:[%s2 + $0x708] sm:$0xff]
  %v2058 = vld [vmem:[%s2 + $0x710] sm:$0xff]
  %v2059 = vld [vmem:[%s2 + $0x718] sm:$0xff]
  %v2060 = vld [vmem:[%s2 + $0x720] sm:$0xff]
  %v2061 = vld [vmem:[%s2 + $0x728] sm:$0xff]
  %v2062 = vld [vmem:[%s2 + $0x730] sm:$0xff]
  %v2063 = vld [vmem:[%s2 + $0x738] sm:$0xff]
  %v2064 = vld [vmem:[%s2 + $0x740] sm:$0xff]
  %v2065 = vld [vmem:[%s2 + $0x748] sm:$0xff]
  %v2066 = vld [vmem:[%s2 + $0x750] sm:$0xff]
  %v2067 = vld [vmem:[%s2 + $0x758] sm:$0xff]
  %v2068 = vld [vmem:[%s2 + $0x760] sm:$0xff]
  %v2069 = vld [vmem:[%s2 + $0x768] sm:$0xff]
  %v2070 = vld [vmem:[%s2 + $0x770] sm:$0xff]
  %v2071 = vld [vmem:[%s2 + $0x778] sm:$0xff]
  %v2072 = vld [vmem:[%s2 + $0x780] sm:$0xff]
  %v2073 = vld [vmem:[%s2 + $0x788] sm:$0xff]
  %v2074 = vld [vmem:[%s2 + $0x790] sm:$0xff]
  %v2075 = vld [vmem:[%s2 + $0x798] sm:$0xff]
  %v2076 = vld [vmem:[%s2 + $0x7a0] sm:$0xff]
  %v2077 = vld [vmem:[%s2 + $0x7a8] sm:$0xff]
  %v2078 = vld [vmem:[%s2 + $0x7b0] sm:$0xff]
  %v2079 = vld [vmem:[%s2 + $0x7b8] sm:$0xff]
  %v2080 = vld [vmem:[%s2 + $0x7c0] sm:$0xff]
  %v2081 = vld [vmem:[%s2 + $0x7c8] sm:$0xff]
  %v2082 = vld [vmem:[%s2 + $0x7d0] sm:$0xff]
  %v2083 = vld [vmem:[%s2 + $0x7d8] sm:$0xff]
  %v2084 = vld [vmem:[%s2 + $0x7e0] sm:$0xff]
  %v2085 = vld [vmem:[%s2 + $0x7e8] sm:$0xff]
  %v2086 = vld [vmem:[%s2 + $0x7f0] sm:$0xff]
  %v2087 = vld [vmem:[%s2 + $0x7f8] sm:$0xff]
  %v2216 = vunpack.c.l.b16 %v1960
  %v2217 = vunpack.c.h.b16 %v1960
  %v2218 = vunpack.c.l.b16 %v1961
  %v2219 = vunpack.c.h.b16 %v1961
  %v2220 = vunpack.c.l.b16 %v1962
  %v2221 = vunpack.c.h.b16 %v1962
  %v2222 = vunpack.c.l.b16 %v1963
  %v2223 = vunpack.c.h.b16 %v1963
  %v2224 = vunpack.c.l.b16 %v1964
  %v2225 = vunpack.c.h.b16 %v1964
  %v2226 = vunpack.c.l.b16 %v1965
  %v2227 = vunpack.c.h.b16 %v1965
  %v2228 = vunpack.c.l.b16 %v1966
  %v2229 = vunpack.c.h.b16 %v1966
  %v2230 = vunpack.c.l.b16 %v1967
  %v2231 = vunpack.c.h.b16 %v1967
  %v2232 = vunpack.c.l.b16 %v1968
  %v2233 = vunpack.c.h.b16 %v1968
  %v2234 = vunpack.c.l.b16 %v1969
  %v2235 = vunpack.c.h.b16 %v1969
  %v2236 = vunpack.c.l.b16 %v1970
  %v2237 = vunpack.c.h.b16 %v1970
  %v2238 = vunpack.c.l.b16 %v1971
  %v2239 = vunpack.c.h.b16 %v1971
  %v2240 = vunpack.c.l.b16 %v1972
  %v2241 = vunpack.c.h.b16 %v1972
  %v2242 = vunpack.c.l.b16 %v1973
  %v2243 = vunpack.c.h.b16 %v1973
  %v2244 = vunpack.c.l.b16 %v1974
  %v2245 = vunpack.c.h.b16 %v1974
  %v2246 = vunpack.c.l.b16 %v1975
  %v2247 = vunpack.c.h.b16 %v1975
  %v2248 = vunpack.c.l.b16 %v1976
  %v2249 = vunpack.c.h.b16 %v1976
  %v2250 = vunpack.c.l.b16 %v1977
  %v2251 = vunpack.c.h.b16 %v1977
  %v2252 = vunpack.c.l.b16 %v1978
  %v2253 = vunpack.c.h.b16 %v1978
  %v2254 = vunpack.c.l.b16 %v1979
  %v2255 = vunpack.c.h.b16 %v1979
  %v2256 = vunpack.c.l.b16 %v1980
  %v2257 = vunpack.c.h.b16 %v1980
  %v2258 = vunpack.c.l.b16 %v1981
  %v2259 = vunpack.c.h.b16 %v1981
  %v2260 = vunpack.c.l.b16 %v1982
  %v2261 = vunpack.c.h.b16 %v1982
  %v2262 = vunpack.c.l.b16 %v1983
  %v2263 = vunpack.c.h.b16 %v1983
  %v2264 = vunpack.c.l.b16 %v1984
  %v2265 = vunpack.c.h.b16 %v1984
  %v2266 = vunpack.c.l.b16 %v1985
  %v2267 = vunpack.c.h.b16 %v1985
  %v2268 = vunpack.c.l.b16 %v1986
  %v2269 = vunpack.c.h.b16 %v1986
  %v2270 = vunpack.c.l.b16 %v1987
  %v2271 = vunpack.c.h.b16 %v1987
  %v2272 = vunpack.c.l.b16 %v1988
  %v2273 = vunpack.c.h.b16 %v1988
  %v2274 = vunpack.c.l.b16 %v1989
  %v2275 = vunpack.c.h.b16 %v1989
  %v2276 = vunpack.c.l.b16 %v1990
  %v2277 = vunpack.c.h.b16 %v1990
  %v2278 = vunpack.c.l.b16 %v1991
  %v2279 = vunpack.c.h.b16 %v1991
  %v2280 = vunpack.c.l.b16 %v1992
  %v2281 = vunpack.c.h.b16 %v1992
  %v2282 = vunpack.c.l.b16 %v1993
  %v2283 = vunpack.c.h.b16 %v1993
  %v2284 = vunpack.c.l.b16 %v1994
  %v2285 = vunpack.c.h.b16 %v1994
  %v2286 = vunpack.c.l.b16 %v1995
  %v2287 = vunpack.c.h.b16 %v1995
  %v2288 = vunpack.c.l.b16 %v1996
  %v2289 = vunpack.c.h.b16 %v1996
  %v2290 = vunpack.c.l.b16 %v1997
  %v2291 = vunpack.c.h.b16 %v1997
  %v2292 = vunpack.c.l.b16 %v1998
  %v2293 = vunpack.c.h.b16 %v1998
  %v2294 = vunpack.c.l.b16 %v1999
  %v2295 = vunpack.c.h.b16 %v1999
  %v2296 = vunpack.c.l.b16 %v2000
  %v2297 = vunpack.c.h.b16 %v2000
  %v2298 = vunpack.c.l.b16 %v2001
  %v2299 = vunpack.c.h.b16 %v2001
  %v2300 = vunpack.c.l.b16 %v2002
  %v2301 = vunpack.c.h.b16 %v2002
  %v2302 = vunpack.c.l.b16 %v2003
  %v2303 = vunpack.c.h.b16 %v2003
  %v2304 = vunpack.c.l.b16 %v2004
  %v2305 = vunpack.c.h.b16 %v2004
  %v2306 = vunpack.c.l.b16 %v2005
  %v2307 = vunpack.c.h.b16 %v2005
  %v2308 = vunpack.c.l.b16 %v2006
  %v2309 = vunpack.c.h.b16 %v2006
  %v2310 = vunpack.c.l.b16 %v2007
  %v2311 = vunpack.c.h.b16 %v2007
  %v2312 = vunpack.c.l.b16 %v2008
  %v2313 = vunpack.c.h.b16 %v2008
  %v2314 = vunpack.c.l.b16 %v2009
  %v2315 = vunpack.c.h.b16 %v2009
  %v2316 = vunpack.c.l.b16 %v2010
  %v2317 = vunpack.c.h.b16 %v2010
  %v2318 = vunpack.c.l.b16 %v2011
  %v2319 = vunpack.c.h.b16 %v2011
  %v2320 = vunpack.c.l.b16 %v2012
  %v2321 = vunpack.c.h.b16 %v2012
  %v2322 = vunpack.c.l.b16 %v2013
  %v2323 = vunpack.c.h.b16 %v2013
  %v2324 = vunpack.c.l.b16 %v2014
  %v2325 = vunpack.c.h.b16 %v2014
  %v2326 = vunpack.c.l.b16 %v2015
  %v2327 = vunpack.c.h.b16 %v2015
  %v2328 = vunpack.c.l.b16 %v2016
  %v2329 = vunpack.c.h.b16 %v2016
  %v2330 = vunpack.c.l.b16 %v2017
  %v2331 = vunpack.c.h.b16 %v2017
  %v2332 = vunpack.c.l.b16 %v2018
  %v2333 = vunpack.c.h.b16 %v2018
  %v2334 = vunpack.c.l.b16 %v2019
  %v2335 = vunpack.c.h.b16 %v2019
  %v2336 = vunpack.c.l.b16 %v2020
  %v2337 = vunpack.c.h.b16 %v2020
  %v2338 = vunpack.c.l.b16 %v2021
  %v2339 = vunpack.c.h.b16 %v2021
  %v2340 = vunpack.c.l.b16 %v2022
  %v2341 = vunpack.c.h.b16 %v2022
  %v2342 = vunpack.c.l.b16 %v2023
  %v2343 = vunpack.c.h.b16 %v2023
  %v2344 = vunpack.c.l.b16 %v2024
  %v2345 = vunpack.c.h.b16 %v2024
  %v2346 = vunpack.c.l.b16 %v2025
  %v2347 = vunpack.c.h.b16 %v2025
  %v2348 = vunpack.c.l.b16 %v2026
  %v2349 = vunpack.c.h.b16 %v2026
  %v2350 = vunpack.c.l.b16 %v2027
  %v2351 = vunpack.c.h.b16 %v2027
  %v2352 = vunpack.c.l.b16 %v2028
  %v2353 = vunpack.c.h.b16 %v2028
  %v2354 = vunpack.c.l.b16 %v2029
  %v2355 = vunpack.c.h.b16 %v2029
  %v2356 = vunpack.c.l.b16 %v2030
  %v2357 = vunpack.c.h.b16 %v2030
  %v2358 = vunpack.c.l.b16 %v2031
  %v2359 = vunpack.c.h.b16 %v2031
  %v2360 = vunpack.c.l.b16 %v2032
  %v2361 = vunpack.c.h.b16 %v2032
  %v2362 = vunpack.c.l.b16 %v2033
  %v2363 = vunpack.c.h.b16 %v2033
  %v2364 = vunpack.c.l.b16 %v2034
  %v2365 = vunpack.c.h.b16 %v2034
  %v2366 = vunpack.c.l.b16 %v2035
  %v2367 = vunpack.c.h.b16 %v2035
  %v2368 = vunpack.c.l.b16 %v2036
  %v2369 = vunpack.c.h.b16 %v2036
  %v2370 = vunpack.c.l.b16 %v2037
  %v2371 = vunpack.c.h.b16 %v2037
  %v2372 = vunpack.c.l.b16 %v2038
  %v2373 = vunpack.c.h.b16 %v2038
  %v2374 = vunpack.c.l.b16 %v2039
  %v2375 = vunpack.c.h.b16 %v2039
  %v2376 = vunpack.c.l.b16 %v2040
  %v2377 = vunpack.c.h.b16 %v2040
  %v2378 = vunpack.c.l.b16 %v2041
  %v2379 = vunpack.c.h.b16 %v2041
  %v2380 = vunpack.c.l.b16 %v2042
  %v2381 = vunpack.c.h.b16 %v2042
  %v2382 = vunpack.c.l.b16 %v2043
  %v2383 = vunpack.c.h.b16 %v2043
  %v2384 = vunpack.c.l.b16 %v2044
  %v2385 = vunpack.c.h.b16 %v2044
  %v2386 = vunpack.c.l.b16 %v2045
  %v2387 = vunpack.c.h.b16 %v2045
  %v2388 = vunpack.c.l.b16 %v2046
  %v2389 = vunpack.c.h.b16 %v2046
  %v2390 = vunpack.c.l.b16 %v2047
  %v2391 = vunpack.c.h.b16 %v2047
  %v2392 = vunpack.c.l.b16 %v2048
  %v2393 = vunpack.c.h.b16 %v2048
  %v2394 = vunpack.c.l.b16 %v2049
  %v2395 = vunpack.c.h.b16 %v2049
  %v2396 = vunpack.c.l.b16 %v2050
  %v2397 = vunpack.c.h.b16 %v2050
  %v2398 = vunpack.c.l.b16 %v2051
  %v2399 = vunpack.c.h.b16 %v2051
  %v2400 = vunpack.c.l.b16 %v2052
  %v2401 = vunpack.c.h.b16 %v2052
  %v2402 = vunpack.c.l.b16 %v2053
  %v2403 = vunpack.c.h.b16 %v2053
  %v2404 = vunpack.c.l.b16 %v2054
  %v2405 = vunpack.c.h.b16 %v2054
  %v2406 = vunpack.c.l.b16 %v2055
  %v2407 = vunpack.c.h.b16 %v2055
  %v2408 = vunpack.c.l.b16 %v2056
  %v2409 = vunpack.c.h.b16 %v2056
  %v2410 = vunpack.c.l.b16 %v2057
  %v2411 = vunpack.c.h.b16 %v2057
  %v2412 = vunpack.c.l.b16 %v2058
  %v2413 = vunpack.c.h.b16 %v2058
  %v2414 = vunpack.c.l.b16 %v2059
  %v2415 = vunpack.c.h.b16 %v2059
  %v2416 = vunpack.c.l.b16 %v2060
  %v2417 = vunpack.c.h.b16 %v2060
  %v2418 = vunpack.c.l.b16 %v2061
  %v2419 = vunpack.c.h.b16 %v2061
  %v2420 = vunpack.c.l.b16 %v2062
  %v2421 = vunpack.c.h.b16 %v2062
  %v2422 = vunpack.c.l.b16 %v2063
  %v2423 = vunpack.c.h.b16 %v2063
  %v2424 = vunpack.c.l.b16 %v2064
  %v2425 = vunpack.c.h.b16 %v2064
  %v2426 = vunpack.c.l.b16 %v2065
  %v2427 = vunpack.c.h.b16 %v2065
  %v2428 = vunpack.c.l.b16 %v2066
  %v2429 = vunpack.c.h.b16 %v2066
  %v2430 = vunpack.c.l.b16 %v2067
  %v2431 = vunpack.c.h.b16 %v2067
  %v2432 = vunpack.c.l.b16 %v2068
  %v2433 = vunpack.c.h.b16 %v2068
  %v2434 = vunpack.c.l.b16 %v2069
  %v2435 = vunpack.c.h.b16 %v2069
  %v2436 = vunpack.c.l.b16 %v2070
  %v2437 = vunpack.c.h.b16 %v2070
  %v2438 = vunpack.c.l.b16 %v2071
  %v2439 = vunpack.c.h.b16 %v2071
  %v2440 = vunpack.c.l.b16 %v2072
  %v2441 = vunpack.c.h.b16 %v2072
  %v2442 = vunpack.c.l.b16 %v2073
  %v2443 = vunpack.c.h.b16 %v2073
  %v2444 = vunpack.c.l.b16 %v2074
  %v2445 = vunpack.c.h.b16 %v2074
  %v2446 = vunpack.c.l.b16 %v2075
  %v2447 = vunpack.c.h.b16 %v2075
  %v2448 = vunpack.c.l.b16 %v2076
  %v2449 = vunpack.c.h.b16 %v2076
  %v2450 = vunpack.c.l.b16 %v2077
  %v2451 = vunpack.c.h.b16 %v2077
  %v2452 = vunpack.c.l.b16 %v2078
  %v2453 = vunpack.c.h.b16 %v2078
  %v2454 = vunpack.c.l.b16 %v2079
  %v2455 = vunpack.c.h.b16 %v2079
  %v2456 = vunpack.c.l.b16 %v2080
  %v2457 = vunpack.c.h.b16 %v2080
  %v2458 = vunpack.c.l.b16 %v2081
  %v2459 = vunpack.c.h.b16 %v2081
  %v2460 = vunpack.c.l.b16 %v2082
  %v2461 = vunpack.c.h.b16 %v2082
  %v2462 = vunpack.c.l.b16 %v2083
  %v2463 = vunpack.c.h.b16 %v2083
  %v2464 = vunpack.c.l.b16 %v2084
  %v2465 = vunpack.c.h.b16 %v2084
  %v2466 = vunpack.c.l.b16 %v2085
  %v2467 = vunpack.c.h.b16 %v2085
  %v2468 = vunpack.c.l.b16 %v2086
  %v2469 = vunpack.c.h.b16 %v2086
  %v2470 = vunpack.c.l.b16 %v2087
  %v2471 = vunpack.c.h.b16 %v2087
  %v2472 = vpack.c.b16 %v2220, %v2216
  %v2473 = vpack.c.b16 %v2221, %v2217
  %v2474 = vpack.c.b16 %v2222, %v2218
  %v2475 = vpack.c.b16 %v2223, %v2219
  %v2476 = vpack.c.b16 %v2228, %v2224
  %v2477 = vpack.c.b16 %v2229, %v2225
  %v2478 = vpack.c.b16 %v2230, %v2226
  %v2479 = vpack.c.b16 %v2231, %v2227
  %v2480 = vpack.c.b16 %v2236, %v2232
  %v2481 = vpack.c.b16 %v2237, %v2233
  %v2482 = vpack.c.b16 %v2238, %v2234
  %v2483 = vpack.c.b16 %v2239, %v2235
  %v2484 = vpack.c.b16 %v2244, %v2240
  %v2485 = vpack.c.b16 %v2245, %v2241
  %v2486 = vpack.c.b16 %v2246, %v2242
  %v2487 = vpack.c.b16 %v2247, %v2243
  %v2488 = vpack.c.b16 %v2252, %v2248
  %v2489 = vpack.c.b16 %v2253, %v2249
  %v2490 = vpack.c.b16 %v2254, %v2250
  %v2491 = vpack.c.b16 %v2255, %v2251
  %v2492 = vpack.c.b16 %v2260, %v2256
  %v2493 = vpack.c.b16 %v2261, %v2257
  %v2494 = vpack.c.b16 %v2262, %v2258
  %v2495 = vpack.c.b16 %v2263, %v2259
  %v2496 = vpack.c.b16 %v2268, %v2264
  %v2497 = vpack.c.b16 %v2269, %v2265
  %v2498 = vpack.c.b16 %v2270, %v2266
  %v2499 = vpack.c.b16 %v2271, %v2267
  %v2500 = vpack.c.b16 %v2276, %v2272
  %v2501 = vpack.c.b16 %v2277, %v2273
  %v2502 = vpack.c.b16 %v2278, %v2274
  %v2503 = vpack.c.b16 %v2279, %v2275
  %v2504 = vpack.c.b16 %v2284, %v2280
  %v2505 = vpack.c.b16 %v2285, %v2281
  %v2506 = vpack.c.b16 %v2286, %v2282
  %v2507 = vpack.c.b16 %v2287, %v2283
  %v2508 = vpack.c.b16 %v2292, %v2288
  %v2509 = vpack.c.b16 %v2293, %v2289
  %v2510 = vpack.c.b16 %v2294, %v2290
  %v2511 = vpack.c.b16 %v2295, %v2291
  %v2512 = vpack.c.b16 %v2300, %v2296
  %v2513 = vpack.c.b16 %v2301, %v2297
  %v2514 = vpack.c.b16 %v2302, %v2298
  %v2515 = vpack.c.b16 %v2303, %v2299
  %v2516 = vpack.c.b16 %v2308, %v2304
  %v2517 = vpack.c.b16 %v2309, %v2305
  %v2518 = vpack.c.b16 %v2310, %v2306
  %v2519 = vpack.c.b16 %v2311, %v2307
  %v2520 = vpack.c.b16 %v2316, %v2312
  %v2521 = vpack.c.b16 %v2317, %v2313
  %v2522 = vpack.c.b16 %v2318, %v2314
  %v2523 = vpack.c.b16 %v2319, %v2315
  %v2524 = vpack.c.b16 %v2324, %v2320
  %v2525 = vpack.c.b16 %v2325, %v2321
  %v2526 = vpack.c.b16 %v2326, %v2322
  %v2527 = vpack.c.b16 %v2327, %v2323
  %v2528 = vpack.c.b16 %v2332, %v2328
  %v2529 = vpack.c.b16 %v2333, %v2329
  %v2530 = vpack.c.b16 %v2334, %v2330
  %v2531 = vpack.c.b16 %v2335, %v2331
  %v2532 = vpack.c.b16 %v2340, %v2336
  %v2533 = vpack.c.b16 %v2341, %v2337
  %v2534 = vpack.c.b16 %v2342, %v2338
  %v2535 = vpack.c.b16 %v2343, %v2339
  %v2536 = vpack.c.b16 %v2348, %v2344
  %v2537 = vpack.c.b16 %v2349, %v2345
  %v2538 = vpack.c.b16 %v2350, %v2346
  %v2539 = vpack.c.b16 %v2351, %v2347
  %v2540 = vpack.c.b16 %v2356, %v2352
  %v2541 = vpack.c.b16 %v2357, %v2353
  %v2542 = vpack.c.b16 %v2358, %v2354
  %v2543 = vpack.c.b16 %v2359, %v2355
  %v2544 = vpack.c.b16 %v2364, %v2360
  %v2545 = vpack.c.b16 %v2365, %v2361
  %v2546 = vpack.c.b16 %v2366, %v2362
  %v2547 = vpack.c.b16 %v2367, %v2363
  %v2548 = vpack.c.b16 %v2372, %v2368
  %v2549 = vpack.c.b16 %v2373, %v2369
  %v2550 = vpack.c.b16 %v2374, %v2370
  %v2551 = vpack.c.b16 %v2375, %v2371
  %v2552 = vpack.c.b16 %v2380, %v2376
  %v2553 = vpack.c.b16 %v2381, %v2377
  %v2554 = vpack.c.b16 %v2382, %v2378
  %v2555 = vpack.c.b16 %v2383, %v2379
  %v2556 = vpack.c.b16 %v2388, %v2384
  %v2557 = vpack.c.b16 %v2389, %v2385
  %v2558 = vpack.c.b16 %v2390, %v2386
  %v2559 = vpack.c.b16 %v2391, %v2387
  %v2560 = vpack.c.b16 %v2396, %v2392
  %v2561 = vpack.c.b16 %v2397, %v2393
  %v2562 = vpack.c.b16 %v2398, %v2394
  %v2563 = vpack.c.b16 %v2399, %v2395
  %v2564 = vpack.c.b16 %v2404, %v2400
  %v2565 = vpack.c.b16 %v2405, %v2401
  %v2566 = vpack.c.b16 %v2406, %v2402
  %v2567 = vpack.c.b16 %v2407, %v2403
  %v2568 = vpack.c.b16 %v2412, %v2408
  %v2569 = vpack.c.b16 %v2413, %v2409
  %v2570 = vpack.c.b16 %v2414, %v2410
  %v2571 = vpack.c.b16 %v2415, %v2411
  %v2572 = vpack.c.b16 %v2420, %v2416
  %v2573 = vpack.c.b16 %v2421, %v2417
  %v2574 = vpack.c.b16 %v2422, %v2418
  %v2575 = vpack.c.b16 %v2423, %v2419
  %v2576 = vpack.c.b16 %v2428, %v2424
  %v2577 = vpack.c.b16 %v2429, %v2425
  %v2578 = vpack.c.b16 %v2430, %v2426
  %v2579 = vpack.c.b16 %v2431, %v2427
  %v2580 = vpack.c.b16 %v2436, %v2432
  %v2581 = vpack.c.b16 %v2437, %v2433
  %v2582 = vpack.c.b16 %v2438, %v2434
  %v2583 = vpack.c.b16 %v2439, %v2435
  %v2584 = vpack.c.b16 %v2444, %v2440
  %v2585 = vpack.c.b16 %v2445, %v2441
  %v2586 = vpack.c.b16 %v2446, %v2442
  %v2587 = vpack.c.b16 %v2447, %v2443
  %v2588 = vpack.c.b16 %v2452, %v2448
  %v2589 = vpack.c.b16 %v2453, %v2449
  %v2590 = vpack.c.b16 %v2454, %v2450
  %v2591 = vpack.c.b16 %v2455, %v2451
  %v2592 = vpack.c.b16 %v2460, %v2456
  %v2593 = vpack.c.b16 %v2461, %v2457
  %v2594 = vpack.c.b16 %v2462, %v2458
  %v2595 = vpack.c.b16 %v2463, %v2459
  %v2596 = vpack.c.b16 %v2468, %v2464
  %v2597 = vpack.c.b16 %v2469, %v2465
  %v2598 = vpack.c.b16 %v2470, %v2466
  %v2599 = vpack.c.b16 %v2471, %v2467
  %2728 = vmatpush.bf16.msra.mxu0 %v2500
  %2729 = vmatpush.bf16.msra.mxu0 %v2496
  %2730 = vmatpush.bf16.msra.mxu0 %v2492
  %2731 = vmatpush.bf16.msra.mxu0 %v2488
  %2732 = vmatpush.bf16.msra.mxu0 %v2484
  %2733 = vmatpush.bf16.msra.mxu0 %v2480
  %2734 = vmatpush.bf16.msra.mxu0 %v2476
  %2735 = vmatpush.bf16.msra.mxu0 %v2472
  %2736 = vmatmul.bf16.gmra.mxu0 %v1952
  %v2737 = vpop.f32.mrf.mxu0
  %v2738 = vadd.f32 0.0, %v2737
  %v2739 = vpop.f32.mrf.mxu0
  %v2740 = vadd.f32 0.0, %v2739
  %2741 = vmatmul.bf16.gmra.mxu0 %v1956
  %v2742 = vpop.f32.mrf.mxu0
  %v2743 = vadd.f32 0.0, %v2742
  %v2744 = vpop.f32.mrf.mxu0
  %v2745 = vadd.f32 0.0, %v2744
  %2746 = vdwg.mxu0
  %2747 = vmatpush.bf16.msra.mxu0 %v2532
  %2748 = vmatpush.bf16.msra.mxu0 %v2528
  %2749 = vmatpush.bf16.msra.mxu0 %v2524
  %2750 = vmatpush.bf16.msra.mxu0 %v2520
  %2751 = vmatpush.bf16.msra.mxu0 %v2516
  %2752 = vmatpush.bf16.msra.mxu0 %v2512
  %2753 = vmatpush.bf16.msra.mxu0 %v2508
  %2754 = vmatpush.bf16.msra.mxu0 %v2504
  %2755 = vmatmul.bf16.gmra.mxu0 %v1953
  %v2756 = vpop.f32.mrf.mxu0
  %v2757 = vadd.f32 %v2738, %v2756
  %v2758 = vpop.f32.mrf.mxu0
  %v2759 = vadd.f32 %v2740, %v2758
  %2760 = vmatmul.bf16.gmra.mxu0 %v1957
  %v2761 = vpop.f32.mrf.mxu0
  %v2762 = vadd.f32 %v2743, %v2761
  %v2763 = vpop.f32.mrf.mxu0
  %v2764 = vadd.f32 %v2745, %v2763
  %2765 = vdwg.mxu0
  %2766 = vmatpush.bf16.msra.mxu0 %v2564
  %2767 = vmatpush.bf16.msra.mxu0 %v2560
  %2768 = vmatpush.bf16.msra.mxu0 %v2556
  %2769 = vmatpush.bf16.msra.mxu0 %v2552
  %2770 = vmatpush.bf16.msra.mxu0 %v2548
  %2771 = vmatpush.bf16.msra.mxu0 %v2544
  %2772 = vmatpush.bf16.msra.mxu0 %v2540
  %2773 = vmatpush.bf16.msra.mxu0 %v2536
  %2774 = vmatmul.bf16.gmra.mxu0 %v1954
  %v2775 = vpop.f32.mrf.mxu0
  %v2776 = vadd.f32 %v2757, %v2775
  %v2777 = vpop.f32.mrf.mxu0
  %v2778 = vadd.f32 %v2759, %v2777
  %2779 = vmatmul.bf16.gmra.mxu0 %v1958
  %v2780 = vpop.f32.mrf.mxu0
  %v2781 = vadd.f32 %v2762, %v2780
  %v2782 = vpop.f32.mrf.mxu0
  %v2783 = vadd.f32 %v2764, %v2782
  %2784 = vdwg.mxu0
  %2785 = vmatpush.bf16.msra.mxu0 %v2596
  %2786 = vmatpush.bf16.msra.mxu0 %v2592
  %2787 = vmatpush.bf16.msra.mxu0 %v2588
  %2788 = vmatpush.bf16.msra.mxu0 %v2584
  %2789 = vmatpush.bf16.msra.mxu0 %v2580
  %2790 = vmatpush.bf16.msra.mxu0 %v2576
  %2791 = vmatpush.bf16.msra.mxu0 %v2572
  %2792 = vmatpush.bf16.msra.mxu0 %v2568
  %2793 = vmatmul.bf16.gmra.mxu0 %v1955
  %v2794 = vpop.f32.mrf.mxu0
  %v2795 = vadd.f32 %v2776, %v2794
  %v2796 = vpop.f32.mrf.mxu0
  %v2797 = vadd.f32 %v2778, %v2796
  %2798 = vmatmul.bf16.gmra.mxu0 %v1959
  %v2799 = vpop.f32.mrf.mxu0
  %v2800 = vadd.f32 %v2781, %v2799
  %v2801 = vpop.f32.mrf.mxu0
  %v2802 = vadd.f32 %v2783, %v2801
  %2803 = vdwg.mxu0
  %2804 = vmatpush.bf16.msra.mxu0 %v2501
  %2805 = vmatpush.bf16.msra.mxu0 %v2497
  %2806 = vmatpush.bf16.msra.mxu0 %v2493
  %2807 = vmatpush.bf16.msra.mxu0 %v2489
  %2808 = vmatpush.bf16.msra.mxu0 %v2485
  %2809 = vmatpush.bf16.msra.mxu0 %v2481
  %2810 = vmatpush.bf16.msra.mxu0 %v2477
  %2811 = vmatpush.bf16.msra.mxu0 %v2473
  %2812 = vmatmul.bf16.gmra.mxu0 %v1952
  %v2813 = vpop.f32.mrf.mxu0
  %v2814 = vadd.f32 0.0, %v2813
  %v2815 = vpop.f32.mrf.mxu0
  %v2816 = vadd.f32 0.0, %v2815
  %2817 = vmatmul.bf16.gmra.mxu0 %v1956
  %v2818 = vpop.f32.mrf.mxu0
  %v2819 = vadd.f32 0.0, %v2818
  %v2820 = vpop.f32.mrf.mxu0
  %v2821 = vadd.f32 0.0, %v2820
  %2822 = vdwg.mxu0
  %2823 = vmatpush.bf16.msra.mxu0 %v2533
  %2824 = vmatpush.bf16.msra.mxu0 %v2529
  %2825 = vmatpush.bf16.msra.mxu0 %v2525
  %2826 = vmatpush.bf16.msra.mxu0 %v2521
  %2827 = vmatpush.bf16.msra.mxu0 %v2517
  %2828 = vmatpush.bf16.msra.mxu0 %v2513
  %2829 = vmatpush.bf16.msra.mxu0 %v2509
  %2830 = vmatpush.bf16.msra.mxu0 %v2505
  %2831 = vmatmul.bf16.gmra.mxu0 %v1953
  %v2832 = vpop.f32.mrf.mxu0
  %v2833 = vadd.f32 %v2814, %v2832
  %v2834 = vpop.f32.mrf.mxu0
  %v2835 = vadd.f32 %v2816, %v2834
  %2836 = vmatmul.bf16.gmra.mxu0 %v1957
  %v2837 = vpop.f32.mrf.mxu0
  %v2838 = vadd.f32 %v2819, %v2837
  %v2839 = vpop.f32.mrf.mxu0
  %v2840 = vadd.f32 %v2821, %v2839
  %2841 = vdwg.mxu0
  %2842 = vmatpush.bf16.msra.mxu0 %v2565
  %2843 = vmatpush.bf16.msra.mxu0 %v2561
  %2844 = vmatpush.bf16.msra.mxu0 %v2557
  %2845 = vmatpush.bf16.msra.mxu0 %v2553
  %2846 = vmatpush.bf16.msra.mxu0 %v2549
  %2847 = vmatpush.bf16.msra.mxu0 %v2545
  %2848 = vmatpush.bf16.msra.mxu0 %v2541
  %2849 = vmatpush.bf16.msra.mxu0 %v2537
  %2850 = vmatmul.bf16.gmra.mxu0 %v1954
  %v2851 = vpop.f32.mrf.mxu0
  %v2852 = vadd.f32 %v2833, %v2851
  %v2853 = vpop.f32.mrf.mxu0
  %v2854 = vadd.f32 %v2835, %v2853
  %2855 = vmatmul.bf16.gmra.mxu0 %v1958
  %v2856 = vpop.f32.mrf.mxu0
  %v2857 = vadd.f32 %v2838, %v2856
  %v2858 = vpop.f32.mrf.mxu0
  %v2859 = vadd.f32 %v2840, %v2858
  %2860 = vdwg.mxu0
  %2861 = vmatpush.bf16.msra.mxu0 %v2597
  %2862 = vmatpush.bf16.msra.mxu0 %v2593
  %2863 = vmatpush.bf16.msra.mxu0 %v2589
  %2864 = vmatpush.bf16.msra.mxu0 %v2585
  %2865 = vmatpush.bf16.msra.mxu0 %v2581
  %2866 = vmatpush.bf16.msra.mxu0 %v2577
  %2867 = vmatpush.bf16.msra.mxu0 %v2573
  %2868 = vmatpush.bf16.msra.mxu0 %v2569
  %2869 = vmatmul.bf16.gmra.mxu0 %v1955
  %v2870 = vpop.f32.mrf.mxu0
  %v2871 = vadd.f32 %v2852, %v2870
  %v2872 = vpop.f32.mrf.mxu0
  %v2873 = vadd.f32 %v2854, %v2872
  %2874 = vmatmul.bf16.gmra.mxu0 %v1959
  %v2875 = vpop.f32.mrf.mxu0
  %v2876 = vadd.f32 %v2857, %v2875
  %v2877 = vpop.f32.mrf.mxu0
  %v2878 = vadd.f32 %v2859, %v2877
  %2879 = vdwg.mxu0
  %2880 = vmatpush.bf16.msra.mxu0 %v2502
  %2881 = vmatpush.bf16.msra.mxu0 %v2498
  %2882 = vmatpush.bf16.msra.mxu0 %v2494
  %2883 = vmatpush.bf16.msra.mxu0 %v2490
  %2884 = vmatpush.bf16.msra.mxu0 %v2486
  %2885 = vmatpush.bf16.msra.mxu0 %v2482
  %2886 = vmatpush.bf16.msra.mxu0 %v2478
  %2887 = vmatpush.bf16.msra.mxu0 %v2474
  %2888 = vmatmul.bf16.gmra.mxu0 %v1952
  %v2889 = vpop.f32.mrf.mxu0
  %v2890 = vadd.f32 0.0, %v2889
  %v2891 = vpop.f32.mrf.mxu0
  %v2892 = vadd.f32 0.0, %v2891
  %2893 = vmatmul.bf16.gmra.mxu0 %v1956
  %v2894 = vpop.f32.mrf.mxu0
  %v2895 = vadd.f32 0.0, %v2894
  %v2896 = vpop.f32.mrf.mxu0
  %v2897 = vadd.f32 0.0, %v2896
  %2898 = vdwg.mxu0
  %2899 = vmatpush.bf16.msra.mxu0 %v2534
  %2900 = vmatpush.bf16.msra.mxu0 %v2530
  %2901 = vmatpush.bf16.msra.mxu0 %v2526
  %2902 = vmatpush.bf16.msra.mxu0 %v2522
  %2903 = vmatpush.bf16.msra.mxu0 %v2518
  %2904 = vmatpush.bf16.msra.mxu0 %v2514
  %2905 = vmatpush.bf16.msra.mxu0 %v2510
  %2906 = vmatpush.bf16.msra.mxu0 %v2506
  %2907 = vmatmul.bf16.gmra.mxu0 %v1953
  %v2908 = vpop.f32.mrf.mxu0
  %v2909 = vadd.f32 %v2890, %v2908
  %v2910 = vpop.f32.mrf.mxu0
  %v2911 = vadd.f32 %v2892, %v2910
  %2912 = vmatmul.bf16.gmra.mxu0 %v1957
  %v2913 = vpop.f32.mrf.mxu0
  %v2914 = vadd.f32 %v2895, %v2913
  %v2915 = vpop.f32.mrf.mxu0
  %v2916 = vadd.f32 %v2897, %v2915
  %2917 = vdwg.mxu0
  %2918 = vmatpush.bf16.msra.mxu0 %v2566
  %2919 = vmatpush.bf16.msra.mxu0 %v2562
  %2920 = vmatpush.bf16.msra.mxu0 %v2558
  %2921 = vmatpush.bf16.msra.mxu0 %v2554
  %2922 = vmatpush.bf16.msra.mxu0 %v2550
  %2923 = vmatpush.bf16.msra.mxu0 %v2546
  %2924 = vmatpush.bf16.msra.mxu0 %v2542
  %2925 = vmatpush.bf16.msra.mxu0 %v2538
  %2926 = vmatmul.bf16.gmra.mxu0 %v1954
  %v2927 = vpop.f32.mrf.mxu0
  %v2928 = vadd.f32 %v2909, %v2927
  %v2929 = vpop.f32.mrf.mxu0
  %v2930 = vadd.f32 %v2911, %v2929
  %2931 = vmatmul.bf16.gmra.mxu0 %v1958
  %v2932 = vpop.f32.mrf.mxu0
  %v2933 = vadd.f32 %v2914, %v2932
  %v2934 = vpop.f32.mrf.mxu0
  %v2935 = vadd.f32 %v2916, %v2934
  %2936 = vdwg.mxu0
  %2937 = vmatpush.bf16.msra.mxu0 %v2598
  %2938 = vmatpush.bf16.msra.mxu0 %v2594
  %2939 = vmatpush.bf16.msra.mxu0 %v2590
  %2940 = vmatpush.bf16.msra.mxu0 %v2586
  %2941 = vmatpush.bf16.msra.mxu0 %v2582
  %2942 = vmatpush.bf16.msra.mxu0 %v2578
  %2943 = vmatpush.bf16.msra.mxu0 %v2574
  %2944 = vmatpush.bf16.msra.mxu0 %v2570
  %2945 = vmatmul.bf16.gmra.mxu0 %v1955
  %v2946 = vpop.f32.mrf.mxu0
  %v2947 = vadd.f32 %v2928, %v2946
  %v2948 = vpop.f32.mrf.mxu0
  %v2949 = vadd.f32 %v2930, %v2948
  %2950 = vmatmul.bf16.gmra.mxu0 %v1959
  %v2951 = vpop.f32.mrf.mxu0
  %v2952 = vadd.f32 %v2933, %v2951
  %v2953 = vpop.f32.mrf.mxu0
  %v2954 = vadd.f32 %v2935, %v2953
  %2955 = vdwg.mxu0
  %2956 = vmatpush.bf16.msra.mxu0 %v2503
  %2957 = vmatpush.bf16.msra.mxu0 %v2499
  %2958 = vmatpush.bf16.msra.mxu0 %v2495
  %2959 = vmatpush.bf16.msra.mxu0 %v2491
  %2960 = vmatpush.bf16.msra.mxu0 %v2487
  %2961 = vmatpush.bf16.msra.mxu0 %v2483
  %2962 = vmatpush.bf16.msra.mxu0 %v2479
  %2963 = vmatpush.bf16.msra.mxu0 %v2475
  %2964 = vmatmul.bf16.gmra.mxu0 %v1952
  %v2965 = vpop.f32.mrf.mxu0
  %v2966 = vadd.f32 0.0, %v2965
  %v2967 = vpop.f32.mrf.mxu0
  %v2968 = vadd.f32 0.0, %v2967
  %2969 = vmatmul.bf16.gmra.mxu0 %v1956
  %v2970 = vpop.f32.mrf.mxu0
  %v2971 = vadd.f32 0.0, %v2970
  %v2972 = vpop.f32.mrf.mxu0
  %v2973 = vadd.f32 0.0, %v2972
  %2974 = vdwg.mxu0
  %2975 = vmatpush.bf16.msra.mxu0 %v2535
  %2976 = vmatpush.bf16.msra.mxu0 %v2531
  %2977 = vmatpush.bf16.msra.mxu0 %v2527
  %2978 = vmatpush.bf16.msra.mxu0 %v2523
  %2979 = vmatpush.bf16.msra.mxu0 %v2519
  %2980 = vmatpush.bf16.msra.mxu0 %v2515
  %2981 = vmatpush.bf16.msra.mxu0 %v2511
  %2982 = vmatpush.bf16.msra.mxu0 %v2507
  %2983 = vmatmul.bf16.gmra.mxu0 %v1953
  %v2984 = vpop.f32.mrf.mxu0
  %v2985 = vadd.f32 %v2966, %v2984
  %v2986 = vpop.f32.mrf.mxu0
  %v2987 = vadd.f32 %v2968, %v2986
  %2988 = vmatmul.bf16.gmra.mxu0 %v1957
  %v2989 = vpop.f32.mrf.mxu0
  %v2990 = vadd.f32 %v2971, %v2989
  %v2991 = vpop.f32.mrf.mxu0
  %v2992 = vadd.f32 %v2973, %v2991
  %2993 = vdwg.mxu0
  %2994 = vmatpush.bf16.msra.mxu0 %v2567
  %2995 = vmatpush.bf16.msra.mxu0 %v2563
  %2996 = vmatpush.bf16.msra.mxu0 %v2559
  %2997 = vmatpush.bf16.msra.mxu0 %v2555
  %2998 = vmatpush.bf16.msra.mxu0 %v2551
  %2999 = vmatpush.bf16.msra.mxu0 %v2547
  %3000 = vmatpush.bf16.msra.mxu0 %v2543
  %3001 = vmatpush.bf16.msra.mxu0 %v2539
  %3002 = vmatmul.bf16.gmra.mxu0 %v1954
  %v3003 = vpop.f32.mrf.mxu0
  %v3004 = vadd.f32 %v2985, %v3003
  %v3005 = vpop.f32.mrf.mxu0
  %v3006 = vadd.f32 %v2987, %v3005
  %3007 = vmatmul.bf16.gmra.mxu0 %v1958
  %v3008 = vpop.f32.mrf.mxu0
  %v3009 = vadd.f32 %v2990, %v3008
  %v3010 = vpop.f32.mrf.mxu0
  %v3011 = vadd.f32 %v2992, %v3010
  %3012 = vdwg.mxu0
  %3013 = vmatpush.bf16.msra.mxu0 %v2599
  %3014 = vmatpush.bf16.msra.mxu0 %v2595
  %3015 = vmatpush.bf16.msra.mxu0 %v2591
  %3016 = vmatpush.bf16.msra.mxu0 %v2587
  %3017 = vmatpush.bf16.msra.mxu0 %v2583
  %3018 = vmatpush.bf16.msra.mxu0 %v2579
  %3019 = vmatpush.bf16.msra.mxu0 %v2575
  %3020 = vmatpush.bf16.msra.mxu0 %v2571
  %3021 = vmatmul.bf16.gmra.mxu0 %v1955
  %v3022 = vpop.f32.mrf.mxu0
  %v3023 = vadd.f32 %v3004, %v3022
  %v3024 = vpop.f32.mrf.mxu0
  %v3025 = vadd.f32 %v3006, %v3024
  %3026 = vmatmul.bf16.gmra.mxu0 %v1959
  %v3027 = vpop.f32.mrf.mxu0
  %v3028 = vadd.f32 %v3009, %v3027
  %v3029 = vpop.f32.mrf.mxu0
  %v3030 = vadd.f32 %v3011, %v3029
  %3031 = vdwg.mxu0
  %v3032 = vadd.f32 %v1863, %v2795
  %v3033 = vadd.f32 %v1864, %v2871
  %v3034 = vadd.f32 %v1865, %v2947
  %v3035 = vadd.f32 %v1866, %v3023
  %v3036 = vadd.f32 %v1867, %v2797
  %v3037 = vadd.f32 %v1868, %v2873
  %v3038 = vadd.f32 %v1869, %v2949
  %v3039 = vadd.f32 %v1870, %v3025
  %v3040 = vadd.f32 %v1871, %v2800
  %v3041 = vadd.f32 %v1872, %v2876
  %v3042 = vadd.f32 %v1873, %v2952
  %v3043 = vadd.f32 %v1874, %v3028
  %v3044 = vadd.f32 %v1875, %v2802
  %v3045 = vadd.f32 %v1876, %v2878
  %v3046 = vadd.f32 %v1877, %v2954
  %v3047 = vadd.f32 %v1878, %v3030
  %vm3048 = vcmask 1045504
  %v3049 = vrot.slane %v735, 2
  %v3050 = vrot.slane %v716, 2
  %v3051 = vsel %vm3048, %v3049, %v3050
  %v3052 = vrot.slane %v736, 2
  %v3053 = vrot.slane %v718, 2
  %v3054 = vsel %vm3048, %v3052, %v3053
  %v3055 = vrot.slane %v737, 2
  %v3056 = vrot.slane %v720, 2
  %v3057 = vsel %vm3048, %v3055, %v3056
  %v3058 = vrot.slane %v738, 2
  %v3059 = vrot.slane %v722, 2
  %v3060 = vsel %vm3048, %v3058, %v3059
  %v3061 = vrot.slane %v739, 2
  %v3062 = vsel %vm3048, %v3050, %v3061
  %v3063 = vrot.slane %v740, 2
  %v3064 = vsel %vm3048, %v3053, %v3063
  %v3065 = vrot.slane %v741, 2
  %v3066 = vsel %vm3048, %v3056, %v3065
  %v3067 = vrot.slane %v742, 2
  %v3068 = vsel %vm3048, %v3059, %v3067
  %v3077 = vrot.slane %v775, 2
  %v3078 = vrot.slane %v756, 2
  %v3079 = vsel %vm3048, %v3077, %v3078
  %v3080 = vrot.slane %v776, 2
  %v3081 = vrot.slane %v758, 2
  %v3082 = vsel %vm3048, %v3080, %v3081
  %v3083 = vrot.slane %v777, 2
  %v3084 = vrot.slane %v760, 2
  %v3085 = vsel %vm3048, %v3083, %v3084
  %v3086 = vrot.slane %v778, 2
  %v3087 = vrot.slane %v762, 2
  %v3088 = vsel %vm3048, %v3086, %v3087
  %v3089 = vrot.slane %v779, 2
  %v3090 = vsel %vm3048, %v3078, %v3089
  %v3091 = vrot.slane %v780, 2
  %v3092 = vsel %vm3048, %v3081, %v3091
  %v3093 = vrot.slane %v781, 2
  %v3094 = vsel %vm3048, %v3084, %v3093
  %v3095 = vrot.slane %v782, 2
  %v3096 = vsel %vm3048, %v3087, %v3095
  %v3105 = vpack.c.bf16 %v3062, %v3051
  %v3106 = vpack.c.bf16 %v3064, %v3054
  %v3107 = vpack.c.bf16 %v3066, %v3057
  %v3108 = vpack.c.bf16 %v3068, %v3060
  %v3109 = vpack.c.bf16 %v3090, %v3079
  %v3110 = vpack.c.bf16 %v3092, %v3082
  %v3111 = vpack.c.bf16 %v3094, %v3085
  %v3112 = vpack.c.bf16 %v3096, %v3088
  %v3113 = vld [vmem:[%s2 + $0x800] sm:$0xff]
  %v3114 = vld [vmem:[%s2 + $0x808] sm:$0xff]
  %v3115 = vld [vmem:[%s2 + $0x810] sm:$0xff]
  %v3116 = vld [vmem:[%s2 + $0x818] sm:$0xff]
  %v3117 = vld [vmem:[%s2 + $0x820] sm:$0xff]
  %v3118 = vld [vmem:[%s2 + $0x828] sm:$0xff]
  %v3119 = vld [vmem:[%s2 + $0x830] sm:$0xff]
  %v3120 = vld [vmem:[%s2 + $0x838] sm:$0xff]
  %v3121 = vld [vmem:[%s2 + $0x840] sm:$0xff]
  %v3122 = vld [vmem:[%s2 + $0x848] sm:$0xff]
  %v3123 = vld [vmem:[%s2 + $0x850] sm:$0xff]
  %v3124 = vld [vmem:[%s2 + $0x858] sm:$0xff]
  %v3125 = vld [vmem:[%s2 + $0x860] sm:$0xff]
  %v3126 = vld [vmem:[%s2 + $0x868] sm:$0xff]
  %v3127 = vld [vmem:[%s2 + $0x870] sm:$0xff]
  %v3128 = vld [vmem:[%s2 + $0x878] sm:$0xff]
  %v3129 = vld [vmem:[%s2 + $0x880] sm:$0xff]
  %v3130 = vld [vmem:[%s2 + $0x888] sm:$0xff]
  %v3131 = vld [vmem:[%s2 + $0x890] sm:$0xff]
  %v3132 = vld [vmem:[%s2 + $0x898] sm:$0xff]
  %v3133 = vld [vmem:[%s2 + $0x8a0] sm:$0xff]
  %v3134 = vld [vmem:[%s2 + $0x8a8] sm:$0xff]
  %v3135 = vld [vmem:[%s2 + $0x8b0] sm:$0xff]
  %v3136 = vld [vmem:[%s2 + $0x8b8] sm:$0xff]
  %v3137 = vld [vmem:[%s2 + $0x8c0] sm:$0xff]
  %v3138 = vld [vmem:[%s2 + $0x8c8] sm:$0xff]
  %v3139 = vld [vmem:[%s2 + $0x8d0] sm:$0xff]
  %v3140 = vld [vmem:[%s2 + $0x8d8] sm:$0xff]
  %v3141 = vld [vmem:[%s2 + $0x8e0] sm:$0xff]
  %v3142 = vld [vmem:[%s2 + $0x8e8] sm:$0xff]
  %v3143 = vld [vmem:[%s2 + $0x8f0] sm:$0xff]
  %v3144 = vld [vmem:[%s2 + $0x8f8] sm:$0xff]
  %v3145 = vld [vmem:[%s2 + $0x900] sm:$0xff]
  %v3146 = vld [vmem:[%s2 + $0x908] sm:$0xff]
  %v3147 = vld [vmem:[%s2 + $0x910] sm:$0xff]
  %v3148 = vld [vmem:[%s2 + $0x918] sm:$0xff]
  %v3149 = vld [vmem:[%s2 + $0x920] sm:$0xff]
  %v3150 = vld [vmem:[%s2 + $0x928] sm:$0xff]
  %v3151 = vld [vmem:[%s2 + $0x930] sm:$0xff]
  %v3152 = vld [vmem:[%s2 + $0x938] sm:$0xff]
  %v3153 = vld [vmem:[%s2 + $0x940] sm:$0xff]
  %v3154 = vld [vmem:[%s2 + $0x948] sm:$0xff]
  %v3155 = vld [vmem:[%s2 + $0x950] sm:$0xff]
  %v3156 = vld [vmem:[%s2 + $0x958] sm:$0xff]
  %v3157 = vld [vmem:[%s2 + $0x960] sm:$0xff]
  %v3158 = vld [vmem:[%s2 + $0x968] sm:$0xff]
  %v3159 = vld [vmem:[%s2 + $0x970] sm:$0xff]
  %v3160 = vld [vmem:[%s2 + $0x978] sm:$0xff]
  %v3161 = vld [vmem:[%s2 + $0x980] sm:$0xff]
  %v3162 = vld [vmem:[%s2 + $0x988] sm:$0xff]
  %v3163 = vld [vmem:[%s2 + $0x990] sm:$0xff]
  %v3164 = vld [vmem:[%s2 + $0x998] sm:$0xff]
  %v3165 = vld [vmem:[%s2 + $0x9a0] sm:$0xff]
  %v3166 = vld [vmem:[%s2 + $0x9a8] sm:$0xff]
  %v3167 = vld [vmem:[%s2 + $0x9b0] sm:$0xff]
  %v3168 = vld [vmem:[%s2 + $0x9b8] sm:$0xff]
  %v3169 = vld [vmem:[%s2 + $0x9c0] sm:$0xff]
  %v3170 = vld [vmem:[%s2 + $0x9c8] sm:$0xff]
  %v3171 = vld [vmem:[%s2 + $0x9d0] sm:$0xff]
  %v3172 = vld [vmem:[%s2 + $0x9d8] sm:$0xff]
  %v3173 = vld [vmem:[%s2 + $0x9e0] sm:$0xff]
  %v3174 = vld [vmem:[%s2 + $0x9e8] sm:$0xff]
  %v3175 = vld [vmem:[%s2 + $0x9f0] sm:$0xff]
  %v3176 = vld [vmem:[%s2 + $0x9f8] sm:$0xff]
  %v3177 = vld [vmem:[%s2 + $0xa00] sm:$0xff]
  %v3178 = vld [vmem:[%s2 + $0xa08] sm:$0xff]
  %v3179 = vld [vmem:[%s2 + $0xa10] sm:$0xff]
  %v3180 = vld [vmem:[%s2 + $0xa18] sm:$0xff]
  %v3181 = vld [vmem:[%s2 + $0xa20] sm:$0xff]
  %v3182 = vld [vmem:[%s2 + $0xa28] sm:$0xff]
  %v3183 = vld [vmem:[%s2 + $0xa30] sm:$0xff]
  %v3184 = vld [vmem:[%s2 + $0xa38] sm:$0xff]
  %v3185 = vld [vmem:[%s2 + $0xa40] sm:$0xff]
  %v3186 = vld [vmem:[%s2 + $0xa48] sm:$0xff]
  %v3187 = vld [vmem:[%s2 + $0xa50] sm:$0xff]
  %v3188 = vld [vmem:[%s2 + $0xa58] sm:$0xff]
  %v3189 = vld [vmem:[%s2 + $0xa60] sm:$0xff]
  %v3190 = vld [vmem:[%s2 + $0xa68] sm:$0xff]
  %v3191 = vld [vmem:[%s2 + $0xa70] sm:$0xff]
  %v3192 = vld [vmem:[%s2 + $0xa78] sm:$0xff]
  %v3193 = vld [vmem:[%s2 + $0xa80] sm:$0xff]
  %v3194 = vld [vmem:[%s2 + $0xa88] sm:$0xff]
  %v3195 = vld [vmem:[%s2 + $0xa90] sm:$0xff]
  %v3196 = vld [vmem:[%s2 + $0xa98] sm:$0xff]
  %v3197 = vld [vmem:[%s2 + $0xaa0] sm:$0xff]
  %v3198 = vld [vmem:[%s2 + $0xaa8] sm:$0xff]
  %v3199 = vld [vmem:[%s2 + $0xab0] sm:$0xff]
  %v3200 = vld [vmem:[%s2 + $0xab8] sm:$0xff]
  %v3201 = vld [vmem:[%s2 + $0xac0] sm:$0xff]
  %v3202 = vld [vmem:[%s2 + $0xac8] sm:$0xff]
  %v3203 = vld [vmem:[%s2 + $0xad0] sm:$0xff]
  %v3204 = vld [vmem:[%s2 + $0xad8] sm:$0xff]
  %v3205 = vld [vmem:[%s2 + $0xae0] sm:$0xff]
  %v3206 = vld [vmem:[%s2 + $0xae8] sm:$0xff]
  %v3207 = vld [vmem:[%s2 + $0xaf0] sm:$0xff]
  %v3208 = vld [vmem:[%s2 + $0xaf8] sm:$0xff]
  %v3209 = vld [vmem:[%s2 + $0xb00] sm:$0xff]
  %v3210 = vld [vmem:[%s2 + $0xb08] sm:$0xff]
  %v3211 = vld [vmem:[%s2 + $0xb10] sm:$0xff]
  %v3212 = vld [vmem:[%s2 + $0xb18] sm:$0xff]
  %v3213 = vld [vmem:[%s2 + $0xb20] sm:$0xff]
  %v3214 = vld [vmem:[%s2 + $0xb28] sm:$0xff]
  %v3215 = vld [vmem:[%s2 + $0xb30] sm:$0xff]
  %v3216 = vld [vmem:[%s2 + $0xb38] sm:$0xff]
  %v3217 = vld [vmem:[%s2 + $0xb40] sm:$0xff]
  %v3218 = vld [vmem:[%s2 + $0xb48] sm:$0xff]
  %v3219 = vld [vmem:[%s2 + $0xb50] sm:$0xff]
  %v3220 = vld [vmem:[%s2 + $0xb58] sm:$0xff]
  %v3221 = vld [vmem:[%s2 + $0xb60] sm:$0xff]
  %v3222 = vld [vmem:[%s2 + $0xb68] sm:$0xff]
  %v3223 = vld [vmem:[%s2 + $0xb70] sm:$0xff]
  %v3224 = vld [vmem:[%s2 + $0xb78] sm:$0xff]
  %v3225 = vld [vmem:[%s2 + $0xb80] sm:$0xff]
  %v3226 = vld [vmem:[%s2 + $0xb88] sm:$0xff]
  %v3227 = vld [vmem:[%s2 + $0xb90] sm:$0xff]
  %v3228 = vld [vmem:[%s2 + $0xb98] sm:$0xff]
  %v3229 = vld [vmem:[%s2 + $0xba0] sm:$0xff]
  %v3230 = vld [vmem:[%s2 + $0xba8] sm:$0xff]
  %v3231 = vld [vmem:[%s2 + $0xbb0] sm:$0xff]
  %v3232 = vld [vmem:[%s2 + $0xbb8] sm:$0xff]
  %v3233 = vld [vmem:[%s2 + $0xbc0] sm:$0xff]
  %v3234 = vld [vmem:[%s2 + $0xbc8] sm:$0xff]
  %v3235 = vld [vmem:[%s2 + $0xbd0] sm:$0xff]
  %v3236 = vld [vmem:[%s2 + $0xbd8] sm:$0xff]
  %v3237 = vld [vmem:[%s2 + $0xbe0] sm:$0xff]
  %v3238 = vld [vmem:[%s2 + $0xbe8] sm:$0xff]
  %v3239 = vld [vmem:[%s2 + $0xbf0] sm:$0xff]
  %v3240 = vld [vmem:[%s2 + $0xbf8] sm:$0xff]
  %v3369 = vunpack.c.l.b16 %v3113
  %v3370 = vunpack.c.h.b16 %v3113
  %v3371 = vunpack.c.l.b16 %v3114
  %v3372 = vunpack.c.h.b16 %v3114
  %v3373 = vunpack.c.l.b16 %v3115
  %v3374 = vunpack.c.h.b16 %v3115
  %v3375 = vunpack.c.l.b16 %v3116
  %v3376 = vunpack.c.h.b16 %v3116
  %v3377 = vunpack.c.l.b16 %v3117
  %v3378 = vunpack.c.h.b16 %v3117
  %v3379 = vunpack.c.l.b16 %v3118
  %v3380 = vunpack.c.h.b16 %v3118
  %v3381 = vunpack.c.l.b16 %v3119
  %v3382 = vunpack.c.h.b16 %v3119
  %v3383 = vunpack.c.l.b16 %v3120
  %v3384 = vunpack.c.h.b16 %v3120
  %v3385 = vunpack.c.l.b16 %v3121
  %v3386 = vunpack.c.h.b16 %v3121
  %v3387 = vunpack.c.l.b16 %v3122
  %v3388 = vunpack.c.h.b16 %v3122
  %v3389 = vunpack.c.l.b16 %v3123
  %v3390 = vunpack.c.h.b16 %v3123
  %v3391 = vunpack.c.l.b16 %v3124
  %v3392 = vunpack.c.h.b16 %v3124
  %v3393 = vunpack.c.l.b16 %v3125
  %v3394 = vunpack.c.h.b16 %v3125
  %v3395 = vunpack.c.l.b16 %v3126
  %v3396 = vunpack.c.h.b16 %v3126
  %v3397 = vunpack.c.l.b16 %v3127
  %v3398 = vunpack.c.h.b16 %v3127
  %v3399 = vunpack.c.l.b16 %v3128
  %v3400 = vunpack.c.h.b16 %v3128
  %v3401 = vunpack.c.l.b16 %v3129
  %v3402 = vunpack.c.h.b16 %v3129
  %v3403 = vunpack.c.l.b16 %v3130
  %v3404 = vunpack.c.h.b16 %v3130
  %v3405 = vunpack.c.l.b16 %v3131
  %v3406 = vunpack.c.h.b16 %v3131
  %v3407 = vunpack.c.l.b16 %v3132
  %v3408 = vunpack.c.h.b16 %v3132
  %v3409 = vunpack.c.l.b16 %v3133
  %v3410 = vunpack.c.h.b16 %v3133
  %v3411 = vunpack.c.l.b16 %v3134
  %v3412 = vunpack.c.h.b16 %v3134
  %v3413 = vunpack.c.l.b16 %v3135
  %v3414 = vunpack.c.h.b16 %v3135
  %v3415 = vunpack.c.l.b16 %v3136
  %v3416 = vunpack.c.h.b16 %v3136
  %v3417 = vunpack.c.l.b16 %v3137
  %v3418 = vunpack.c.h.b16 %v3137
  %v3419 = vunpack.c.l.b16 %v3138
  %v3420 = vunpack.c.h.b16 %v3138
  %v3421 = vunpack.c.l.b16 %v3139
  %v3422 = vunpack.c.h.b16 %v3139
  %v3423 = vunpack.c.l.b16 %v3140
  %v3424 = vunpack.c.h.b16 %v3140
  %v3425 = vunpack.c.l.b16 %v3141
  %v3426 = vunpack.c.h.b16 %v3141
  %v3427 = vunpack.c.l.b16 %v3142
  %v3428 = vunpack.c.h.b16 %v3142
  %v3429 = vunpack.c.l.b16 %v3143
  %v3430 = vunpack.c.h.b16 %v3143
  %v3431 = vunpack.c.l.b16 %v3144
  %v3432 = vunpack.c.h.b16 %v3144
  %v3433 = vunpack.c.l.b16 %v3145
  %v3434 = vunpack.c.h.b16 %v3145
  %v3435 = vunpack.c.l.b16 %v3146
  %v3436 = vunpack.c.h.b16 %v3146
  %v3437 = vunpack.c.l.b16 %v3147
  %v3438 = vunpack.c.h.b16 %v3147
  %v3439 = vunpack.c.l.b16 %v3148
  %v3440 = vunpack.c.h.b16 %v3148
  %v3441 = vunpack.c.l.b16 %v3149
  %v3442 = vunpack.c.h.b16 %v3149
  %v3443 = vunpack.c.l.b16 %v3150
  %v3444 = vunpack.c.h.b16 %v3150
  %v3445 = vunpack.c.l.b16 %v3151
  %v3446 = vunpack.c.h.b16 %v3151
  %v3447 = vunpack.c.l.b16 %v3152
  %v3448 = vunpack.c.h.b16 %v3152
  %v3449 = vunpack.c.l.b16 %v3153
  %v3450 = vunpack.c.h.b16 %v3153
  %v3451 = vunpack.c.l.b16 %v3154
  %v3452 = vunpack.c.h.b16 %v3154
  %v3453 = vunpack.c.l.b16 %v3155
  %v3454 = vunpack.c.h.b16 %v3155
  %v3455 = vunpack.c.l.b16 %v3156
  %v3456 = vunpack.c.h.b16 %v3156
  %v3457 = vunpack.c.l.b16 %v3157
  %v3458 = vunpack.c.h.b16 %v3157
  %v3459 = vunpack.c.l.b16 %v3158
  %v3460 = vunpack.c.h.b16 %v3158
  %v3461 = vunpack.c.l.b16 %v3159
  %v3462 = vunpack.c.h.b16 %v3159
  %v3463 = vunpack.c.l.b16 %v3160
  %v3464 = vunpack.c.h.b16 %v3160
  %v3465 = vunpack.c.l.b16 %v3161
  %v3466 = vunpack.c.h.b16 %v3161
  %v3467 = vunpack.c.l.b16 %v3162
  %v3468 = vunpack.c.h.b16 %v3162
  %v3469 = vunpack.c.l.b16 %v3163
  %v3470 = vunpack.c.h.b16 %v3163
  %v3471 = vunpack.c.l.b16 %v3164
  %v3472 = vunpack.c.h.b16 %v3164
  %v3473 = vunpack.c.l.b16 %v3165
  %v3474 = vunpack.c.h.b16 %v3165
  %v3475 = vunpack.c.l.b16 %v3166
  %v3476 = vunpack.c.h.b16 %v3166
  %v3477 = vunpack.c.l.b16 %v3167
  %v3478 = vunpack.c.h.b16 %v3167
  %v3479 = vunpack.c.l.b16 %v3168
  %v3480 = vunpack.c.h.b16 %v3168
  %v3481 = vunpack.c.l.b16 %v3169
  %v3482 = vunpack.c.h.b16 %v3169
  %v3483 = vunpack.c.l.b16 %v3170
  %v3484 = vunpack.c.h.b16 %v3170
  %v3485 = vunpack.c.l.b16 %v3171
  %v3486 = vunpack.c.h.b16 %v3171
  %v3487 = vunpack.c.l.b16 %v3172
  %v3488 = vunpack.c.h.b16 %v3172
  %v3489 = vunpack.c.l.b16 %v3173
  %v3490 = vunpack.c.h.b16 %v3173
  %v3491 = vunpack.c.l.b16 %v3174
  %v3492 = vunpack.c.h.b16 %v3174
  %v3493 = vunpack.c.l.b16 %v3175
  %v3494 = vunpack.c.h.b16 %v3175
  %v3495 = vunpack.c.l.b16 %v3176
  %v3496 = vunpack.c.h.b16 %v3176
  %v3497 = vunpack.c.l.b16 %v3177
  %v3498 = vunpack.c.h.b16 %v3177
  %v3499 = vunpack.c.l.b16 %v3178
  %v3500 = vunpack.c.h.b16 %v3178
  %v3501 = vunpack.c.l.b16 %v3179
  %v3502 = vunpack.c.h.b16 %v3179
  %v3503 = vunpack.c.l.b16 %v3180
  %v3504 = vunpack.c.h.b16 %v3180
  %v3505 = vunpack.c.l.b16 %v3181
  %v3506 = vunpack.c.h.b16 %v3181
  %v3507 = vunpack.c.l.b16 %v3182
  %v3508 = vunpack.c.h.b16 %v3182
  %v3509 = vunpack.c.l.b16 %v3183
  %v3510 = vunpack.c.h.b16 %v3183
  %v3511 = vunpack.c.l.b16 %v3184
  %v3512 = vunpack.c.h.b16 %v3184
  %v3513 = vunpack.c.l.b16 %v3185
  %v3514 = vunpack.c.h.b16 %v3185
  %v3515 = vunpack.c.l.b16 %v3186
  %v3516 = vunpack.c.h.b16 %v3186
  %v3517 = vunpack.c.l.b16 %v3187
  %v3518 = vunpack.c.h.b16 %v3187
  %v3519 = vunpack.c.l.b16 %v3188
  %v3520 = vunpack.c.h.b16 %v3188
  %v3521 = vunpack.c.l.b16 %v3189
  %v3522 = vunpack.c.h.b16 %v3189
  %v3523 = vunpack.c.l.b16 %v3190
  %v3524 = vunpack.c.h.b16 %v3190
  %v3525 = vunpack.c.l.b16 %v3191
  %v3526 = vunpack.c.h.b16 %v3191
  %v3527 = vunpack.c.l.b16 %v3192
  %v3528 = vunpack.c.h.b16 %v3192
  %v3529 = vunpack.c.l.b16 %v3193
  %v3530 = vunpack.c.h.b16 %v3193
  %v3531 = vunpack.c.l.b16 %v3194
  %v3532 = vunpack.c.h.b16 %v3194
  %v3533 = vunpack.c.l.b16 %v3195
  %v3534 = vunpack.c.h.b16 %v3195
  %v3535 = vunpack.c.l.b16 %v3196
  %v3536 = vunpack.c.h.b16 %v3196
  %v3537 = vunpack.c.l.b16 %v3197
  %v3538 = vunpack.c.h.b16 %v3197
  %v3539 = vunpack.c.l.b16 %v3198
  %v3540 = vunpack.c.h.b16 %v3198
  %v3541 = vunpack.c.l.b16 %v3199
  %v3542 = vunpack.c.h.b16 %v3199
  %v3543 = vunpack.c.l.b16 %v3200
  %v3544 = vunpack.c.h.b16 %v3200
  %v3545 = vunpack.c.l.b16 %v3201
  %v3546 = vunpack.c.h.b16 %v3201
  %v3547 = vunpack.c.l.b16 %v3202
  %v3548 = vunpack.c.h.b16 %v3202
  %v3549 = vunpack.c.l.b16 %v3203
  %v3550 = vunpack.c.h.b16 %v3203
  %v3551 = vunpack.c.l.b16 %v3204
  %v3552 = vunpack.c.h.b16 %v3204
  %v3553 = vunpack.c.l.b16 %v3205
  %v3554 = vunpack.c.h.b16 %v3205
  %v3555 = vunpack.c.l.b16 %v3206
  %v3556 = vunpack.c.h.b16 %v3206
  %v3557 = vunpack.c.l.b16 %v3207
  %v3558 = vunpack.c.h.b16 %v3207
  %v3559 = vunpack.c.l.b16 %v3208
  %v3560 = vunpack.c.h.b16 %v3208
  %v3561 = vunpack.c.l.b16 %v3209
  %v3562 = vunpack.c.h.b16 %v3209
  %v3563 = vunpack.c.l.b16 %v3210
  %v3564 = vunpack.c.h.b16 %v3210
  %v3565 = vunpack.c.l.b16 %v3211
  %v3566 = vunpack.c.h.b16 %v3211
  %v3567 = vunpack.c.l.b16 %v3212
  %v3568 = vunpack.c.h.b16 %v3212
  %v3569 = vunpack.c.l.b16 %v3213
  %v3570 = vunpack.c.h.b16 %v3213
  %v3571 = vunpack.c.l.b16 %v3214
  %v3572 = vunpack.c.h.b16 %v3214
  %v3573 = vunpack.c.l.b16 %v3215
  %v3574 = vunpack.c.h.b16 %v3215
  %v3575 = vunpack.c.l.b16 %v3216
  %v3576 = vunpack.c.h.b16 %v3216
  %v3577 = vunpack.c.l.b16 %v3217
  %v3578 = vunpack.c.h.b16 %v3217
  %v3579 = vunpack.c.l.b16 %v3218
  %v3580 = vunpack.c.h.b16 %v3218
  %v3581 = vunpack.c.l.b16 %v3219
  %v3582 = vunpack.c.h.b16 %v3219
  %v3583 = vunpack.c.l.b16 %v3220
  %v3584 = vunpack.c.h.b16 %v3220
  %v3585 = vunpack.c.l.b16 %v3221
  %v3586 = vunpack.c.h.b16 %v3221
  %v3587 = vunpack.c.l.b16 %v3222
  %v3588 = vunpack.c.h.b16 %v3222
  %v3589 = vunpack.c.l.b16 %v3223
  %v3590 = vunpack.c.h.b16 %v3223
  %v3591 = vunpack.c.l.b16 %v3224
  %v3592 = vunpack.c.h.b16 %v3224
  %v3593 = vunpack.c.l.b16 %v3225
  %v3594 = vunpack.c.h.b16 %v3225
  %v3595 = vunpack.c.l.b16 %v3226
  %v3596 = vunpack.c.h.b16 %v3226
  %v3597 = vunpack.c.l.b16 %v3227
  %v3598 = vunpack.c.h.b16 %v3227
  %v3599 = vunpack.c.l.b16 %v3228
  %v3600 = vunpack.c.h.b16 %v3228
  %v3601 = vunpack.c.l.b16 %v3229
  %v3602 = vunpack.c.h.b16 %v3229
  %v3603 = vunpack.c.l.b16 %v3230
  %v3604 = vunpack.c.h.b16 %v3230
  %v3605 = vunpack.c.l.b16 %v3231
  %v3606 = vunpack.c.h.b16 %v3231
  %v3607 = vunpack.c.l.b16 %v3232
  %v3608 = vunpack.c.h.b16 %v3232
  %v3609 = vunpack.c.l.b16 %v3233
  %v3610 = vunpack.c.h.b16 %v3233
  %v3611 = vunpack.c.l.b16 %v3234
  %v3612 = vunpack.c.h.b16 %v3234
  %v3613 = vunpack.c.l.b16 %v3235
  %v3614 = vunpack.c.h.b16 %v3235
  %v3615 = vunpack.c.l.b16 %v3236
  %v3616 = vunpack.c.h.b16 %v3236
  %v3617 = vunpack.c.l.b16 %v3237
  %v3618 = vunpack.c.h.b16 %v3237
  %v3619 = vunpack.c.l.b16 %v3238
  %v3620 = vunpack.c.h.b16 %v3238
  %v3621 = vunpack.c.l.b16 %v3239
  %v3622 = vunpack.c.h.b16 %v3239
  %v3623 = vunpack.c.l.b16 %v3240
  %v3624 = vunpack.c.h.b16 %v3240
  %v3625 = vpack.c.b16 %v3373, %v3369
  %v3626 = vpack.c.b16 %v3374, %v3370
  %v3627 = vpack.c.b16 %v3375, %v3371
  %v3628 = vpack.c.b16 %v3376, %v3372
  %v3629 = vpack.c.b16 %v3381, %v3377
  %v3630 = vpack.c.b16 %v3382, %v3378
  %v3631 = vpack.c.b16 %v3383, %v3379
  %v3632 = vpack.c.b16 %v3384, %v3380
  %v3633 = vpack.c.b16 %v3389, %v3385
  %v3634 = vpack.c.b16 %v3390, %v3386
  %v3635 = vpack.c.b16 %v3391, %v3387
  %v3636 = vpack.c.b16 %v3392, %v3388
  %v3637 = vpack.c.b16 %v3397, %v3393
  %v3638 = vpack.c.b16 %v3398, %v3394
  %v3639 = vpack.c.b16 %v3399, %v3395
  %v3640 = vpack.c.b16 %v3400, %v3396
  %v3641 = vpack.c.b16 %v3405, %v3401
  %v3642 = vpack.c.b16 %v3406, %v3402
  %v3643 = vpack.c.b16 %v3407, %v3403
  %v3644 = vpack.c.b16 %v3408, %v3404
  %v3645 = vpack.c.b16 %v3413, %v3409
  %v3646 = vpack.c.b16 %v3414, %v3410
  %v3647 = vpack.c.b16 %v3415, %v3411
  %v3648 = vpack.c.b16 %v3416, %v3412
  %v3649 = vpack.c.b16 %v3421, %v3417
  %v3650 = vpack.c.b16 %v3422, %v3418
  %v3651 = vpack.c.b16 %v3423, %v3419
  %v3652 = vpack.c.b16 %v3424, %v3420
  %v3653 = vpack.c.b16 %v3429, %v3425
  %v3654 = vpack.c.b16 %v3430, %v3426
  %v3655 = vpack.c.b16 %v3431, %v3427
  %v3656 = vpack.c.b16 %v3432, %v3428
  %v3657 = vpack.c.b16 %v3437, %v3433
  %v3658 = vpack.c.b16 %v3438, %v3434
  %v3659 = vpack.c.b16 %v3439, %v3435
  %v3660 = vpack.c.b16 %v3440, %v3436
  %v3661 = vpack.c.b16 %v3445, %v3441
  %v3662 = vpack.c.b16 %v3446, %v3442
  %v3663 = vpack.c.b16 %v3447, %v3443
  %v3664 = vpack.c.b16 %v3448, %v3444
  %v3665 = vpack.c.b16 %v3453, %v3449
  %v3666 = vpack.c.b16 %v3454, %v3450
  %v3667 = vpack.c.b16 %v3455, %v3451
  %v3668 = vpack.c.b16 %v3456, %v3452
  %v3669 = vpack.c.b16 %v3461, %v3457
  %v3670 = vpack.c.b16 %v3462, %v3458
  %v3671 = vpack.c.b16 %v3463, %v3459
  %v3672 = vpack.c.b16 %v3464, %v3460
  %v3673 = vpack.c.b16 %v3469, %v3465
  %v3674 = vpack.c.b16 %v3470, %v3466
  %v3675 = vpack.c.b16 %v3471, %v3467
  %v3676 = vpack.c.b16 %v3472, %v3468
  %v3677 = vpack.c.b16 %v3477, %v3473
  %v3678 = vpack.c.b16 %v3478, %v3474
  %v3679 = vpack.c.b16 %v3479, %v3475
  %v3680 = vpack.c.b16 %v3480, %v3476
  %v3681 = vpack.c.b16 %v3485, %v3481
  %v3682 = vpack.c.b16 %v3486, %v3482
  %v3683 = vpack.c.b16 %v3487, %v3483
  %v3684 = vpack.c.b16 %v3488, %v3484
  %v3685 = vpack.c.b16 %v3493, %v3489
  %v3686 = vpack.c.b16 %v3494, %v3490
  %v3687 = vpack.c.b16 %v3495, %v3491
  %v3688 = vpack.c.b16 %v3496, %v3492
  %v3689 = vpack.c.b16 %v3501, %v3497
  %v3690 = vpack.c.b16 %v3502, %v3498
  %v3691 = vpack.c.b16 %v3503, %v3499
  %v3692 = vpack.c.b16 %v3504, %v3500
  %v3693 = vpack.c.b16 %v3509, %v3505
  %v3694 = vpack.c.b16 %v3510, %v3506
  %v3695 = vpack.c.b16 %v3511, %v3507
  %v3696 = vpack.c.b16 %v3512, %v3508
  %v3697 = vpack.c.b16 %v3517, %v3513
  %v3698 = vpack.c.b16 %v3518, %v3514
  %v3699 = vpack.c.b16 %v3519, %v3515
  %v3700 = vpack.c.b16 %v3520, %v3516
  %v3701 = vpack.c.b16 %v3525, %v3521
  %v3702 = vpack.c.b16 %v3526, %v3522
  %v3703 = vpack.c.b16 %v3527, %v3523
  %v3704 = vpack.c.b16 %v3528, %v3524
  %v3705 = vpack.c.b16 %v3533, %v3529
  %v3706 = vpack.c.b16 %v3534, %v3530
  %v3707 = vpack.c.b16 %v3535, %v3531
  %v3708 = vpack.c.b16 %v3536, %v3532
  %v3709 = vpack.c.b16 %v3541, %v3537
  %v3710 = vpack.c.b16 %v3542, %v3538
  %v3711 = vpack.c.b16 %v3543, %v3539
  %v3712 = vpack.c.b16 %v3544, %v3540
  %v3713 = vpack.c.b16 %v3549, %v3545
  %v3714 = vpack.c.b16 %v3550, %v3546
  %v3715 = vpack.c.b16 %v3551, %v3547
  %v3716 = vpack.c.b16 %v3552, %v3548
  %v3717 = vpack.c.b16 %v3557, %v3553
  %v3718 = vpack.c.b16 %v3558, %v3554
  %v3719 = vpack.c.b16 %v3559, %v3555
  %v3720 = vpack.c.b16 %v3560, %v3556
  %v3721 = vpack.c.b16 %v3565, %v3561
  %v3722 = vpack.c.b16 %v3566, %v3562
  %v3723 = vpack.c.b16 %v3567, %v3563
  %v3724 = vpack.c.b16 %v3568, %v3564
  %v3725 = vpack.c.b16 %v3573, %v3569
  %v3726 = vpack.c.b16 %v3574, %v3570
  %v3727 = vpack.c.b16 %v3575, %v3571
  %v3728 = vpack.c.b16 %v3576, %v3572
  %v3729 = vpack.c.b16 %v3581, %v3577
  %v3730 = vpack.c.b16 %v3582, %v3578
  %v3731 = vpack.c.b16 %v3583, %v3579
  %v3732 = vpack.c.b16 %v3584, %v3580
  %v3733 = vpack.c.b16 %v3589, %v3585
  %v3734 = vpack.c.b16 %v3590, %v3586
  %v3735 = vpack.c.b16 %v3591, %v3587
  %v3736 = vpack.c.b16 %v3592, %v3588
  %v3737 = vpack.c.b16 %v3597, %v3593
  %v3738 = vpack.c.b16 %v3598, %v3594
  %v3739 = vpack.c.b16 %v3599, %v3595
  %v3740 = vpack.c.b16 %v3600, %v3596
  %v3741 = vpack.c.b16 %v3605, %v3601
  %v3742 = vpack.c.b16 %v3606, %v3602
  %v3743 = vpack.c.b16 %v3607, %v3603
  %v3744 = vpack.c.b16 %v3608, %v3604
  %v3745 = vpack.c.b16 %v3613, %v3609
  %v3746 = vpack.c.b16 %v3614, %v3610
  %v3747 = vpack.c.b16 %v3615, %v3611
  %v3748 = vpack.c.b16 %v3616, %v3612
  %v3749 = vpack.c.b16 %v3621, %v3617
  %v3750 = vpack.c.b16 %v3622, %v3618
  %v3751 = vpack.c.b16 %v3623, %v3619
  %v3752 = vpack.c.b16 %v3624, %v3620
  %3881 = vmatpush.bf16.msra.mxu0 %v3653
  %3882 = vmatpush.bf16.msra.mxu0 %v3649
  %3883 = vmatpush.bf16.msra.mxu0 %v3645
  %3884 = vmatpush.bf16.msra.mxu0 %v3641
  %3885 = vmatpush.bf16.msra.mxu0 %v3637
  %3886 = vmatpush.bf16.msra.mxu0 %v3633
  %3887 = vmatpush.bf16.msra.mxu0 %v3629
  %3888 = vmatpush.bf16.msra.mxu0 %v3625
  %3889 = vmatmul.bf16.gmra.mxu0 %v3105
  %v3890 = vpop.f32.mrf.mxu0
  %v3891 = vadd.f32 0.0, %v3890
  %v3892 = vpop.f32.mrf.mxu0
  %v3893 = vadd.f32 0.0, %v3892
  %3894 = vmatmul.bf16.gmra.mxu0 %v3109
  %v3895 = vpop.f32.mrf.mxu0
  %v3896 = vadd.f32 0.0, %v3895
  %v3897 = vpop.f32.mrf.mxu0
  %v3898 = vadd.f32 0.0, %v3897
  %3899 = vdwg.mxu0
  %3900 = vmatpush.bf16.msra.mxu0 %v3685
  %3901 = vmatpush.bf16.msra.mxu0 %v3681
  %3902 = vmatpush.bf16.msra.mxu0 %v3677
  %3903 = vmatpush.bf16.msra.mxu0 %v3673
  %3904 = vmatpush.bf16.msra.mxu0 %v3669
  %3905 = vmatpush.bf16.msra.mxu0 %v3665
  %3906 = vmatpush.bf16.msra.mxu0 %v3661
  %3907 = vmatpush.bf16.msra.mxu0 %v3657
  %3908 = vmatmul.bf16.gmra.mxu0 %v3106
  %v3909 = vpop.f32.mrf.mxu0
  %v3910 = vadd.f32 %v3891, %v3909
  %v3911 = vpop.f32.mrf.mxu0
  %v3912 = vadd.f32 %v3893, %v3911
  %3913 = vmatmul.bf16.gmra.mxu0 %v3110
  %v3914 = vpop.f32.mrf.mxu0
  %v3915 = vadd.f32 %v3896, %v3914
  %v3916 = vpop.f32.mrf.mxu0
  %v3917 = vadd.f32 %v3898, %v3916
  %3918 = vdwg.mxu0
  %3919 = vmatpush.bf16.msra.mxu0 %v3717
  %3920 = vmatpush.bf16.msra.mxu0 %v3713
  %3921 = vmatpush.bf16.msra.mxu0 %v3709
  %3922 = vmatpush.bf16.msra.mxu0 %v3705
  %3923 = vmatpush.bf16.msra.mxu0 %v3701
  %3924 = vmatpush.bf16.msra.mxu0 %v3697
  %3925 = vmatpush.bf16.msra.mxu0 %v3693
  %3926 = vmatpush.bf16.msra.mxu0 %v3689
  %3927 = vmatmul.bf16.gmra.mxu0 %v3107
  %v3928 = vpop.f32.mrf.mxu0
  %v3929 = vadd.f32 %v3910, %v3928
  %v3930 = vpop.f32.mrf.mxu0
  %v3931 = vadd.f32 %v3912, %v3930
  %3932 = vmatmul.bf16.gmra.mxu0 %v3111
  %v3933 = vpop.f32.mrf.mxu0
  %v3934 = vadd.f32 %v3915, %v3933
  %v3935 = vpop.f32.mrf.mxu0
  %v3936 = vadd.f32 %v3917, %v3935
  %3937 = vdwg.mxu0
  %3938 = vmatpush.bf16.msra.mxu0 %v3749
  %3939 = vmatpush.bf16.msra.mxu0 %v3745
  %3940 = vmatpush.bf16.msra.mxu0 %v3741
  %3941 = vmatpush.bf16.msra.mxu0 %v3737
  %3942 = vmatpush.bf16.msra.mxu0 %v3733
  %3943 = vmatpush.bf16.msra.mxu0 %v3729
  %3944 = vmatpush.bf16.msra.mxu0 %v3725
  %3945 = vmatpush.bf16.msra.mxu0 %v3721
  %3946 = vmatmul.bf16.gmra.mxu0 %v3108
  %v3947 = vpop.f32.mrf.mxu0
  %v3948 = vadd.f32 %v3929, %v3947
  %v3949 = vpop.f32.mrf.mxu0
  %v3950 = vadd.f32 %v3931, %v3949
  %3951 = vmatmul.bf16.gmra.mxu0 %v3112
  %v3952 = vpop.f32.mrf.mxu0
  %v3953 = vadd.f32 %v3934, %v3952
  %v3954 = vpop.f32.mrf.mxu0
  %v3955 = vadd.f32 %v3936, %v3954
  %3956 = vdwg.mxu0
  %3957 = vmatpush.bf16.msra.mxu0 %v3654
  %3958 = vmatpush.bf16.msra.mxu0 %v3650
  %3959 = vmatpush.bf16.msra.mxu0 %v3646
  %3960 = vmatpush.bf16.msra.mxu0 %v3642
  %3961 = vmatpush.bf16.msra.mxu0 %v3638
  %3962 = vmatpush.bf16.msra.mxu0 %v3634
  %3963 = vmatpush.bf16.msra.mxu0 %v3630
  %3964 = vmatpush.bf16.msra.mxu0 %v3626
  %3965 = vmatmul.bf16.gmra.mxu0 %v3105
  %v3966 = vpop.f32.mrf.mxu0
  %v3967 = vadd.f32 0.0, %v3966
  %v3968 = vpop.f32.mrf.mxu0
  %v3969 = vadd.f32 0.0, %v3968
  %3970 = vmatmul.bf16.gmra.mxu0 %v3109
  %v3971 = vpop.f32.mrf.mxu0
  %v3972 = vadd.f32 0.0, %v3971
  %v3973 = vpop.f32.mrf.mxu0
  %v3974 = vadd.f32 0.0, %v3973
  %3975 = vdwg.mxu0
  %3976 = vmatpush.bf16.msra.mxu0 %v3686
  %3977 = vmatpush.bf16.msra.mxu0 %v3682
  %3978 = vmatpush.bf16.msra.mxu0 %v3678
  %3979 = vmatpush.bf16.msra.mxu0 %v3674
  %3980 = vmatpush.bf16.msra.mxu0 %v3670
  %3981 = vmatpush.bf16.msra.mxu0 %v3666
  %3982 = vmatpush.bf16.msra.mxu0 %v3662
  %3983 = vmatpush.bf16.msra.mxu0 %v3658
  %3984 = vmatmul.bf16.gmra.mxu0 %v3106
  %v3985 = vpop.f32.mrf.mxu0
  %v3986 = vadd.f32 %v3967, %v3985
  %v3987 = vpop.f32.mrf.mxu0
  %v3988 = vadd.f32 %v3969, %v3987
  %3989 = vmatmul.bf16.gmra.mxu0 %v3110
  %v3990 = vpop.f32.mrf.mxu0
  %v3991 = vadd.f32 %v3972, %v3990
  %v3992 = vpop.f32.mrf.mxu0
  %v3993 = vadd.f32 %v3974, %v3992
  %3994 = vdwg.mxu0
  %3995 = vmatpush.bf16.msra.mxu0 %v3718
  %3996 = vmatpush.bf16.msra.mxu0 %v3714
  %3997 = vmatpush.bf16.msra.mxu0 %v3710
  %3998 = vmatpush.bf16.msra.mxu0 %v3706
  %3999 = vmatpush.bf16.msra.mxu0 %v3702
  %4000 = vmatpush.bf16.msra.mxu0 %v3698
  %4001 = vmatpush.bf16.msra.mxu0 %v3694
  %4002 = vmatpush.bf16.msra.mxu0 %v3690
  %4003 = vmatmul.bf16.gmra.mxu0 %v3107
  %v4004 = vpop.f32.mrf.mxu0
  %v4005 = vadd.f32 %v3986, %v4004
  %v4006 = vpop.f32.mrf.mxu0
  %v4007 = vadd.f32 %v3988, %v4006
  %4008 = vmatmul.bf16.gmra.mxu0 %v3111
  %v4009 = vpop.f32.mrf.mxu0
  %v4010 = vadd.f32 %v3991, %v4009
  %v4011 = vpop.f32.mrf.mxu0
  %v4012 = vadd.f32 %v3993, %v4011
  %4013 = vdwg.mxu0
  %4014 = vmatpush.bf16.msra.mxu0 %v3750
  %4015 = vmatpush.bf16.msra.mxu0 %v3746
  %4016 = vmatpush.bf16.msra.mxu0 %v3742
  %4017 = vmatpush.bf16.msra.mxu0 %v3738
  %4018 = vmatpush.bf16.msra.mxu0 %v3734
  %4019 = vmatpush.bf16.msra.mxu0 %v3730
  %4020 = vmatpush.bf16.msra.mxu0 %v3726
  %4021 = vmatpush.bf16.msra.mxu0 %v3722
  %4022 = vmatmul.bf16.gmra.mxu0 %v3108
  %v4023 = vpop.f32.mrf.mxu0
  %v4024 = vadd.f32 %v4005, %v4023
  %v4025 = vpop.f32.mrf.mxu0
  %v4026 = vadd.f32 %v4007, %v4025
  %4027 = vmatmul.bf16.gmra.mxu0 %v3112
  %v4028 = vpop.f32.mrf.mxu0
  %v4029 = vadd.f32 %v4010, %v4028
  %v4030 = vpop.f32.mrf.mxu0
  %v4031 = vadd.f32 %v4012, %v4030
  %4032 = vdwg.mxu0
  %4033 = vmatpush.bf16.msra.mxu0 %v3655
  %4034 = vmatpush.bf16.msra.mxu0 %v3651
  %4035 = vmatpush.bf16.msra.mxu0 %v3647
  %4036 = vmatpush.bf16.msra.mxu0 %v3643
  %4037 = vmatpush.bf16.msra.mxu0 %v3639
  %4038 = vmatpush.bf16.msra.mxu0 %v3635
  %4039 = vmatpush.bf16.msra.mxu0 %v3631
  %4040 = vmatpush.bf16.msra.mxu0 %v3627
  %4041 = vmatmul.bf16.gmra.mxu0 %v3105
  %v4042 = vpop.f32.mrf.mxu0
  %v4043 = vadd.f32 0.0, %v4042
  %v4044 = vpop.f32.mrf.mxu0
  %v4045 = vadd.f32 0.0, %v4044
  %4046 = vmatmul.bf16.gmra.mxu0 %v3109
  %v4047 = vpop.f32.mrf.mxu0
  %v4048 = vadd.f32 0.0, %v4047
  %v4049 = vpop.f32.mrf.mxu0
  %v4050 = vadd.f32 0.0, %v4049
  %4051 = vdwg.mxu0
  %4052 = vmatpush.bf16.msra.mxu0 %v3687
  %4053 = vmatpush.bf16.msra.mxu0 %v3683
  %4054 = vmatpush.bf16.msra.mxu0 %v3679
  %4055 = vmatpush.bf16.msra.mxu0 %v3675
  %4056 = vmatpush.bf16.msra.mxu0 %v3671
  %4057 = vmatpush.bf16.msra.mxu0 %v3667
  %4058 = vmatpush.bf16.msra.mxu0 %v3663
  %4059 = vmatpush.bf16.msra.mxu0 %v3659
  %4060 = vmatmul.bf16.gmra.mxu0 %v3106
  %v4061 = vpop.f32.mrf.mxu0
  %v4062 = vadd.f32 %v4043, %v4061
  %v4063 = vpop.f32.mrf.mxu0
  %v4064 = vadd.f32 %v4045, %v4063
  %4065 = vmatmul.bf16.gmra.mxu0 %v3110
  %v4066 = vpop.f32.mrf.mxu0
  %v4067 = vadd.f32 %v4048, %v4066
  %v4068 = vpop.f32.mrf.mxu0
  %v4069 = vadd.f32 %v4050, %v4068
  %4070 = vdwg.mxu0
  %4071 = vmatpush.bf16.msra.mxu0 %v3719
  %4072 = vmatpush.bf16.msra.mxu0 %v3715
  %4073 = vmatpush.bf16.msra.mxu0 %v3711
  %4074 = vmatpush.bf16.msra.mxu0 %v3707
  %4075 = vmatpush.bf16.msra.mxu0 %v3703
  %4076 = vmatpush.bf16.msra.mxu0 %v3699
  %4077 = vmatpush.bf16.msra.mxu0 %v3695
  %4078 = vmatpush.bf16.msra.mxu0 %v3691
  %4079 = vmatmul.bf16.gmra.mxu0 %v3107
  %v4080 = vpop.f32.mrf.mxu0
  %v4081 = vadd.f32 %v4062, %v4080
  %v4082 = vpop.f32.mrf.mxu0
  %v4083 = vadd.f32 %v4064, %v4082
  %4084 = vmatmul.bf16.gmra.mxu0 %v3111
  %v4085 = vpop.f32.mrf.mxu0
  %v4086 = vadd.f32 %v4067, %v4085
  %v4087 = vpop.f32.mrf.mxu0
  %v4088 = vadd.f32 %v4069, %v4087
  %4089 = vdwg.mxu0
  %4090 = vmatpush.bf16.msra.mxu0 %v3751
  %4091 = vmatpush.bf16.msra.mxu0 %v3747
  %4092 = vmatpush.bf16.msra.mxu0 %v3743
  %4093 = vmatpush.bf16.msra.mxu0 %v3739
  %4094 = vmatpush.bf16.msra.mxu0 %v3735
  %4095 = vmatpush.bf16.msra.mxu0 %v3731
  %4096 = vmatpush.bf16.msra.mxu0 %v3727
  %4097 = vmatpush.bf16.msra.mxu0 %v3723
  %4098 = vmatmul.bf16.gmra.mxu0 %v3108
  %v4099 = vpop.f32.mrf.mxu0
  %v4100 = vadd.f32 %v4081, %v4099
  %v4101 = vpop.f32.mrf.mxu0
  %v4102 = vadd.f32 %v4083, %v4101
  %4103 = vmatmul.bf16.gmra.mxu0 %v3112
  %v4104 = vpop.f32.mrf.mxu0
  %v4105 = vadd.f32 %v4086, %v4104
  %v4106 = vpop.f32.mrf.mxu0
  %v4107 = vadd.f32 %v4088, %v4106
  %4108 = vdwg.mxu0
  %4109 = vmatpush.bf16.msra.mxu0 %v3656
  %4110 = vmatpush.bf16.msra.mxu0 %v3652
  %4111 = vmatpush.bf16.msra.mxu0 %v3648
  %4112 = vmatpush.bf16.msra.mxu0 %v3644
  %4113 = vmatpush.bf16.msra.mxu0 %v3640
  %4114 = vmatpush.bf16.msra.mxu0 %v3636
  %4115 = vmatpush.bf16.msra.mxu0 %v3632
  %4116 = vmatpush.bf16.msra.mxu0 %v3628
  %4117 = vmatmul.bf16.gmra.mxu0 %v3105
  %v4118 = vpop.f32.mrf.mxu0
  %v4119 = vadd.f32 0.0, %v4118
  %v4120 = vpop.f32.mrf.mxu0
  %v4121 = vadd.f32 0.0, %v4120
  %4122 = vmatmul.bf16.gmra.mxu0 %v3109
  %v4123 = vpop.f32.mrf.mxu0
  %v4124 = vadd.f32 0.0, %v4123
  %v4125 = vpop.f32.mrf.mxu0
  %v4126 = vadd.f32 0.0, %v4125
  %4127 = vdwg.mxu0
  %4128 = vmatpush.bf16.msra.mxu0 %v3688
  %4129 = vmatpush.bf16.msra.mxu0 %v3684
  %4130 = vmatpush.bf16.msra.mxu0 %v3680
  %4131 = vmatpush.bf16.msra.mxu0 %v3676
  %4132 = vmatpush.bf16.msra.mxu0 %v3672
  %4133 = vmatpush.bf16.msra.mxu0 %v3668
  %4134 = vmatpush.bf16.msra.mxu0 %v3664
  %4135 = vmatpush.bf16.msra.mxu0 %v3660
  %4136 = vmatmul.bf16.gmra.mxu0 %v3106
  %v4137 = vpop.f32.mrf.mxu0
  %v4138 = vadd.f32 %v4119, %v4137
  %v4139 = vpop.f32.mrf.mxu0
  %v4140 = vadd.f32 %v4121, %v4139
  %4141 = vmatmul.bf16.gmra.mxu0 %v3110
  %v4142 = vpop.f32.mrf.mxu0
  %v4143 = vadd.f32 %v4124, %v4142
  %v4144 = vpop.f32.mrf.mxu0
  %v4145 = vadd.f32 %v4126, %v4144
  %4146 = vdwg.mxu0
  %4147 = vmatpush.bf16.msra.mxu0 %v3720
  %4148 = vmatpush.bf16.msra.mxu0 %v3716
  %4149 = vmatpush.bf16.msra.mxu0 %v3712
  %4150 = vmatpush.bf16.msra.mxu0 %v3708
  %4151 = vmatpush.bf16.msra.mxu0 %v3704
  %4152 = vmatpush.bf16.msra.mxu0 %v3700
  %4153 = vmatpush.bf16.msra.mxu0 %v3696
  %4154 = vmatpush.bf16.msra.mxu0 %v3692
  %4155 = vmatmul.bf16.gmra.mxu0 %v3107
  %v4156 = vpop.f32.mrf.mxu0
  %v4157 = vadd.f32 %v4138, %v4156
  %v4158 = vpop.f32.mrf.mxu0
  %v4159 = vadd.f32 %v4140, %v4158
  %4160 = vmatmul.bf16.gmra.mxu0 %v3111
  %v4161 = vpop.f32.mrf.mxu0
  %v4162 = vadd.f32 %v4143, %v4161
  %v4163 = vpop.f32.mrf.mxu0
  %v4164 = vadd.f32 %v4145, %v4163
  %4165 = vdwg.mxu0
  %4166 = vmatpush.bf16.msra.mxu0 %v3752
  %4167 = vmatpush.bf16.msra.mxu0 %v3748
  %4168 = vmatpush.bf16.msra.mxu0 %v3744
  %4169 = vmatpush.bf16.msra.mxu0 %v3740
  %4170 = vmatpush.bf16.msra.mxu0 %v3736
  %4171 = vmatpush.bf16.msra.mxu0 %v3732
  %4172 = vmatpush.bf16.msra.mxu0 %v3728
  %4173 = vmatpush.bf16.msra.mxu0 %v3724
  %4174 = vmatmul.bf16.gmra.mxu0 %v3108
  %v4175 = vpop.f32.mrf.mxu0
  %v4176 = vadd.f32 %v4157, %v4175
  %v4177 = vpop.f32.mrf.mxu0
  %v4178 = vadd.f32 %v4159, %v4177
  %4179 = vmatmul.bf16.gmra.mxu0 %v3112
  %v4180 = vpop.f32.mrf.mxu0
  %v4181 = vadd.f32 %v4162, %v4180
  %v4182 = vpop.f32.mrf.mxu0
  %v4183 = vadd.f32 %v4164, %v4182
  %4184 = vdwg.mxu0
  %v4185 = vadd.f32 %v3032, %v3948
  %v4186 = vadd.f32 %v3033, %v4024
  %v4187 = vadd.f32 %v3034, %v4100
  %v4188 = vadd.f32 %v3035, %v4176
  %v4189 = vadd.f32 %v3036, %v3950
  %v4190 = vadd.f32 %v3037, %v4026
  %v4191 = vadd.f32 %v3038, %v4102
  %v4192 = vadd.f32 %v3039, %v4178
  %v4193 = vadd.f32 %v3040, %v3953
  %v4194 = vadd.f32 %v3041, %v4029
  %v4195 = vadd.f32 %v3042, %v4105
  %v4196 = vadd.f32 %v3043, %v4181
  %v4197 = vadd.f32 %v3044, %v3955
  %v4198 = vadd.f32 %v3045, %v4031
  %v4199 = vadd.f32 %v3046, %v4107
  %v4200 = vadd.f32 %v3047, %v4183
  %vm4201 = vcmask 1044480
  %v4202 = vrot.slane %v735, 3
  %v4203 = vrot.slane %v716, 3
  %v4204 = vsel %vm4201, %v4202, %v4203
  %v4205 = vrot.slane %v736, 3
  %v4206 = vrot.slane %v718, 3
  %v4207 = vsel %vm4201, %v4205, %v4206
  %v4208 = vrot.slane %v737, 3
  %v4209 = vrot.slane %v720, 3
  %v4210 = vsel %vm4201, %v4208, %v4209
  %v4211 = vrot.slane %v738, 3
  %v4212 = vrot.slane %v722, 3
  %v4213 = vsel %vm4201, %v4211, %v4212
  %v4214 = vrot.slane %v739, 3
  %v4215 = vsel %vm4201, %v4203, %v4214
  %v4216 = vrot.slane %v740, 3
  %v4217 = vsel %vm4201, %v4206, %v4216
  %v4218 = vrot.slane %v741, 3
  %v4219 = vsel %vm4201, %v4209, %v4218
  %v4220 = vrot.slane %v742, 3
  %v4221 = vsel %vm4201, %v4212, %v4220
  %v4230 = vrot.slane %v775, 3
  %v4231 = vrot.slane %v756, 3
  %v4232 = vsel %vm4201, %v4230, %v4231
  %v4233 = vrot.slane %v776, 3
  %v4234 = vrot.slane %v758, 3
  %v4235 = vsel %vm4201, %v4233, %v4234
  %v4236 = vrot.slane %v777, 3
  %v4237 = vrot.slane %v760, 3
  %v4238 = vsel %vm4201, %v4236, %v4237
  %v4239 = vrot.slane %v778, 3
  %v4240 = vrot.slane %v762, 3
  %v4241 = vsel %vm4201, %v4239, %v4240
  %v4242 = vrot.slane %v779, 3
  %v4243 = vsel %vm4201, %v4231, %v4242
  %v4244 = vrot.slane %v780, 3
  %v4245 = vsel %vm4201, %v4234, %v4244
  %v4246 = vrot.slane %v781, 3
  %v4247 = vsel %vm4201, %v4237, %v4246
  %v4248 = vrot.slane %v782, 3
  %v4249 = vsel %vm4201, %v4240, %v4248
  %v4258 = vpack.c.bf16 %v4215, %v4204
  %v4259 = vpack.c.bf16 %v4217, %v4207
  %v4260 = vpack.c.bf16 %v4219, %v4210
  %v4261 = vpack.c.bf16 %v4221, %v4213
  %v4262 = vpack.c.bf16 %v4243, %v4232
  %v4263 = vpack.c.bf16 %v4245, %v4235
  %v4264 = vpack.c.bf16 %v4247, %v4238
  %v4265 = vpack.c.bf16 %v4249, %v4241
  %v4266 = vld [vmem:[%s2 + $0xc00] sm:$0xff]
  %v4267 = vld [vmem:[%s2 + $0xc08] sm:$0xff]
  %v4268 = vld [vmem:[%s2 + $0xc10] sm:$0xff]
  %v4269 = vld [vmem:[%s2 + $0xc18] sm:$0xff]
  %v4270 = vld [vmem:[%s2 + $0xc20] sm:$0xff]
  %v4271 = vld [vmem:[%s2 + $0xc28] sm:$0xff]
  %v4272 = vld [vmem:[%s2 + $0xc30] sm:$0xff]
  %v4273 = vld [vmem:[%s2 + $0xc38] sm:$0xff]
  %v4274 = vld [vmem:[%s2 + $0xc40] sm:$0xff]
  %v4275 = vld [vmem:[%s2 + $0xc48] sm:$0xff]
  %v4276 = vld [vmem:[%s2 + $0xc50] sm:$0xff]
  %v4277 = vld [vmem:[%s2 + $0xc58] sm:$0xff]
  %v4278 = vld [vmem:[%s2 + $0xc60] sm:$0xff]
  %v4279 = vld [vmem:[%s2 + $0xc68] sm:$0xff]
  %v4280 = vld [vmem:[%s2 + $0xc70] sm:$0xff]
  %v4281 = vld [vmem:[%s2 + $0xc78] sm:$0xff]
  %v4282 = vld [vmem:[%s2 + $0xc80] sm:$0xff]
  %v4283 = vld [vmem:[%s2 + $0xc88] sm:$0xff]
  %v4284 = vld [vmem:[%s2 + $0xc90] sm:$0xff]
  %v4285 = vld [vmem:[%s2 + $0xc98] sm:$0xff]
  %v4286 = vld [vmem:[%s2 + $0xca0] sm:$0xff]
  %v4287 = vld [vmem:[%s2 + $0xca8] sm:$0xff]
  %v4288 = vld [vmem:[%s2 + $0xcb0] sm:$0xff]
  %v4289 = vld [vmem:[%s2 + $0xcb8] sm:$0xff]
  %v4290 = vld [vmem:[%s2 + $0xcc0] sm:$0xff]
  %v4291 = vld [vmem:[%s2 + $0xcc8] sm:$0xff]
  %v4292 = vld [vmem:[%s2 + $0xcd0] sm:$0xff]
  %v4293 = vld [vmem:[%s2 + $0xcd8] sm:$0xff]
  %v4294 = vld [vmem:[%s2 + $0xce0] sm:$0xff]
  %v4295 = vld [vmem:[%s2 + $0xce8] sm:$0xff]
  %v4296 = vld [vmem:[%s2 + $0xcf0] sm:$0xff]
  %v4297 = vld [vmem:[%s2 + $0xcf8] sm:$0xff]
  %v4298 = vld [vmem:[%s2 + $0xd00] sm:$0xff]
  %v4299 = vld [vmem:[%s2 + $0xd08] sm:$0xff]
  %v4300 = vld [vmem:[%s2 + $0xd10] sm:$0xff]
  %v4301 = vld [vmem:[%s2 + $0xd18] sm:$0xff]
  %v4302 = vld [vmem:[%s2 + $0xd20] sm:$0xff]
  %v4303 = vld [vmem:[%s2 + $0xd28] sm:$0xff]
  %v4304 = vld [vmem:[%s2 + $0xd30] sm:$0xff]
  %v4305 = vld [vmem:[%s2 + $0xd38] sm:$0xff]
  %v4306 = vld [vmem:[%s2 + $0xd40] sm:$0xff]
  %v4307 = vld [vmem:[%s2 + $0xd48] sm:$0xff]
  %v4308 = vld [vmem:[%s2 + $0xd50] sm:$0xff]
  %v4309 = vld [vmem:[%s2 + $0xd58] sm:$0xff]
  %v4310 = vld [vmem:[%s2 + $0xd60] sm:$0xff]
  %v4311 = vld [vmem:[%s2 + $0xd68] sm:$0xff]
  %v4312 = vld [vmem:[%s2 + $0xd70] sm:$0xff]
  %v4313 = vld [vmem:[%s2 + $0xd78] sm:$0xff]
  %v4314 = vld [vmem:[%s2 + $0xd80] sm:$0xff]
  %v4315 = vld [vmem:[%s2 + $0xd88] sm:$0xff]
  %v4316 = vld [vmem:[%s2 + $0xd90] sm:$0xff]
  %v4317 = vld [vmem:[%s2 + $0xd98] sm:$0xff]
  %v4318 = vld [vmem:[%s2 + $0xda0] sm:$0xff]
  %v4319 = vld [vmem:[%s2 + $0xda8] sm:$0xff]
  %v4320 = vld [vmem:[%s2 + $0xdb0] sm:$0xff]
  %v4321 = vld [vmem:[%s2 + $0xdb8] sm:$0xff]
  %v4322 = vld [vmem:[%s2 + $0xdc0] sm:$0xff]
  %v4323 = vld [vmem:[%s2 + $0xdc8] sm:$0xff]
  %v4324 = vld [vmem:[%s2 + $0xdd0] sm:$0xff]
  %v4325 = vld [vmem:[%s2 + $0xdd8] sm:$0xff]
  %v4326 = vld [vmem:[%s2 + $0xde0] sm:$0xff]
  %v4327 = vld [vmem:[%s2 + $0xde8] sm:$0xff]
  %v4328 = vld [vmem:[%s2 + $0xdf0] sm:$0xff]
  %v4329 = vld [vmem:[%s2 + $0xdf8] sm:$0xff]
  %v4330 = vld [vmem:[%s2 + $0xe00] sm:$0xff]
  %v4331 = vld [vmem:[%s2 + $0xe08] sm:$0xff]
  %v4332 = vld [vmem:[%s2 + $0xe10] sm:$0xff]
  %v4333 = vld [vmem:[%s2 + $0xe18] sm:$0xff]
  %v4334 = vld [vmem:[%s2 + $0xe20] sm:$0xff]
  %v4335 = vld [vmem:[%s2 + $0xe28] sm:$0xff]
  %v4336 = vld [vmem:[%s2 + $0xe30] sm:$0xff]
  %v4337 = vld [vmem:[%s2 + $0xe38] sm:$0xff]
  %v4338 = vld [vmem:[%s2 + $0xe40] sm:$0xff]
  %v4339 = vld [vmem:[%s2 + $0xe48] sm:$0xff]
  %v4340 = vld [vmem:[%s2 + $0xe50] sm:$0xff]
  %v4341 = vld [vmem:[%s2 + $0xe58] sm:$0xff]
  %v4342 = vld [vmem:[%s2 + $0xe60] sm:$0xff]
  %v4343 = vld [vmem:[%s2 + $0xe68] sm:$0xff]
  %v4344 = vld [vmem:[%s2 + $0xe70] sm:$0xff]
  %v4345 = vld [vmem:[%s2 + $0xe78] sm:$0xff]
  %v4346 = vld [vmem:[%s2 + $0xe80] sm:$0xff]
  %v4347 = vld [vmem:[%s2 + $0xe88] sm:$0xff]
  %v4348 = vld [vmem:[%s2 + $0xe90] sm:$0xff]
  %v4349 = vld [vmem:[%s2 + $0xe98] sm:$0xff]
  %v4350 = vld [vmem:[%s2 + $0xea0] sm:$0xff]
  %v4351 = vld [vmem:[%s2 + $0xea8] sm:$0xff]
  %v4352 = vld [vmem:[%s2 + $0xeb0] sm:$0xff]
  %v4353 = vld [vmem:[%s2 + $0xeb8] sm:$0xff]
  %v4354 = vld [vmem:[%s2 + $0xec0] sm:$0xff]
  %v4355 = vld [vmem:[%s2 + $0xec8] sm:$0xff]
  %v4356 = vld [vmem:[%s2 + $0xed0] sm:$0xff]
  %v4357 = vld [vmem:[%s2 + $0xed8] sm:$0xff]
  %v4358 = vld [vmem:[%s2 + $0xee0] sm:$0xff]
  %v4359 = vld [vmem:[%s2 + $0xee8] sm:$0xff]
  %v4360 = vld [vmem:[%s2 + $0xef0] sm:$0xff]
  %v4361 = vld [vmem:[%s2 + $0xef8] sm:$0xff]
  %v4362 = vld [vmem:[%s2 + $0xf00] sm:$0xff]
  %v4363 = vld [vmem:[%s2 + $0xf08] sm:$0xff]
  %v4364 = vld [vmem:[%s2 + $0xf10] sm:$0xff]
  %v4365 = vld [vmem:[%s2 + $0xf18] sm:$0xff]
  %v4366 = vld [vmem:[%s2 + $0xf20] sm:$0xff]
  %v4367 = vld [vmem:[%s2 + $0xf28] sm:$0xff]
  %v4368 = vld [vmem:[%s2 + $0xf30] sm:$0xff]
  %v4369 = vld [vmem:[%s2 + $0xf38] sm:$0xff]
  %v4370 = vld [vmem:[%s2 + $0xf40] sm:$0xff]
  %v4371 = vld [vmem:[%s2 + $0xf48] sm:$0xff]
  %v4372 = vld [vmem:[%s2 + $0xf50] sm:$0xff]
  %v4373 = vld [vmem:[%s2 + $0xf58] sm:$0xff]
  %v4374 = vld [vmem:[%s2 + $0xf60] sm:$0xff]
  %v4375 = vld [vmem:[%s2 + $0xf68] sm:$0xff]
  %v4376 = vld [vmem:[%s2 + $0xf70] sm:$0xff]
  %v4377 = vld [vmem:[%s2 + $0xf78] sm:$0xff]
  %v4378 = vld [vmem:[%s2 + $0xf80] sm:$0xff]
  %v4379 = vld [vmem:[%s2 + $0xf88] sm:$0xff]
  %v4380 = vld [vmem:[%s2 + $0xf90] sm:$0xff]
  %v4381 = vld [vmem:[%s2 + $0xf98] sm:$0xff]
  %v4382 = vld [vmem:[%s2 + $0xfa0] sm:$0xff]
  %v4383 = vld [vmem:[%s2 + $0xfa8] sm:$0xff]
  %v4384 = vld [vmem:[%s2 + $0xfb0] sm:$0xff]
  %v4385 = vld [vmem:[%s2 + $0xfb8] sm:$0xff]
  %v4386 = vld [vmem:[%s2 + $0xfc0] sm:$0xff]
  %v4387 = vld [vmem:[%s2 + $0xfc8] sm:$0xff]
  %v4388 = vld [vmem:[%s2 + $0xfd0] sm:$0xff]
  %v4389 = vld [vmem:[%s2 + $0xfd8] sm:$0xff]
  %v4390 = vld [vmem:[%s2 + $0xfe0] sm:$0xff]
  %v4391 = vld [vmem:[%s2 + $0xfe8] sm:$0xff]
  %v4392 = vld [vmem:[%s2 + $0xff0] sm:$0xff]
  %v4393 = vld [vmem:[%s2 + $0xff8] sm:$0xff]
  %v4522 = vunpack.c.l.b16 %v4266
  %v4523 = vunpack.c.h.b16 %v4266
  %v4524 = vunpack.c.l.b16 %v4267
  %v4525 = vunpack.c.h.b16 %v4267
  %v4526 = vunpack.c.l.b16 %v4268
  %v4527 = vunpack.c.h.b16 %v4268
  %v4528 = vunpack.c.l.b16 %v4269
  %v4529 = vunpack.c.h.b16 %v4269
  %v4530 = vunpack.c.l.b16 %v4270
  %v4531 = vunpack.c.h.b16 %v4270
  %v4532 = vunpack.c.l.b16 %v4271
  %v4533 = vunpack.c.h.b16 %v4271
  %v4534 = vunpack.c.l.b16 %v4272
  %v4535 = vunpack.c.h.b16 %v4272
  %v4536 = vunpack.c.l.b16 %v4273
  %v4537 = vunpack.c.h.b16 %v4273
  %v4538 = vunpack.c.l.b16 %v4274
  %v4539 = vunpack.c.h.b16 %v4274
  %v4540 = vunpack.c.l.b16 %v4275
  %v4541 = vunpack.c.h.b16 %v4275
  %v4542 = vunpack.c.l.b16 %v4276
  %v4543 = vunpack.c.h.b16 %v4276
  %v4544 = vunpack.c.l.b16 %v4277
  %v4545 = vunpack.c.h.b16 %v4277
  %v4546 = vunpack.c.l.b16 %v4278
  %v4547 = vunpack.c.h.b16 %v4278
  %v4548 = vunpack.c.l.b16 %v4279
  %v4549 = vunpack.c.h.b16 %v4279
  %v4550 = vunpack.c.l.b16 %v4280
  %v4551 = vunpack.c.h.b16 %v4280
  %v4552 = vunpack.c.l.b16 %v4281
  %v4553 = vunpack.c.h.b16 %v4281
  %v4554 = vunpack.c.l.b16 %v4282
  %v4555 = vunpack.c.h.b16 %v4282
  %v4556 = vunpack.c.l.b16 %v4283
  %v4557 = vunpack.c.h.b16 %v4283
  %v4558 = vunpack.c.l.b16 %v4284
  %v4559 = vunpack.c.h.b16 %v4284
  %v4560 = vunpack.c.l.b16 %v4285
  %v4561 = vunpack.c.h.b16 %v4285
  %v4562 = vunpack.c.l.b16 %v4286
  %v4563 = vunpack.c.h.b16 %v4286
  %v4564 = vunpack.c.l.b16 %v4287
  %v4565 = vunpack.c.h.b16 %v4287
  %v4566 = vunpack.c.l.b16 %v4288
  %v4567 = vunpack.c.h.b16 %v4288
  %v4568 = vunpack.c.l.b16 %v4289
  %v4569 = vunpack.c.h.b16 %v4289
  %v4570 = vunpack.c.l.b16 %v4290
  %v4571 = vunpack.c.h.b16 %v4290
  %v4572 = vunpack.c.l.b16 %v4291
  %v4573 = vunpack.c.h.b16 %v4291
  %v4574 = vunpack.c.l.b16 %v4292
  %v4575 = vunpack.c.h.b16 %v4292
  %v4576 = vunpack.c.l.b16 %v4293
  %v4577 = vunpack.c.h.b16 %v4293
  %v4578 = vunpack.c.l.b16 %v4294
  %v4579 = vunpack.c.h.b16 %v4294
  %v4580 = vunpack.c.l.b16 %v4295
  %v4581 = vunpack.c.h.b16 %v4295
  %v4582 = vunpack.c.l.b16 %v4296
  %v4583 = vunpack.c.h.b16 %v4296
  %v4584 = vunpack.c.l.b16 %v4297
  %v4585 = vunpack.c.h.b16 %v4297
  %v4586 = vunpack.c.l.b16 %v4298
  %v4587 = vunpack.c.h.b16 %v4298
  %v4588 = vunpack.c.l.b16 %v4299
  %v4589 = vunpack.c.h.b16 %v4299
  %v4590 = vunpack.c.l.b16 %v4300
  %v4591 = vunpack.c.h.b16 %v4300
  %v4592 = vunpack.c.l.b16 %v4301
  %v4593 = vunpack.c.h.b16 %v4301
  %v4594 = vunpack.c.l.b16 %v4302
  %v4595 = vunpack.c.h.b16 %v4302
  %v4596 = vunpack.c.l.b16 %v4303
  %v4597 = vunpack.c.h.b16 %v4303
  %v4598 = vunpack.c.l.b16 %v4304
  %v4599 = vunpack.c.h.b16 %v4304
  %v4600 = vunpack.c.l.b16 %v4305
  %v4601 = vunpack.c.h.b16 %v4305
  %v4602 = vunpack.c.l.b16 %v4306
  %v4603 = vunpack.c.h.b16 %v4306
  %v4604 = vunpack.c.l.b16 %v4307
  %v4605 = vunpack.c.h.b16 %v4307
  %v4606 = vunpack.c.l.b16 %v4308
  %v4607 = vunpack.c.h.b16 %v4308
  %v4608 = vunpack.c.l.b16 %v4309
  %v4609 = vunpack.c.h.b16 %v4309
  %v4610 = vunpack.c.l.b16 %v4310
  %v4611 = vunpack.c.h.b16 %v4310
  %v4612 = vunpack.c.l.b16 %v4311
  %v4613 = vunpack.c.h.b16 %v4311
  %v4614 = vunpack.c.l.b16 %v4312
  %v4615 = vunpack.c.h.b16 %v4312
  %v4616 = vunpack.c.l.b16 %v4313
  %v4617 = vunpack.c.h.b16 %v4313
  %v4618 = vunpack.c.l.b16 %v4314
  %v4619 = vunpack.c.h.b16 %v4314
  %v4620 = vunpack.c.l.b16 %v4315
  %v4621 = vunpack.c.h.b16 %v4315
  %v4622 = vunpack.c.l.b16 %v4316
  %v4623 = vunpack.c.h.b16 %v4316
  %v4624 = vunpack.c.l.b16 %v4317
  %v4625 = vunpack.c.h.b16 %v4317
  %v4626 = vunpack.c.l.b16 %v4318
  %v4627 = vunpack.c.h.b16 %v4318
  %v4628 = vunpack.c.l.b16 %v4319
  %v4629 = vunpack.c.h.b16 %v4319
  %v4630 = vunpack.c.l.b16 %v4320
  %v4631 = vunpack.c.h.b16 %v4320
  %v4632 = vunpack.c.l.b16 %v4321
  %v4633 = vunpack.c.h.b16 %v4321
  %v4634 = vunpack.c.l.b16 %v4322
  %v4635 = vunpack.c.h.b16 %v4322
  %v4636 = vunpack.c.l.b16 %v4323
  %v4637 = vunpack.c.h.b16 %v4323
  %v4638 = vunpack.c.l.b16 %v4324
  %v4639 = vunpack.c.h.b16 %v4324
  %v4640 = vunpack.c.l.b16 %v4325
  %v4641 = vunpack.c.h.b16 %v4325
  %v4642 = vunpack.c.l.b16 %v4326
  %v4643 = vunpack.c.h.b16 %v4326
  %v4644 = vunpack.c.l.b16 %v4327
  %v4645 = vunpack.c.h.b16 %v4327
  %v4646 = vunpack.c.l.b16 %v4328
  %v4647 = vunpack.c.h.b16 %v4328
  %v4648 = vunpack.c.l.b16 %v4329
  %v4649 = vunpack.c.h.b16 %v4329
  %v4650 = vunpack.c.l.b16 %v4330
  %v4651 = vunpack.c.h.b16 %v4330
  %v4652 = vunpack.c.l.b16 %v4331
  %v4653 = vunpack.c.h.b16 %v4331
  %v4654 = vunpack.c.l.b16 %v4332
  %v4655 = vunpack.c.h.b16 %v4332
  %v4656 = vunpack.c.l.b16 %v4333
  %v4657 = vunpack.c.h.b16 %v4333
  %v4658 = vunpack.c.l.b16 %v4334
  %v4659 = vunpack.c.h.b16 %v4334
  %v4660 = vunpack.c.l.b16 %v4335
  %v4661 = vunpack.c.h.b16 %v4335
  %v4662 = vunpack.c.l.b16 %v4336
  %v4663 = vunpack.c.h.b16 %v4336
  %v4664 = vunpack.c.l.b16 %v4337
  %v4665 = vunpack.c.h.b16 %v4337
  %v4666 = vunpack.c.l.b16 %v4338
  %v4667 = vunpack.c.h.b16 %v4338
  %v4668 = vunpack.c.l.b16 %v4339
  %v4669 = vunpack.c.h.b16 %v4339
  %v4670 = vunpack.c.l.b16 %v4340
  %v4671 = vunpack.c.h.b16 %v4340
  %v4672 = vunpack.c.l.b16 %v4341
  %v4673 = vunpack.c.h.b16 %v4341
  %v4674 = vunpack.c.l.b16 %v4342
  %v4675 = vunpack.c.h.b16 %v4342
  %v4676 = vunpack.c.l.b16 %v4343
  %v4677 = vunpack.c.h.b16 %v4343
  %v4678 = vunpack.c.l.b16 %v4344
  %v4679 = vunpack.c.h.b16 %v4344
  %v4680 = vunpack.c.l.b16 %v4345
  %v4681 = vunpack.c.h.b16 %v4345
  %v4682 = vunpack.c.l.b16 %v4346
  %v4683 = vunpack.c.h.b16 %v4346
  %v4684 = vunpack.c.l.b16 %v4347
  %v4685 = vunpack.c.h.b16 %v4347
  %v4686 = vunpack.c.l.b16 %v4348
  %v4687 = vunpack.c.h.b16 %v4348
  %v4688 = vunpack.c.l.b16 %v4349
  %v4689 = vunpack.c.h.b16 %v4349
  %v4690 = vunpack.c.l.b16 %v4350
  %v4691 = vunpack.c.h.b16 %v4350
  %v4692 = vunpack.c.l.b16 %v4351
  %v4693 = vunpack.c.h.b16 %v4351
  %v4694 = vunpack.c.l.b16 %v4352
  %v4695 = vunpack.c.h.b16 %v4352
  %v4696 = vunpack.c.l.b16 %v4353
  %v4697 = vunpack.c.h.b16 %v4353
  %v4698 = vunpack.c.l.b16 %v4354
  %v4699 = vunpack.c.h.b16 %v4354
  %v4700 = vunpack.c.l.b16 %v4355
  %v4701 = vunpack.c.h.b16 %v4355
  %v4702 = vunpack.c.l.b16 %v4356
  %v4703 = vunpack.c.h.b16 %v4356
  %v4704 = vunpack.c.l.b16 %v4357
  %v4705 = vunpack.c.h.b16 %v4357
  %v4706 = vunpack.c.l.b16 %v4358
  %v4707 = vunpack.c.h.b16 %v4358
  %v4708 = vunpack.c.l.b16 %v4359
  %v4709 = vunpack.c.h.b16 %v4359
  %v4710 = vunpack.c.l.b16 %v4360
  %v4711 = vunpack.c.h.b16 %v4360
  %v4712 = vunpack.c.l.b16 %v4361
  %v4713 = vunpack.c.h.b16 %v4361
  %v4714 = vunpack.c.l.b16 %v4362
  %v4715 = vunpack.c.h.b16 %v4362
  %v4716 = vunpack.c.l.b16 %v4363
  %v4717 = vunpack.c.h.b16 %v4363
  %v4718 = vunpack.c.l.b16 %v4364
  %v4719 = vunpack.c.h.b16 %v4364
  %v4720 = vunpack.c.l.b16 %v4365
  %v4721 = vunpack.c.h.b16 %v4365
  %v4722 = vunpack.c.l.b16 %v4366
  %v4723 = vunpack.c.h.b16 %v4366
  %v4724 = vunpack.c.l.b16 %v4367
  %v4725 = vunpack.c.h.b16 %v4367
  %v4726 = vunpack.c.l.b16 %v4368
  %v4727 = vunpack.c.h.b16 %v4368
  %v4728 = vunpack.c.l.b16 %v4369
  %v4729 = vunpack.c.h.b16 %v4369
  %v4730 = vunpack.c.l.b16 %v4370
  %v4731 = vunpack.c.h.b16 %v4370
  %v4732 = vunpack.c.l.b16 %v4371
  %v4733 = vunpack.c.h.b16 %v4371
  %v4734 = vunpack.c.l.b16 %v4372
  %v4735 = vunpack.c.h.b16 %v4372
  %v4736 = vunpack.c.l.b16 %v4373
  %v4737 = vunpack.c.h.b16 %v4373
  %v4738 = vunpack.c.l.b16 %v4374
  %v4739 = vunpack.c.h.b16 %v4374
  %v4740 = vunpack.c.l.b16 %v4375
  %v4741 = vunpack.c.h.b16 %v4375
  %v4742 = vunpack.c.l.b16 %v4376
  %v4743 = vunpack.c.h.b16 %v4376
  %v4744 = vunpack.c.l.b16 %v4377
  %v4745 = vunpack.c.h.b16 %v4377
  %v4746 = vunpack.c.l.b16 %v4378
  %v4747 = vunpack.c.h.b16 %v4378
  %v4748 = vunpack.c.l.b16 %v4379
  %v4749 = vunpack.c.h.b16 %v4379
  %v4750 = vunpack.c.l.b16 %v4380
  %v4751 = vunpack.c.h.b16 %v4380
  %v4752 = vunpack.c.l.b16 %v4381
  %v4753 = vunpack.c.h.b16 %v4381
  %v4754 = vunpack.c.l.b16 %v4382
  %v4755 = vunpack.c.h.b16 %v4382
  %v4756 = vunpack.c.l.b16 %v4383
  %v4757 = vunpack.c.h.b16 %v4383
  %v4758 = vunpack.c.l.b16 %v4384
  %v4759 = vunpack.c.h.b16 %v4384
  %v4760 = vunpack.c.l.b16 %v4385
  %v4761 = vunpack.c.h.b16 %v4385
  %v4762 = vunpack.c.l.b16 %v4386
  %v4763 = vunpack.c.h.b16 %v4386
  %v4764 = vunpack.c.l.b16 %v4387
  %v4765 = vunpack.c.h.b16 %v4387
  %v4766 = vunpack.c.l.b16 %v4388
  %v4767 = vunpack.c.h.b16 %v4388
  %v4768 = vunpack.c.l.b16 %v4389
  %v4769 = vunpack.c.h.b16 %v4389
  %v4770 = vunpack.c.l.b16 %v4390
  %v4771 = vunpack.c.h.b16 %v4390
  %v4772 = vunpack.c.l.b16 %v4391
  %v4773 = vunpack.c.h.b16 %v4391
  %v4774 = vunpack.c.l.b16 %v4392
  %v4775 = vunpack.c.h.b16 %v4392
  %v4776 = vunpack.c.l.b16 %v4393
  %v4777 = vunpack.c.h.b16 %v4393
  %v4778 = vpack.c.b16 %v4526, %v4522
  %v4779 = vpack.c.b16 %v4527, %v4523
  %v4780 = vpack.c.b16 %v4528, %v4524
  %v4781 = vpack.c.b16 %v4529, %v4525
  %v4782 = vpack.c.b16 %v4534, %v4530
  %v4783 = vpack.c.b16 %v4535, %v4531
  %v4784 = vpack.c.b16 %v4536, %v4532
  %v4785 = vpack.c.b16 %v4537, %v4533
  %v4786 = vpack.c.b16 %v4542, %v4538
  %v4787 = vpack.c.b16 %v4543, %v4539
  %v4788 = vpack.c.b16 %v4544, %v4540
  %v4789 = vpack.c.b16 %v4545, %v4541
  %v4790 = vpack.c.b16 %v4550, %v4546
  %v4791 = vpack.c.b16 %v4551, %v4547
  %v4792 = vpack.c.b16 %v4552, %v4548
  %v4793 = vpack.c.b16 %v4553, %v4549
  %v4794 = vpack.c.b16 %v4558, %v4554
  %v4795 = vpack.c.b16 %v4559, %v4555
  %v4796 = vpack.c.b16 %v4560, %v4556
  %v4797 = vpack.c.b16 %v4561, %v4557
  %v4798 = vpack.c.b16 %v4566, %v4562
  %v4799 = vpack.c.b16 %v4567, %v4563
  %v4800 = vpack.c.b16 %v4568, %v4564
  %v4801 = vpack.c.b16 %v4569, %v4565
  %v4802 = vpack.c.b16 %v4574, %v4570
  %v4803 = vpack.c.b16 %v4575, %v4571
  %v4804 = vpack.c.b16 %v4576, %v4572
  %v4805 = vpack.c.b16 %v4577, %v4573
  %v4806 = vpack.c.b16 %v4582, %v4578
  %v4807 = vpack.c.b16 %v4583, %v4579
  %v4808 = vpack.c.b16 %v4584, %v4580
  %v4809 = vpack.c.b16 %v4585, %v4581
  %v4810 = vpack.c.b16 %v4590, %v4586
  %v4811 = vpack.c.b16 %v4591, %v4587
  %v4812 = vpack.c.b16 %v4592, %v4588
  %v4813 = vpack.c.b16 %v4593, %v4589
  %v4814 = vpack.c.b16 %v4598, %v4594
  %v4815 = vpack.c.b16 %v4599, %v4595
  %v4816 = vpack.c.b16 %v4600, %v4596
  %v4817 = vpack.c.b16 %v4601, %v4597
  %v4818 = vpack.c.b16 %v4606, %v4602
  %v4819 = vpack.c.b16 %v4607, %v4603
  %v4820 = vpack.c.b16 %v4608, %v4604
  %v4821 = vpack.c.b16 %v4609, %v4605
  %v4822 = vpack.c.b16 %v4614, %v4610
  %v4823 = vpack.c.b16 %v4615, %v4611
  %v4824 = vpack.c.b16 %v4616, %v4612
  %v4825 = vpack.c.b16 %v4617, %v4613
  %v4826 = vpack.c.b16 %v4622, %v4618
  %v4827 = vpack.c.b16 %v4623, %v4619
  %v4828 = vpack.c.b16 %v4624, %v4620
  %v4829 = vpack.c.b16 %v4625, %v4621
  %v4830 = vpack.c.b16 %v4630, %v4626
  %v4831 = vpack.c.b16 %v4631, %v4627
  %v4832 = vpack.c.b16 %v4632, %v4628
  %v4833 = vpack.c.b16 %v4633, %v4629
  %v4834 = vpack.c.b16 %v4638, %v4634
  %v4835 = vpack.c.b16 %v4639, %v4635
  %v4836 = vpack.c.b16 %v4640, %v4636
  %v4837 = vpack.c.b16 %v4641, %v4637
  %v4838 = vpack.c.b16 %v4646, %v4642
  %v4839 = vpack.c.b16 %v4647, %v4643
  %v4840 = vpack.c.b16 %v4648, %v4644
  %v4841 = vpack.c.b16 %v4649, %v4645
  %v4842 = vpack.c.b16 %v4654, %v4650
  %v4843 = vpack.c.b16 %v4655, %v4651
  %v4844 = vpack.c.b16 %v4656, %v4652
  %v4845 = vpack.c.b16 %v4657, %v4653
  %v4846 = vpack.c.b16 %v4662, %v4658
  %v4847 = vpack.c.b16 %v4663, %v4659
  %v4848 = vpack.c.b16 %v4664, %v4660
  %v4849 = vpack.c.b16 %v4665, %v4661
  %v4850 = vpack.c.b16 %v4670, %v4666
  %v4851 = vpack.c.b16 %v4671, %v4667
  %v4852 = vpack.c.b16 %v4672, %v4668
  %v4853 = vpack.c.b16 %v4673, %v4669
  %v4854 = vpack.c.b16 %v4678, %v4674
  %v4855 = vpack.c.b16 %v4679, %v4675
  %v4856 = vpack.c.b16 %v4680, %v4676
  %v4857 = vpack.c.b16 %v4681, %v4677
  %v4858 = vpack.c.b16 %v4686, %v4682
  %v4859 = vpack.c.b16 %v4687, %v4683
  %v4860 = vpack.c.b16 %v4688, %v4684
  %v4861 = vpack.c.b16 %v4689, %v4685
  %v4862 = vpack.c.b16 %v4694, %v4690
  %v4863 = vpack.c.b16 %v4695, %v4691
  %v4864 = vpack.c.b16 %v4696, %v4692
  %v4865 = vpack.c.b16 %v4697, %v4693
  %v4866 = vpack.c.b16 %v4702, %v4698
  %v4867 = vpack.c.b16 %v4703, %v4699
  %v4868 = vpack.c.b16 %v4704, %v4700
  %v4869 = vpack.c.b16 %v4705, %v4701
  %v4870 = vpack.c.b16 %v4710, %v4706
  %v4871 = vpack.c.b16 %v4711, %v4707
  %v4872 = vpack.c.b16 %v4712, %v4708
  %v4873 = vpack.c.b16 %v4713, %v4709
  %v4874 = vpack.c.b16 %v4718, %v4714
  %v4875 = vpack.c.b16 %v4719, %v4715
  %v4876 = vpack.c.b16 %v4720, %v4716
  %v4877 = vpack.c.b16 %v4721, %v4717
  %v4878 = vpack.c.b16 %v4726, %v4722
  %v4879 = vpack.c.b16 %v4727, %v4723
  %v4880 = vpack.c.b16 %v4728, %v4724
  %v4881 = vpack.c.b16 %v4729, %v4725
  %v4882 = vpack.c.b16 %v4734, %v4730
  %v4883 = vpack.c.b16 %v4735, %v4731
  %v4884 = vpack.c.b16 %v4736, %v4732
  %v4885 = vpack.c.b16 %v4737, %v4733
  %v4886 = vpack.c.b16 %v4742, %v4738
  %v4887 = vpack.c.b16 %v4743, %v4739
  %v4888 = vpack.c.b16 %v4744, %v4740
  %v4889 = vpack.c.b16 %v4745, %v4741
  %v4890 = vpack.c.b16 %v4750, %v4746
  %v4891 = vpack.c.b16 %v4751, %v4747
  %v4892 = vpack.c.b16 %v4752, %v4748
  %v4893 = vpack.c.b16 %v4753, %v4749
  %v4894 = vpack.c.b16 %v4758, %v4754
  %v4895 = vpack.c.b16 %v4759, %v4755
  %v4896 = vpack.c.b16 %v4760, %v4756
  %v4897 = vpack.c.b16 %v4761, %v4757
  %v4898 = vpack.c.b16 %v4766, %v4762
  %v4899 = vpack.c.b16 %v4767, %v4763
  %v4900 = vpack.c.b16 %v4768, %v4764
  %v4901 = vpack.c.b16 %v4769, %v4765
  %v4902 = vpack.c.b16 %v4774, %v4770
  %v4903 = vpack.c.b16 %v4775, %v4771
  %v4904 = vpack.c.b16 %v4776, %v4772
  %v4905 = vpack.c.b16 %v4777, %v4773
  %5034 = vmatpush.bf16.msra.mxu0 %v4806
  %5035 = vmatpush.bf16.msra.mxu0 %v4802
  %5036 = vmatpush.bf16.msra.mxu0 %v4798
  %5037 = vmatpush.bf16.msra.mxu0 %v4794
  %5038 = vmatpush.bf16.msra.mxu0 %v4790
  %5039 = vmatpush.bf16.msra.mxu0 %v4786
  %5040 = vmatpush.bf16.msra.mxu0 %v4782
  %5041 = vmatpush.bf16.msra.mxu0 %v4778
  %5042 = vmatmul.bf16.gmra.mxu0 %v4258
  %v5043 = vpop.f32.mrf.mxu0
  %v5044 = vadd.f32 0.0, %v5043
  %v5045 = vpop.f32.mrf.mxu0
  %v5046 = vadd.f32 0.0, %v5045
  %5047 = vmatmul.bf16.gmra.mxu0 %v4262
  %v5048 = vpop.f32.mrf.mxu0
  %v5049 = vadd.f32 0.0, %v5048
  %v5050 = vpop.f32.mrf.mxu0
  %v5051 = vadd.f32 0.0, %v5050
  %5052 = vdwg.mxu0
  %5053 = vmatpush.bf16.msra.mxu0 %v4838
  %5054 = vmatpush.bf16.msra.mxu0 %v4834
  %5055 = vmatpush.bf16.msra.mxu0 %v4830
  %5056 = vmatpush.bf16.msra.mxu0 %v4826
  %5057 = vmatpush.bf16.msra.mxu0 %v4822
  %5058 = vmatpush.bf16.msra.mxu0 %v4818
  %5059 = vmatpush.bf16.msra.mxu0 %v4814
  %5060 = vmatpush.bf16.msra.mxu0 %v4810
  %5061 = vmatmul.bf16.gmra.mxu0 %v4259
  %v5062 = vpop.f32.mrf.mxu0
  %v5063 = vadd.f32 %v5044, %v5062
  %v5064 = vpop.f32.mrf.mxu0
  %v5065 = vadd.f32 %v5046, %v5064
  %5066 = vmatmul.bf16.gmra.mxu0 %v4263
  %v5067 = vpop.f32.mrf.mxu0
  %v5068 = vadd.f32 %v5049, %v5067
  %v5069 = vpop.f32.mrf.mxu0
  %v5070 = vadd.f32 %v5051, %v5069
  %5071 = vdwg.mxu0
  %5072 = vmatpush.bf16.msra.mxu0 %v4870
  %5073 = vmatpush.bf16.msra.mxu0 %v4866
  %5074 = vmatpush.bf16.msra.mxu0 %v4862
  %5075 = vmatpush.bf16.msra.mxu0 %v4858
  %5076 = vmatpush.bf16.msra.mxu0 %v4854
  %5077 = vmatpush.bf16.msra.mxu0 %v4850
  %5078 = vmatpush.bf16.msra.mxu0 %v4846
  %5079 = vmatpush.bf16.msra.mxu0 %v4842
  %5080 = vmatmul.bf16.gmra.mxu0 %v4260
  %v5081 = vpop.f32.mrf.mxu0
  %v5082 = vadd.f32 %v5063, %v5081
  %v5083 = vpop.f32.mrf.mxu0
  %v5084 = vadd.f32 %v5065, %v5083
  %5085 = vmatmul.bf16.gmra.mxu0 %v4264
  %v5086 = vpop.f32.mrf.mxu0
  %v5087 = vadd.f32 %v5068, %v5086
  %v5088 = vpop.f32.mrf.mxu0
  %v5089 = vadd.f32 %v5070, %v5088
  %5090 = vdwg.mxu0
  %5091 = vmatpush.bf16.msra.mxu0 %v4902
  %5092 = vmatpush.bf16.msra.mxu0 %v4898
  %5093 = vmatpush.bf16.msra.mxu0 %v4894
  %5094 = vmatpush.bf16.msra.mxu0 %v4890
  %5095 = vmatpush.bf16.msra.mxu0 %v4886
  %5096 = vmatpush.bf16.msra.mxu0 %v4882
  %5097 = vmatpush.bf16.msra.mxu0 %v4878
  %5098 = vmatpush.bf16.msra.mxu0 %v4874
  %5099 = vmatmul.bf16.gmra.mxu0 %v4261
  %v5100 = vpop.f32.mrf.mxu0
  %v5101 = vadd.f32 %v5082, %v5100
  %v5102 = vpop.f32.mrf.mxu0
  %v5103 = vadd.f32 %v5084, %v5102
  %5104 = vmatmul.bf16.gmra.mxu0 %v4265
  %v5105 = vpop.f32.mrf.mxu0
  %v5106 = vadd.f32 %v5087, %v5105
  %v5107 = vpop.f32.mrf.mxu0
  %v5108 = vadd.f32 %v5089, %v5107
  %5109 = vdwg.mxu0
  %5110 = vmatpush.bf16.msra.mxu0 %v4807
  %5111 = vmatpush.bf16.msra.mxu0 %v4803
  %5112 = vmatpush.bf16.msra.mxu0 %v4799
  %5113 = vmatpush.bf16.msra.mxu0 %v4795
  %5114 = vmatpush.bf16.msra.mxu0 %v4791
  %5115 = vmatpush.bf16.msra.mxu0 %v4787
  %5116 = vmatpush.bf16.msra.mxu0 %v4783
  %5117 = vmatpush.bf16.msra.mxu0 %v4779
  %5118 = vmatmul.bf16.gmra.mxu0 %v4258
  %v5119 = vpop.f32.mrf.mxu0
  %v5120 = vadd.f32 0.0, %v5119
  %v5121 = vpop.f32.mrf.mxu0
  %v5122 = vadd.f32 0.0, %v5121
  %5123 = vmatmul.bf16.gmra.mxu0 %v4262
  %v5124 = vpop.f32.mrf.mxu0
  %v5125 = vadd.f32 0.0, %v5124
  %v5126 = vpop.f32.mrf.mxu0
  %v5127 = vadd.f32 0.0, %v5126
  %5128 = vdwg.mxu0
  %5129 = vmatpush.bf16.msra.mxu0 %v4839
  %5130 = vmatpush.bf16.msra.mxu0 %v4835
  %5131 = vmatpush.bf16.msra.mxu0 %v4831
  %5132 = vmatpush.bf16.msra.mxu0 %v4827
  %5133 = vmatpush.bf16.msra.mxu0 %v4823
  %5134 = vmatpush.bf16.msra.mxu0 %v4819
  %5135 = vmatpush.bf16.msra.mxu0 %v4815
  %5136 = vmatpush.bf16.msra.mxu0 %v4811
  %5137 = vmatmul.bf16.gmra.mxu0 %v4259
  %v5138 = vpop.f32.mrf.mxu0
  %v5139 = vadd.f32 %v5120, %v5138
  %v5140 = vpop.f32.mrf.mxu0
  %v5141 = vadd.f32 %v5122, %v5140
  %5142 = vmatmul.bf16.gmra.mxu0 %v4263
  %v5143 = vpop.f32.mrf.mxu0
  %v5144 = vadd.f32 %v5125, %v5143
  %v5145 = vpop.f32.mrf.mxu0
  %v5146 = vadd.f32 %v5127, %v5145
  %5147 = vdwg.mxu0
  %5148 = vmatpush.bf16.msra.mxu0 %v4871
  %5149 = vmatpush.bf16.msra.mxu0 %v4867
  %5150 = vmatpush.bf16.msra.mxu0 %v4863
  %5151 = vmatpush.bf16.msra.mxu0 %v4859
  %5152 = vmatpush.bf16.msra.mxu0 %v4855
  %5153 = vmatpush.bf16.msra.mxu0 %v4851
  %5154 = vmatpush.bf16.msra.mxu0 %v4847
  %5155 = vmatpush.bf16.msra.mxu0 %v4843
  %5156 = vmatmul.bf16.gmra.mxu0 %v4260
  %v5157 = vpop.f32.mrf.mxu0
  %v5158 = vadd.f32 %v5139, %v5157
  %v5159 = vpop.f32.mrf.mxu0
  %v5160 = vadd.f32 %v5141, %v5159
  %5161 = vmatmul.bf16.gmra.mxu0 %v4264
  %v5162 = vpop.f32.mrf.mxu0
  %v5163 = vadd.f32 %v5144, %v5162
  %v5164 = vpop.f32.mrf.mxu0
  %v5165 = vadd.f32 %v5146, %v5164
  %5166 = vdwg.mxu0
  %5167 = vmatpush.bf16.msra.mxu0 %v4903
  %5168 = vmatpush.bf16.msra.mxu0 %v4899
  %5169 = vmatpush.bf16.msra.mxu0 %v4895
  %5170 = vmatpush.bf16.msra.mxu0 %v4891
  %5171 = vmatpush.bf16.msra.mxu0 %v4887
  %5172 = vmatpush.bf16.msra.mxu0 %v4883
  %5173 = vmatpush.bf16.msra.mxu0 %v4879
  %5174 = vmatpush.bf16.msra.mxu0 %v4875
  %5175 = vmatmul.bf16.gmra.mxu0 %v4261
  %v5176 = vpop.f32.mrf.mxu0
  %v5177 = vadd.f32 %v5158, %v5176
  %v5178 = vpop.f32.mrf.mxu0
  %v5179 = vadd.f32 %v5160, %v5178
  %5180 = vmatmul.bf16.gmra.mxu0 %v4265
  %v5181 = vpop.f32.mrf.mxu0
  %v5182 = vadd.f32 %v5163, %v5181
  %v5183 = vpop.f32.mrf.mxu0
  %v5184 = vadd.f32 %v5165, %v5183
  %5185 = vdwg.mxu0
  %5186 = vmatpush.bf16.msra.mxu0 %v4808
  %5187 = vmatpush.bf16.msra.mxu0 %v4804
  %5188 = vmatpush.bf16.msra.mxu0 %v4800
  %5189 = vmatpush.bf16.msra.mxu0 %v4796
  %5190 = vmatpush.bf16.msra.mxu0 %v4792
  %5191 = vmatpush.bf16.msra.mxu0 %v4788
  %5192 = vmatpush.bf16.msra.mxu0 %v4784
  %5193 = vmatpush.bf16.msra.mxu0 %v4780
  %5194 = vmatmul.bf16.gmra.mxu0 %v4258
  %v5195 = vpop.f32.mrf.mxu0
  %v5196 = vadd.f32 0.0, %v5195
  %v5197 = vpop.f32.mrf.mxu0
  %v5198 = vadd.f32 0.0, %v5197
  %5199 = vmatmul.bf16.gmra.mxu0 %v4262
  %v5200 = vpop.f32.mrf.mxu0
  %v5201 = vadd.f32 0.0, %v5200
  %v5202 = vpop.f32.mrf.mxu0
  %v5203 = vadd.f32 0.0, %v5202
  %5204 = vdwg.mxu0
  %5205 = vmatpush.bf16.msra.mxu0 %v4840
  %5206 = vmatpush.bf16.msra.mxu0 %v4836
  %5207 = vmatpush.bf16.msra.mxu0 %v4832
  %5208 = vmatpush.bf16.msra.mxu0 %v4828
  %5209 = vmatpush.bf16.msra.mxu0 %v4824
  %5210 = vmatpush.bf16.msra.mxu0 %v4820
  %5211 = vmatpush.bf16.msra.mxu0 %v4816
  %5212 = vmatpush.bf16.msra.mxu0 %v4812
  %5213 = vmatmul.bf16.gmra.mxu0 %v4259
  %v5214 = vpop.f32.mrf.mxu0
  %v5215 = vadd.f32 %v5196, %v5214
  %v5216 = vpop.f32.mrf.mxu0
  %v5217 = vadd.f32 %v5198, %v5216
  %5218 = vmatmul.bf16.gmra.mxu0 %v4263
  %v5219 = vpop.f32.mrf.mxu0
  %v5220 = vadd.f32 %v5201, %v5219
  %v5221 = vpop.f32.mrf.mxu0
  %v5222 = vadd.f32 %v5203, %v5221
  %5223 = vdwg.mxu0
  %5224 = vmatpush.bf16.msra.mxu0 %v4872
  %5225 = vmatpush.bf16.msra.mxu0 %v4868
  %5226 = vmatpush.bf16.msra.mxu0 %v4864
  %5227 = vmatpush.bf16.msra.mxu0 %v4860
  %5228 = vmatpush.bf16.msra.mxu0 %v4856
  %5229 = vmatpush.bf16.msra.mxu0 %v4852
  %5230 = vmatpush.bf16.msra.mxu0 %v4848
  %5231 = vmatpush.bf16.msra.mxu0 %v4844
  %5232 = vmatmul.bf16.gmra.mxu0 %v4260
  %v5233 = vpop.f32.mrf.mxu0
  %v5234 = vadd.f32 %v5215, %v5233
  %v5235 = vpop.f32.mrf.mxu0
  %v5236 = vadd.f32 %v5217, %v5235
  %5237 = vmatmul.bf16.gmra.mxu0 %v4264
  %v5238 = vpop.f32.mrf.mxu0
  %v5239 = vadd.f32 %v5220, %v5238
  %v5240 = vpop.f32.mrf.mxu0
  %v5241 = vadd.f32 %v5222, %v5240
  %5242 = vdwg.mxu0
  %5243 = vmatpush.bf16.msra.mxu0 %v4904
  %5244 = vmatpush.bf16.msra.mxu0 %v4900
  %5245 = vmatpush.bf16.msra.mxu0 %v4896
  %5246 = vmatpush.bf16.msra.mxu0 %v4892
  %5247 = vmatpush.bf16.msra.mxu0 %v4888
  %5248 = vmatpush.bf16.msra.mxu0 %v4884
  %5249 = vmatpush.bf16.msra.mxu0 %v4880
  %5250 = vmatpush.bf16.msra.mxu0 %v4876
  %5251 = vmatmul.bf16.gmra.mxu0 %v4261
  %v5252 = vpop.f32.mrf.mxu0
  %v5253 = vadd.f32 %v5234, %v5252
  %v5254 = vpop.f32.mrf.mxu0
  %v5255 = vadd.f32 %v5236, %v5254
  %5256 = vmatmul.bf16.gmra.mxu0 %v4265
  %v5257 = vpop.f32.mrf.mxu0
  %v5258 = vadd.f32 %v5239, %v5257
  %v5259 = vpop.f32.mrf.mxu0
  %v5260 = vadd.f32 %v5241, %v5259
  %5261 = vdwg.mxu0
  %5262 = vmatpush.bf16.msra.mxu0 %v4809
  %5263 = vmatpush.bf16.msra.mxu0 %v4805
  %5264 = vmatpush.bf16.msra.mxu0 %v4801
  %5265 = vmatpush.bf16.msra.mxu0 %v4797
  %5266 = vmatpush.bf16.msra.mxu0 %v4793
  %5267 = vmatpush.bf16.msra.mxu0 %v4789
  %5268 = vmatpush.bf16.msra.mxu0 %v4785
  %5269 = vmatpush.bf16.msra.mxu0 %v4781
  %5270 = vmatmul.bf16.gmra.mxu0 %v4258
  %v5271 = vpop.f32.mrf.mxu0
  %v5272 = vadd.f32 0.0, %v5271
  %v5273 = vpop.f32.mrf.mxu0
  %v5274 = vadd.f32 0.0, %v5273
  %5275 = vmatmul.bf16.gmra.mxu0 %v4262
  %v5276 = vpop.f32.mrf.mxu0
  %v5277 = vadd.f32 0.0, %v5276
  %v5278 = vpop.f32.mrf.mxu0
  %v5279 = vadd.f32 0.0, %v5278
  %5280 = vdwg.mxu0
  %5281 = vmatpush.bf16.msra.mxu0 %v4841
  %5282 = vmatpush.bf16.msra.mxu0 %v4837
  %5283 = vmatpush.bf16.msra.mxu0 %v4833
  %5284 = vmatpush.bf16.msra.mxu0 %v4829
  %5285 = vmatpush.bf16.msra.mxu0 %v4825
  %5286 = vmatpush.bf16.msra.mxu0 %v4821
  %5287 = vmatpush.bf16.msra.mxu0 %v4817
  %5288 = vmatpush.bf16.msra.mxu0 %v4813
  %5289 = vmatmul.bf16.gmra.mxu0 %v4259
  %v5290 = vpop.f32.mrf.mxu0
  %v5291 = vadd.f32 %v5272, %v5290
  %v5292 = vpop.f32.mrf.mxu0
  %v5293 = vadd.f32 %v5274, %v5292
  %5294 = vmatmul.bf16.gmra.mxu0 %v4263
  %v5295 = vpop.f32.mrf.mxu0
  %v5296 = vadd.f32 %v5277, %v5295
  %v5297 = vpop.f32.mrf.mxu0
  %v5298 = vadd.f32 %v5279, %v5297
  %5299 = vdwg.mxu0
  %5300 = vmatpush.bf16.msra.mxu0 %v4873
  %5301 = vmatpush.bf16.msra.mxu0 %v4869
  %5302 = vmatpush.bf16.msra.mxu0 %v4865
  %5303 = vmatpush.bf16.msra.mxu0 %v4861
  %5304 = vmatpush.bf16.msra.mxu0 %v4857
  %5305 = vmatpush.bf16.msra.mxu0 %v4853
  %5306 = vmatpush.bf16.msra.mxu0 %v4849
  %5307 = vmatpush.bf16.msra.mxu0 %v4845
  %5308 = vmatmul.bf16.gmra.mxu0 %v4260
  %v5309 = vpop.f32.mrf.mxu0
  %v5310 = vadd.f32 %v5291, %v5309
  %v5311 = vpop.f32.mrf.mxu0
  %v5312 = vadd.f32 %v5293, %v5311
  %5313 = vmatmul.bf16.gmra.mxu0 %v4264
  %v5314 = vpop.f32.mrf.mxu0
  %v5315 = vadd.f32 %v5296, %v5314
  %v5316 = vpop.f32.mrf.mxu0
  %v5317 = vadd.f32 %v5298, %v5316
  %5318 = vdwg.mxu0
  %5319 = vmatpush.bf16.msra.mxu0 %v4905
  %5320 = vmatpush.bf16.msra.mxu0 %v4901
  %5321 = vmatpush.bf16.msra.mxu0 %v4897
  %5322 = vmatpush.bf16.msra.mxu0 %v4893
  %5323 = vmatpush.bf16.msra.mxu0 %v4889
  %5324 = vmatpush.bf16.msra.mxu0 %v4885
  %5325 = vmatpush.bf16.msra.mxu0 %v4881
  %5326 = vmatpush.bf16.msra.mxu0 %v4877
  %5327 = vmatmul.bf16.gmra.mxu0 %v4261
  %v5328 = vpop.f32.mrf.mxu0
  %v5329 = vadd.f32 %v5310, %v5328
  %v5330 = vpop.f32.mrf.mxu0
  %v5331 = vadd.f32 %v5312, %v5330
  %5332 = vmatmul.bf16.gmra.mxu0 %v4265
  %v5333 = vpop.f32.mrf.mxu0
  %v5334 = vadd.f32 %v5315, %v5333
  %v5335 = vpop.f32.mrf.mxu0
  %v5336 = vadd.f32 %v5317, %v5335
  %5337 = vdwg.mxu0
  %v5338 = vadd.f32 %v4185, %v5101
  %v5339 = vadd.f32 %v4186, %v5177
  %v5340 = vadd.f32 %v4187, %v5253
  %v5341 = vadd.f32 %v4188, %v5329
  %v5342 = vadd.f32 %v4189, %v5103
  %v5343 = vadd.f32 %v4190, %v5179
  %v5344 = vadd.f32 %v4191, %v5255
  %v5345 = vadd.f32 %v4192, %v5331
  %v5346 = vadd.f32 %v4193, %v5106
  %v5347 = vadd.f32 %v4194, %v5182
  %v5348 = vadd.f32 %v4195, %v5258
  %v5349 = vadd.f32 %v4196, %v5334
  %v5350 = vadd.f32 %v4197, %v5108
  %v5351 = vadd.f32 %v4198, %v5184
  %v5352 = vadd.f32 %v4199, %v5260
  %v5353 = vadd.f32 %v4200, %v5336
  %vm5354 = vcmask 1043456
  %v5355 = vrot.slane %v735, 4
  %v5356 = vrot.slane %v716, 4
  %v5357 = vsel %vm5354, %v5355, %v5356
  %v5358 = vrot.slane %v736, 4
  %v5359 = vrot.slane %v718, 4
  %v5360 = vsel %vm5354, %v5358, %v5359
  %v5361 = vrot.slane %v737, 4
  %v5362 = vrot.slane %v720, 4
  %v5363 = vsel %vm5354, %v5361, %v5362
  %v5364 = vrot.slane %v738, 4
  %v5365 = vrot.slane %v722, 4
  %v5366 = vsel %vm5354, %v5364, %v5365
  %v5367 = vrot.slane %v739, 4
  %v5368 = vsel %vm5354, %v5356, %v5367
  %v5369 = vrot.slane %v740, 4
  %v5370 = vsel %vm5354, %v5359, %v5369
  %v5371 = vrot.slane %v741, 4
  %v5372 = vsel %vm5354, %v5362, %v5371
  %v5373 = vrot.slane %v742, 4
  %v5374 = vsel %vm5354, %v5365, %v5373
  %v5383 = vrot.slane %v775, 4
  %v5384 = vrot.slane %v756, 4
  %v5385 = vsel %vm5354, %v5383, %v5384
  %v5386 = vrot.slane %v776, 4
  %v5387 = vrot.slane %v758, 4
  %v5388 = vsel %vm5354, %v5386, %v5387
  %v5389 = vrot.slane %v777, 4
  %v5390 = vrot.slane %v760, 4
  %v5391 = vsel %vm5354, %v5389, %v5390
  %v5392 = vrot.slane %v778, 4
  %v5393 = vrot.slane %v762, 4
  %v5394 = vsel %vm5354, %v5392, %v5393
  %v5395 = vrot.slane %v779, 4
  %v5396 = vsel %vm5354, %v5384, %v5395
  %v5397 = vrot.slane %v780, 4
  %v5398 = vsel %vm5354, %v5387, %v5397
  %v5399 = vrot.slane %v781, 4
  %v5400 = vsel %vm5354, %v5390, %v5399
  %v5401 = vrot.slane %v782, 4
  %v5402 = vsel %vm5354, %v5393, %v5401
  %v5411 = vpack.c.bf16 %v5368, %v5357
  %v5412 = vpack.c.bf16 %v5370, %v5360
  %v5413 = vpack.c.bf16 %v5372, %v5363
  %v5414 = vpack.c.bf16 %v5374, %v5366
  %v5415 = vpack.c.bf16 %v5396, %v5385
  %v5416 = vpack.c.bf16 %v5398, %v5388
  %v5417 = vpack.c.bf16 %v5400, %v5391
  %v5418 = vpack.c.bf16 %v5402, %v5394
  %v5419 = vld [vmem:[%s2 + $0x1000] sm:$0xff]
  %v5420 = vld [vmem:[%s2 + $0x1008] sm:$0xff]
  %v5421 = vld [vmem:[%s2 + $0x1010] sm:$0xff]
  %v5422 = vld [vmem:[%s2 + $0x1018] sm:$0xff]
  %v5423 = vld [vmem:[%s2 + $0x1020] sm:$0xff]
  %v5424 = vld [vmem:[%s2 + $0x1028] sm:$0xff]
  %v5425 = vld [vmem:[%s2 + $0x1030] sm:$0xff]
  %v5426 = vld [vmem:[%s2 + $0x1038] sm:$0xff]
  %v5427 = vld [vmem:[%s2 + $0x1040] sm:$0xff]
  %v5428 = vld [vmem:[%s2 + $0x1048] sm:$0xff]
  %v5429 = vld [vmem:[%s2 + $0x1050] sm:$0xff]
  %v5430 = vld [vmem:[%s2 + $0x1058] sm:$0xff]
  %v5431 = vld [vmem:[%s2 + $0x1060] sm:$0xff]
  %v5432 = vld [vmem:[%s2 + $0x1068] sm:$0xff]
  %v5433 = vld [vmem:[%s2 + $0x1070] sm:$0xff]
  %v5434 = vld [vmem:[%s2 + $0x1078] sm:$0xff]
  %v5435 = vld [vmem:[%s2 + $0x1080] sm:$0xff]
  %v5436 = vld [vmem:[%s2 + $0x1088] sm:$0xff]
  %v5437 = vld [vmem:[%s2 + $0x1090] sm:$0xff]
  %v5438 = vld [vmem:[%s2 + $0x1098] sm:$0xff]
  %v5439 = vld [vmem:[%s2 + $0x10a0] sm:$0xff]
  %v5440 = vld [vmem:[%s2 + $0x10a8] sm:$0xff]
  %v5441 = vld [vmem:[%s2 + $0x10b0] sm:$0xff]
  %v5442 = vld [vmem:[%s2 + $0x10b8] sm:$0xff]
  %v5443 = vld [vmem:[%s2 + $0x10c0] sm:$0xff]
  %v5444 = vld [vmem:[%s2 + $0x10c8] sm:$0xff]
  %v5445 = vld [vmem:[%s2 + $0x10d0] sm:$0xff]
  %v5446 = vld [vmem:[%s2 + $0x10d8] sm:$0xff]
  %v5447 = vld [vmem:[%s2 + $0x10e0] sm:$0xff]
  %v5448 = vld [vmem:[%s2 + $0x10e8] sm:$0xff]
  %v5449 = vld [vmem:[%s2 + $0x10f0] sm:$0xff]
  %v5450 = vld [vmem:[%s2 + $0x10f8] sm:$0xff]
  %v5451 = vld [vmem:[%s2 + $0x1100] sm:$0xff]
  %v5452 = vld [vmem:[%s2 + $0x1108] sm:$0xff]
  %v5453 = vld [vmem:[%s2 + $0x1110] sm:$0xff]
  %v5454 = vld [vmem:[%s2 + $0x1118] sm:$0xff]
  %v5455 = vld [vmem:[%s2 + $0x1120] sm:$0xff]
  %v5456 = vld [vmem:[%s2 + $0x1128] sm:$0xff]
  %v5457 = vld [vmem:[%s2 + $0x1130] sm:$0xff]
  %v5458 = vld [vmem:[%s2 + $0x1138] sm:$0xff]
  %v5459 = vld [vmem:[%s2 + $0x1140] sm:$0xff]
  %v5460 = vld [vmem:[%s2 + $0x1148] sm:$0xff]
  %v5461 = vld [vmem:[%s2 + $0x1150] sm:$0xff]
  %v5462 = vld [vmem:[%s2 + $0x1158] sm:$0xff]
  %v5463 = vld [vmem:[%s2 + $0x1160] sm:$0xff]
  %v5464 = vld [vmem:[%s2 + $0x1168] sm:$0xff]
  %v5465 = vld [vmem:[%s2 + $0x1170] sm:$0xff]
  %v5466 = vld [vmem:[%s2 + $0x1178] sm:$0xff]
  %v5467 = vld [vmem:[%s2 + $0x1180] sm:$0xff]
  %v5468 = vld [vmem:[%s2 + $0x1188] sm:$0xff]
  %v5469 = vld [vmem:[%s2 + $0x1190] sm:$0xff]
  %v5470 = vld [vmem:[%s2 + $0x1198] sm:$0xff]
  %v5471 = vld [vmem:[%s2 + $0x11a0] sm:$0xff]
  %v5472 = vld [vmem:[%s2 + $0x11a8] sm:$0xff]
  %v5473 = vld [vmem:[%s2 + $0x11b0] sm:$0xff]
  %v5474 = vld [vmem:[%s2 + $0x11b8] sm:$0xff]
  %v5475 = vld [vmem:[%s2 + $0x11c0] sm:$0xff]
  %v5476 = vld [vmem:[%s2 + $0x11c8] sm:$0xff]
  %v5477 = vld [vmem:[%s2 + $0x11d0] sm:$0xff]
  %v5478 = vld [vmem:[%s2 + $0x11d8] sm:$0xff]
  %v5479 = vld [vmem:[%s2 + $0x11e0] sm:$0xff]
  %v5480 = vld [vmem:[%s2 + $0x11e8] sm:$0xff]
  %v5481 = vld [vmem:[%s2 + $0x11f0] sm:$0xff]
  %v5482 = vld [vmem:[%s2 + $0x11f8] sm:$0xff]
  %v5483 = vld [vmem:[%s2 + $0x1200] sm:$0xff]
  %v5484 = vld [vmem:[%s2 + $0x1208] sm:$0xff]
  %v5485 = vld [vmem:[%s2 + $0x1210] sm:$0xff]
  %v5486 = vld [vmem:[%s2 + $0x1218] sm:$0xff]
  %v5487 = vld [vmem:[%s2 + $0x1220] sm:$0xff]
  %v5488 = vld [vmem:[%s2 + $0x1228] sm:$0xff]
  %v5489 = vld [vmem:[%s2 + $0x1230] sm:$0xff]
  %v5490 = vld [vmem:[%s2 + $0x1238] sm:$0xff]
  %v5491 = vld [vmem:[%s2 + $0x1240] sm:$0xff]
  %v5492 = vld [vmem:[%s2 + $0x1248] sm:$0xff]
  %v5493 = vld [vmem:[%s2 + $0x1250] sm:$0xff]
  %v5494 = vld [vmem:[%s2 + $0x1258] sm:$0xff]
  %v5495 = vld [vmem:[%s2 + $0x1260] sm:$0xff]
  %v5496 = vld [vmem:[%s2 + $0x1268] sm:$0xff]
  %v5497 = vld [vmem:[%s2 + $0x1270] sm:$0xff]
  %v5498 = vld [vmem:[%s2 + $0x1278] sm:$0xff]
  %v5499 = vld [vmem:[%s2 + $0x1280] sm:$0xff]
  %v5500 = vld [vmem:[%s2 + $0x1288] sm:$0xff]
  %v5501 = vld [vmem:[%s2 + $0x1290] sm:$0xff]
  %v5502 = vld [vmem:[%s2 + $0x1298] sm:$0xff]
  %v5503 = vld [vmem:[%s2 + $0x12a0] sm:$0xff]
  %v5504 = vld [vmem:[%s2 + $0x12a8] sm:$0xff]
  %v5505 = vld [vmem:[%s2 + $0x12b0] sm:$0xff]
  %v5506 = vld [vmem:[%s2 + $0x12b8] sm:$0xff]
  %v5507 = vld [vmem:[%s2 + $0x12c0] sm:$0xff]
  %v5508 = vld [vmem:[%s2 + $0x12c8] sm:$0xff]
  %v5509 = vld [vmem:[%s2 + $0x12d0] sm:$0xff]
  %v5510 = vld [vmem:[%s2 + $0x12d8] sm:$0xff]
  %v5511 = vld [vmem:[%s2 + $0x12e0] sm:$0xff]
  %v5512 = vld [vmem:[%s2 + $0x12e8] sm:$0xff]
  %v5513 = vld [vmem:[%s2 + $0x12f0] sm:$0xff]
  %v5514 = vld [vmem:[%s2 + $0x12f8] sm:$0xff]
  %v5515 = vld [vmem:[%s2 + $0x1300] sm:$0xff]
  %v5516 = vld [vmem:[%s2 + $0x1308] sm:$0xff]
  %v5517 = vld [vmem:[%s2 + $0x1310] sm:$0xff]
  %v5518 = vld [vmem:[%s2 + $0x1318] sm:$0xff]
  %v5519 = vld [vmem:[%s2 + $0x1320] sm:$0xff]
  %v5520 = vld [vmem:[%s2 + $0x1328] sm:$0xff]
  %v5521 = vld [vmem:[%s2 + $0x1330] sm:$0xff]
  %v5522 = vld [vmem:[%s2 + $0x1338] sm:$0xff]
  %v5523 = vld [vmem:[%s2 + $0x1340] sm:$0xff]
  %v5524 = vld [vmem:[%s2 + $0x1348] sm:$0xff]
  %v5525 = vld [vmem:[%s2 + $0x1350] sm:$0xff]
  %v5526 = vld [vmem:[%s2 + $0x1358] sm:$0xff]
  %v5527 = vld [vmem:[%s2 + $0x1360] sm:$0xff]
  %v5528 = vld [vmem:[%s2 + $0x1368] sm:$0xff]
  %v5529 = vld [vmem:[%s2 + $0x1370] sm:$0xff]
  %v5530 = vld [vmem:[%s2 + $0x1378] sm:$0xff]
  %v5531 = vld [vmem:[%s2 + $0x1380] sm:$0xff]
  %v5532 = vld [vmem:[%s2 + $0x1388] sm:$0xff]
  %v5533 = vld [vmem:[%s2 + $0x1390] sm:$0xff]
  %v5534 = vld [vmem:[%s2 + $0x1398] sm:$0xff]
  %v5535 = vld [vmem:[%s2 + $0x13a0] sm:$0xff]
  %v5536 = vld [vmem:[%s2 + $0x13a8] sm:$0xff]
  %v5537 = vld [vmem:[%s2 + $0x13b0] sm:$0xff]
  %v5538 = vld [vmem:[%s2 + $0x13b8] sm:$0xff]
  %v5539 = vld [vmem:[%s2 + $0x13c0] sm:$0xff]
  %v5540 = vld [vmem:[%s2 + $0x13c8] sm:$0xff]
  %v5541 = vld [vmem:[%s2 + $0x13d0] sm:$0xff]
  %v5542 = vld [vmem:[%s2 + $0x13d8] sm:$0xff]
  %v5543 = vld [vmem:[%s2 + $0x13e0] sm:$0xff]
  %v5544 = vld [vmem:[%s2 + $0x13e8] sm:$0xff]
  %v5545 = vld [vmem:[%s2 + $0x13f0] sm:$0xff]
  %v5546 = vld [vmem:[%s2 + $0x13f8] sm:$0xff]
  %v5675 = vunpack.c.l.b16 %v5419
  %v5676 = vunpack.c.h.b16 %v5419
  %v5677 = vunpack.c.l.b16 %v5420
  %v5678 = vunpack.c.h.b16 %v5420
  %v5679 = vunpack.c.l.b16 %v5421
  %v5680 = vunpack.c.h.b16 %v5421
  %v5681 = vunpack.c.l.b16 %v5422
  %v5682 = vunpack.c.h.b16 %v5422
  %v5683 = vunpack.c.l.b16 %v5423
  %v5684 = vunpack.c.h.b16 %v5423
  %v5685 = vunpack.c.l.b16 %v5424
  %v5686 = vunpack.c.h.b16 %v5424
  %v5687 = vunpack.c.l.b16 %v5425
  %v5688 = vunpack.c.h.b16 %v5425
  %v5689 = vunpack.c.l.b16 %v5426
  %v5690 = vunpack.c.h.b16 %v5426
  %v5691 = vunpack.c.l.b16 %v5427
  %v5692 = vunpack.c.h.b16 %v5427
  %v5693 = vunpack.c.l.b16 %v5428
  %v5694 = vunpack.c.h.b16 %v5428
  %v5695 = vunpack.c.l.b16 %v5429
  %v5696 = vunpack.c.h.b16 %v5429
  %v5697 = vunpack.c.l.b16 %v5430
  %v5698 = vunpack.c.h.b16 %v5430
  %v5699 = vunpack.c.l.b16 %v5431
  %v5700 = vunpack.c.h.b16 %v5431
  %v5701 = vunpack.c.l.b16 %v5432
  %v5702 = vunpack.c.h.b16 %v5432
  %v5703 = vunpack.c.l.b16 %v5433
  %v5704 = vunpack.c.h.b16 %v5433
  %v5705 = vunpack.c.l.b16 %v5434
  %v5706 = vunpack.c.h.b16 %v5434
  %v5707 = vunpack.c.l.b16 %v5435
  %v5708 = vunpack.c.h.b16 %v5435
  %v5709 = vunpack.c.l.b16 %v5436
  %v5710 = vunpack.c.h.b16 %v5436
  %v5711 = vunpack.c.l.b16 %v5437
  %v5712 = vunpack.c.h.b16 %v5437
  %v5713 = vunpack.c.l.b16 %v5438
  %v5714 = vunpack.c.h.b16 %v5438
  %v5715 = vunpack.c.l.b16 %v5439
  %v5716 = vunpack.c.h.b16 %v5439
  %v5717 = vunpack.c.l.b16 %v5440
  %v5718 = vunpack.c.h.b16 %v5440
  %v5719 = vunpack.c.l.b16 %v5441
  %v5720 = vunpack.c.h.b16 %v5441
  %v5721 = vunpack.c.l.b16 %v5442
  %v5722 = vunpack.c.h.b16 %v5442
  %v5723 = vunpack.c.l.b16 %v5443
  %v5724 = vunpack.c.h.b16 %v5443
  %v5725 = vunpack.c.l.b16 %v5444
  %v5726 = vunpack.c.h.b16 %v5444
  %v5727 = vunpack.c.l.b16 %v5445
  %v5728 = vunpack.c.h.b16 %v5445
  %v5729 = vunpack.c.l.b16 %v5446
  %v5730 = vunpack.c.h.b16 %v5446
  %v5731 = vunpack.c.l.b16 %v5447
  %v5732 = vunpack.c.h.b16 %v5447
  %v5733 = vunpack.c.l.b16 %v5448
  %v5734 = vunpack.c.h.b16 %v5448
  %v5735 = vunpack.c.l.b16 %v5449
  %v5736 = vunpack.c.h.b16 %v5449
  %v5737 = vunpack.c.l.b16 %v5450
  %v5738 = vunpack.c.h.b16 %v5450
  %v5739 = vunpack.c.l.b16 %v5451
  %v5740 = vunpack.c.h.b16 %v5451
  %v5741 = vunpack.c.l.b16 %v5452
  %v5742 = vunpack.c.h.b16 %v5452
  %v5743 = vunpack.c.l.b16 %v5453
  %v5744 = vunpack.c.h.b16 %v5453
  %v5745 = vunpack.c.l.b16 %v5454
  %v5746 = vunpack.c.h.b16 %v5454
  %v5747 = vunpack.c.l.b16 %v5455
  %v5748 = vunpack.c.h.b16 %v5455
  %v5749 = vunpack.c.l.b16 %v5456
  %v5750 = vunpack.c.h.b16 %v5456
  %v5751 = vunpack.c.l.b16 %v5457
  %v5752 = vunpack.c.h.b16 %v5457
  %v5753 = vunpack.c.l.b16 %v5458
  %v5754 = vunpack.c.h.b16 %v5458
  %v5755 = vunpack.c.l.b16 %v5459
  %v5756 = vunpack.c.h.b16 %v5459
  %v5757 = vunpack.c.l.b16 %v5460
  %v5758 = vunpack.c.h.b16 %v5460
  %v5759 = vunpack.c.l.b16 %v5461
  %v5760 = vunpack.c.h.b16 %v5461
  %v5761 = vunpack.c.l.b16 %v5462
  %v5762 = vunpack.c.h.b16 %v5462
  %v5763 = vunpack.c.l.b16 %v5463
  %v5764 = vunpack.c.h.b16 %v5463
  %v5765 = vunpack.c.l.b16 %v5464
  %v5766 = vunpack.c.h.b16 %v5464
  %v5767 = vunpack.c.l.b16 %v5465
  %v5768 = vunpack.c.h.b16 %v5465
  %v5769 = vunpack.c.l.b16 %v5466
  %v5770 = vunpack.c.h.b16 %v5466
  %v5771 = vunpack.c.l.b16 %v5467
  %v5772 = vunpack.c.h.b16 %v5467
  %v5773 = vunpack.c.l.b16 %v5468
  %v5774 = vunpack.c.h.b16 %v5468
  %v5775 = vunpack.c.l.b16 %v5469
  %v5776 = vunpack.c.h.b16 %v5469
  %v5777 = vunpack.c.l.b16 %v5470
  %v5778 = vunpack.c.h.b16 %v5470
  %v5779 = vunpack.c.l.b16 %v5471
  %v5780 = vunpack.c.h.b16 %v5471
  %v5781 = vunpack.c.l.b16 %v5472
  %v5782 = vunpack.c.h.b16 %v5472
  %v5783 = vunpack.c.l.b16 %v5473
  %v5784 = vunpack.c.h.b16 %v5473
  %v5785 = vunpack.c.l.b16 %v5474
  %v5786 = vunpack.c.h.b16 %v5474
  %v5787 = vunpack.c.l.b16 %v5475
  %v5788 = vunpack.c.h.b16 %v5475
  %v5789 = vunpack.c.l.b16 %v5476
  %v5790 = vunpack.c.h.b16 %v5476
  %v5791 = vunpack.c.l.b16 %v5477
  %v5792 = vunpack.c.h.b16 %v5477
  %v5793 = vunpack.c.l.b16 %v5478
  %v5794 = vunpack.c.h.b16 %v5478
  %v5795 = vunpack.c.l.b16 %v5479
  %v5796 = vunpack.c.h.b16 %v5479
  %v5797 = vunpack.c.l.b16 %v5480
  %v5798 = vunpack.c.h.b16 %v5480
  %v5799 = vunpack.c.l.b16 %v5481
  %v5800 = vunpack.c.h.b16 %v5481
  %v5801 = vunpack.c.l.b16 %v5482
  %v5802 = vunpack.c.h.b16 %v5482
  %v5803 = vunpack.c.l.b16 %v5483
  %v5804 = vunpack.c.h.b16 %v5483
  %v5805 = vunpack.c.l.b16 %v5484
  %v5806 = vunpack.c.h.b16 %v5484
  %v5807 = vunpack.c.l.b16 %v5485
  %v5808 = vunpack.c.h.b16 %v5485
  %v5809 = vunpack.c.l.b16 %v5486
  %v5810 = vunpack.c.h.b16 %v5486
  %v5811 = vunpack.c.l.b16 %v5487
  %v5812 = vunpack.c.h.b16 %v5487
  %v5813 = vunpack.c.l.b16 %v5488
  %v5814 = vunpack.c.h.b16 %v5488
  %v5815 = vunpack.c.l.b16 %v5489
  %v5816 = vunpack.c.h.b16 %v5489
  %v5817 = vunpack.c.l.b16 %v5490
  %v5818 = vunpack.c.h.b16 %v5490
  %v5819 = vunpack.c.l.b16 %v5491
  %v5820 = vunpack.c.h.b16 %v5491
  %v5821 = vunpack.c.l.b16 %v5492
  %v5822 = vunpack.c.h.b16 %v5492
  %v5823 = vunpack.c.l.b16 %v5493
  %v5824 = vunpack.c.h.b16 %v5493
  %v5825 = vunpack.c.l.b16 %v5494
  %v5826 = vunpack.c.h.b16 %v5494
  %v5827 = vunpack.c.l.b16 %v5495
  %v5828 = vunpack.c.h.b16 %v5495
  %v5829 = vunpack.c.l.b16 %v5496
  %v5830 = vunpack.c.h.b16 %v5496
  %v5831 = vunpack.c.l.b16 %v5497
  %v5832 = vunpack.c.h.b16 %v5497
  %v5833 = vunpack.c.l.b16 %v5498
  %v5834 = vunpack.c.h.b16 %v5498
  %v5835 = vunpack.c.l.b16 %v5499
  %v5836 = vunpack.c.h.b16 %v5499
  %v5837 = vunpack.c.l.b16 %v5500
  %v5838 = vunpack.c.h.b16 %v5500
  %v5839 = vunpack.c.l.b16 %v5501
  %v5840 = vunpack.c.h.b16 %v5501
  %v5841 = vunpack.c.l.b16 %v5502
  %v5842 = vunpack.c.h.b16 %v5502
  %v5843 = vunpack.c.l.b16 %v5503
  %v5844 = vunpack.c.h.b16 %v5503
  %v5845 = vunpack.c.l.b16 %v5504
  %v5846 = vunpack.c.h.b16 %v5504
  %v5847 = vunpack.c.l.b16 %v5505
  %v5848 = vunpack.c.h.b16 %v5505
  %v5849 = vunpack.c.l.b16 %v5506
  %v5850 = vunpack.c.h.b16 %v5506
  %v5851 = vunpack.c.l.b16 %v5507
  %v5852 = vunpack.c.h.b16 %v5507
  %v5853 = vunpack.c.l.b16 %v5508
  %v5854 = vunpack.c.h.b16 %v5508
  %v5855 = vunpack.c.l.b16 %v5509
  %v5856 = vunpack.c.h.b16 %v5509
  %v5857 = vunpack.c.l.b16 %v5510
  %v5858 = vunpack.c.h.b16 %v5510
  %v5859 = vunpack.c.l.b16 %v5511
  %v5860 = vunpack.c.h.b16 %v5511
  %v5861 = vunpack.c.l.b16 %v5512
  %v5862 = vunpack.c.h.b16 %v5512
  %v5863 = vunpack.c.l.b16 %v5513
  %v5864 = vunpack.c.h.b16 %v5513
  %v5865 = vunpack.c.l.b16 %v5514
  %v5866 = vunpack.c.h.b16 %v5514
  %v5867 = vunpack.c.l.b16 %v5515
  %v5868 = vunpack.c.h.b16 %v5515
  %v5869 = vunpack.c.l.b16 %v5516
  %v5870 = vunpack.c.h.b16 %v5516
  %v5871 = vunpack.c.l.b16 %v5517
  %v5872 = vunpack.c.h.b16 %v5517
  %v5873 = vunpack.c.l.b16 %v5518
  %v5874 = vunpack.c.h.b16 %v5518
  %v5875 = vunpack.c.l.b16 %v5519
  %v5876 = vunpack.c.h.b16 %v5519
  %v5877 = vunpack.c.l.b16 %v5520
  %v5878 = vunpack.c.h.b16 %v5520
  %v5879 = vunpack.c.l.b16 %v5521
  %v5880 = vunpack.c.h.b16 %v5521
  %v5881 = vunpack.c.l.b16 %v5522
  %v5882 = vunpack.c.h.b16 %v5522
  %v5883 = vunpack.c.l.b16 %v5523
  %v5884 = vunpack.c.h.b16 %v5523
  %v5885 = vunpack.c.l.b16 %v5524
  %v5886 = vunpack.c.h.b16 %v5524
  %v5887 = vunpack.c.l.b16 %v5525
  %v5888 = vunpack.c.h.b16 %v5525
  %v5889 = vunpack.c.l.b16 %v5526
  %v5890 = vunpack.c.h.b16 %v5526
  %v5891 = vunpack.c.l.b16 %v5527
  %v5892 = vunpack.c.h.b16 %v5527
  %v5893 = vunpack.c.l.b16 %v5528
  %v5894 = vunpack.c.h.b16 %v5528
  %v5895 = vunpack.c.l.b16 %v5529
  %v5896 = vunpack.c.h.b16 %v5529
  %v5897 = vunpack.c.l.b16 %v5530
  %v5898 = vunpack.c.h.b16 %v5530
  %v5899 = vunpack.c.l.b16 %v5531
  %v5900 = vunpack.c.h.b16 %v5531
  %v5901 = vunpack.c.l.b16 %v5532
  %v5902 = vunpack.c.h.b16 %v5532
  %v5903 = vunpack.c.l.b16 %v5533
  %v5904 = vunpack.c.h.b16 %v5533
  %v5905 = vunpack.c.l.b16 %v5534
  %v5906 = vunpack.c.h.b16 %v5534
  %v5907 = vunpack.c.l.b16 %v5535
  %v5908 = vunpack.c.h.b16 %v5535
  %v5909 = vunpack.c.l.b16 %v5536
  %v5910 = vunpack.c.h.b16 %v5536
  %v5911 = vunpack.c.l.b16 %v5537
  %v5912 = vunpack.c.h.b16 %v5537
  %v5913 = vunpack.c.l.b16 %v5538
  %v5914 = vunpack.c.h.b16 %v5538
  %v5915 = vunpack.c.l.b16 %v5539
  %v5916 = vunpack.c.h.b16 %v5539
  %v5917 = vunpack.c.l.b16 %v5540
  %v5918 = vunpack.c.h.b16 %v5540
  %v5919 = vunpack.c.l.b16 %v5541
  %v5920 = vunpack.c.h.b16 %v5541
  %v5921 = vunpack.c.l.b16 %v5542
  %v5922 = vunpack.c.h.b16 %v5542
  %v5923 = vunpack.c.l.b16 %v5543
  %v5924 = vunpack.c.h.b16 %v5543
  %v5925 = vunpack.c.l.b16 %v5544
  %v5926 = vunpack.c.h.b16 %v5544
  %v5927 = vunpack.c.l.b16 %v5545
  %v5928 = vunpack.c.h.b16 %v5545
  %v5929 = vunpack.c.l.b16 %v5546
  %v5930 = vunpack.c.h.b16 %v5546
  %v5931 = vpack.c.b16 %v5679, %v5675
  %v5932 = vpack.c.b16 %v5680, %v5676
  %v5933 = vpack.c.b16 %v5681, %v5677
  %v5934 = vpack.c.b16 %v5682, %v5678
  %v5935 = vpack.c.b16 %v5687, %v5683
  %v5936 = vpack.c.b16 %v5688, %v5684
  %v5937 = vpack.c.b16 %v5689, %v5685
  %v5938 = vpack.c.b16 %v5690, %v5686
  %v5939 = vpack.c.b16 %v5695, %v5691
  %v5940 = vpack.c.b16 %v5696, %v5692
  %v5941 = vpack.c.b16 %v5697, %v5693
  %v5942 = vpack.c.b16 %v5698, %v5694
  %v5943 = vpack.c.b16 %v5703, %v5699
  %v5944 = vpack.c.b16 %v5704, %v5700
  %v5945 = vpack.c.b16 %v5705, %v5701
  %v5946 = vpack.c.b16 %v5706, %v5702
  %v5947 = vpack.c.b16 %v5711, %v5707
  %v5948 = vpack.c.b16 %v5712, %v5708
  %v5949 = vpack.c.b16 %v5713, %v5709
  %v5950 = vpack.c.b16 %v5714, %v5710
  %v5951 = vpack.c.b16 %v5719, %v5715
  %v5952 = vpack.c.b16 %v5720, %v5716
  %v5953 = vpack.c.b16 %v5721, %v5717
  %v5954 = vpack.c.b16 %v5722, %v5718
  %v5955 = vpack.c.b16 %v5727, %v5723
  %v5956 = vpack.c.b16 %v5728, %v5724
  %v5957 = vpack.c.b16 %v5729, %v5725
  %v5958 = vpack.c.b16 %v5730, %v5726
  %v5959 = vpack.c.b16 %v5735, %v5731
  %v5960 = vpack.c.b16 %v5736, %v5732
  %v5961 = vpack.c.b16 %v5737, %v5733
  %v5962 = vpack.c.b16 %v5738, %v5734
  %v5963 = vpack.c.b16 %v5743, %v5739
  %v5964 = vpack.c.b16 %v5744, %v5740
  %v5965 = vpack.c.b16 %v5745, %v5741
  %v5966 = vpack.c.b16 %v5746, %v5742
  %v5967 = vpack.c.b16 %v5751, %v5747
  %v5968 = vpack.c.b16 %v5752, %v5748
  %v5969 = vpack.c.b16 %v5753, %v5749
  %v5970 = vpack.c.b16 %v5754, %v5750
  %v5971 = vpack.c.b16 %v5759, %v5755
  %v5972 = vpack.c.b16 %v5760, %v5756
  %v5973 = vpack.c.b16 %v5761, %v5757
  %v5974 = vpack.c.b16 %v5762, %v5758
  %v5975 = vpack.c.b16 %v5767, %v5763
  %v5976 = vpack.c.b16 %v5768, %v5764
  %v5977 = vpack.c.b16 %v5769, %v5765
  %v5978 = vpack.c.b16 %v5770, %v5766
  %v5979 = vpack.c.b16 %v5775, %v5771
  %v5980 = vpack.c.b16 %v5776, %v5772
  %v5981 = vpack.c.b16 %v5777, %v5773
  %v5982 = vpack.c.b16 %v5778, %v5774
  %v5983 = vpack.c.b16 %v5783, %v5779
  %v5984 = vpack.c.b16 %v5784, %v5780
  %v5985 = vpack.c.b16 %v5785, %v5781
  %v5986 = vpack.c.b16 %v5786, %v5782
  %v5987 = vpack.c.b16 %v5791, %v5787
  %v5988 = vpack.c.b16 %v5792, %v5788
  %v5989 = vpack.c.b16 %v5793, %v5789
  %v5990 = vpack.c.b16 %v5794, %v5790
  %v5991 = vpack.c.b16 %v5799, %v5795
  %v5992 = vpack.c.b16 %v5800, %v5796
  %v5993 = vpack.c.b16 %v5801, %v5797
  %v5994 = vpack.c.b16 %v5802, %v5798
  %v5995 = vpack.c.b16 %v5807, %v5803
  %v5996 = vpack.c.b16 %v5808, %v5804
  %v5997 = vpack.c.b16 %v5809, %v5805
  %v5998 = vpack.c.b16 %v5810, %v5806
  %v5999 = vpack.c.b16 %v5815, %v5811
  %v6000 = vpack.c.b16 %v5816, %v5812
  %v6001 = vpack.c.b16 %v5817, %v5813
  %v6002 = vpack.c.b16 %v5818, %v5814
  %v6003 = vpack.c.b16 %v5823, %v5819
  %v6004 = vpack.c.b16 %v5824, %v5820
  %v6005 = vpack.c.b16 %v5825, %v5821
  %v6006 = vpack.c.b16 %v5826, %v5822
  %v6007 = vpack.c.b16 %v5831, %v5827
  %v6008 = vpack.c.b16 %v5832, %v5828
  %v6009 = vpack.c.b16 %v5833, %v5829
  %v6010 = vpack.c.b16 %v5834, %v5830
  %v6011 = vpack.c.b16 %v5839, %v5835
  %v6012 = vpack.c.b16 %v5840, %v5836
  %v6013 = vpack.c.b16 %v5841, %v5837
  %v6014 = vpack.c.b16 %v5842, %v5838
  %v6015 = vpack.c.b16 %v5847, %v5843
  %v6016 = vpack.c.b16 %v5848, %v5844
  %v6017 = vpack.c.b16 %v5849, %v5845
  %v6018 = vpack.c.b16 %v5850, %v5846
  %v6019 = vpack.c.b16 %v5855, %v5851
  %v6020 = vpack.c.b16 %v5856, %v5852
  %v6021 = vpack.c.b16 %v5857, %v5853
  %v6022 = vpack.c.b16 %v5858, %v5854
  %v6023 = vpack.c.b16 %v5863, %v5859
  %v6024 = vpack.c.b16 %v5864, %v5860
  %v6025 = vpack.c.b16 %v5865, %v5861
  %v6026 = vpack.c.b16 %v5866, %v5862
  %v6027 = vpack.c.b16 %v5871, %v5867
  %v6028 = vpack.c.b16 %v5872, %v5868
  %v6029 = vpack.c.b16 %v5873, %v5869
  %v6030 = vpack.c.b16 %v5874, %v5870
  %v6031 = vpack.c.b16 %v5879, %v5875
  %v6032 = vpack.c.b16 %v5880, %v5876
  %v6033 = vpack.c.b16 %v5881, %v5877
  %v6034 = vpack.c.b16 %v5882, %v5878
  %v6035 = vpack.c.b16 %v5887, %v5883
  %v6036 = vpack.c.b16 %v5888, %v5884
  %v6037 = vpack.c.b16 %v5889, %v5885
  %v6038 = vpack.c.b16 %v5890, %v5886
  %v6039 = vpack.c.b16 %v5895, %v5891
  %v6040 = vpack.c.b16 %v5896, %v5892
  %v6041 = vpack.c.b16 %v5897, %v5893
  %v6042 = vpack.c.b16 %v5898, %v5894
  %v6043 = vpack.c.b16 %v5903, %v5899
  %v6044 = vpack.c.b16 %v5904, %v5900
  %v6045 = vpack.c.b16 %v5905, %v5901
  %v6046 = vpack.c.b16 %v5906, %v5902
  %v6047 = vpack.c.b16 %v5911, %v5907
  %v6048 = vpack.c.b16 %v5912, %v5908
  %v6049 = vpack.c.b16 %v5913, %v5909
  %v6050 = vpack.c.b16 %v5914, %v5910
  %v6051 = vpack.c.b16 %v5919, %v5915
  %v6052 = vpack.c.b16 %v5920, %v5916
  %v6053 = vpack.c.b16 %v5921, %v5917
  %v6054 = vpack.c.b16 %v5922, %v5918
  %v6055 = vpack.c.b16 %v5927, %v5923
  %v6056 = vpack.c.b16 %v5928, %v5924
  %v6057 = vpack.c.b16 %v5929, %v5925
  %v6058 = vpack.c.b16 %v5930, %v5926
  %6187 = vmatpush.bf16.msra.mxu0 %v5959
  %6188 = vmatpush.bf16.msra.mxu0 %v5955
  %6189 = vmatpush.bf16.msra.mxu0 %v5951
  %6190 = vmatpush.bf16.msra.mxu0 %v5947
  %6191 = vmatpush.bf16.msra.mxu0 %v5943
  %6192 = vmatpush.bf16.msra.mxu0 %v5939
  %6193 = vmatpush.bf16.msra.mxu0 %v5935
  %6194 = vmatpush.bf16.msra.mxu0 %v5931
  %6195 = vmatmul.bf16.gmra.mxu0 %v5411
  %v6196 = vpop.f32.mrf.mxu0
  %v6197 = vadd.f32 0.0, %v6196
  %v6198 = vpop.f32.mrf.mxu0
  %v6199 = vadd.f32 0.0, %v6198
  %6200 = vmatmul.bf16.gmra.mxu0 %v5415
  %v6201 = vpop.f32.mrf.mxu0
  %v6202 = vadd.f32 0.0, %v6201
  %v6203 = vpop.f32.mrf.mxu0
  %v6204 = vadd.f32 0.0, %v6203
  %6205 = vdwg.mxu0
  %6206 = vmatpush.bf16.msra.mxu0 %v5991
  %6207 = vmatpush.bf16.msra.mxu0 %v5987
  %6208 = vmatpush.bf16.msra.mxu0 %v5983
  %6209 = vmatpush.bf16.msra.mxu0 %v5979
  %6210 = vmatpush.bf16.msra.mxu0 %v5975
  %6211 = vmatpush.bf16.msra.mxu0 %v5971
  %6212 = vmatpush.bf16.msra.mxu0 %v5967
  %6213 = vmatpush.bf16.msra.mxu0 %v5963
  %6214 = vmatmul.bf16.gmra.mxu0 %v5412
  %v6215 = vpop.f32.mrf.mxu0
  %v6216 = vadd.f32 %v6197, %v6215
  %v6217 = vpop.f32.mrf.mxu0
  %v6218 = vadd.f32 %v6199, %v6217
  %6219 = vmatmul.bf16.gmra.mxu0 %v5416
  %v6220 = vpop.f32.mrf.mxu0
  %v6221 = vadd.f32 %v6202, %v6220
  %v6222 = vpop.f32.mrf.mxu0
  %v6223 = vadd.f32 %v6204, %v6222
  %6224 = vdwg.mxu0
  %6225 = vmatpush.bf16.msra.mxu0 %v6023
  %6226 = vmatpush.bf16.msra.mxu0 %v6019
  %6227 = vmatpush.bf16.msra.mxu0 %v6015
  %6228 = vmatpush.bf16.msra.mxu0 %v6011
  %6229 = vmatpush.bf16.msra.mxu0 %v6007
  %6230 = vmatpush.bf16.msra.mxu0 %v6003
  %6231 = vmatpush.bf16.msra.mxu0 %v5999
  %6232 = vmatpush.bf16.msra.mxu0 %v5995
  %6233 = vmatmul.bf16.gmra.mxu0 %v5413
  %v6234 = vpop.f32.mrf.mxu0
  %v6235 = vadd.f32 %v6216, %v6234
  %v6236 = vpop.f32.mrf.mxu0
  %v6237 = vadd.f32 %v6218, %v6236
  %6238 = vmatmul.bf16.gmra.mxu0 %v5417
  %v6239 = vpop.f32.mrf.mxu0
  %v6240 = vadd.f32 %v6221, %v6239
  %v6241 = vpop.f32.mrf.mxu0
  %v6242 = vadd.f32 %v6223, %v6241
  %6243 = vdwg.mxu0
  %6244 = vmatpush.bf16.msra.mxu0 %v6055
  %6245 = vmatpush.bf16.msra.mxu0 %v6051
  %6246 = vmatpush.bf16.msra.mxu0 %v6047
  %6247 = vmatpush.bf16.msra.mxu0 %v6043
  %6248 = vmatpush.bf16.msra.mxu0 %v6039
  %6249 = vmatpush.bf16.msra.mxu0 %v6035
  %6250 = vmatpush.bf16.msra.mxu0 %v6031
  %6251 = vmatpush.bf16.msra.mxu0 %v6027
  %6252 = vmatmul.bf16.gmra.mxu0 %v5414
  %v6253 = vpop.f32.mrf.mxu0
  %v6254 = vadd.f32 %v6235, %v6253
  %v6255 = vpop.f32.mrf.mxu0
  %v6256 = vadd.f32 %v6237, %v6255
  %6257 = vmatmul.bf16.gmra.mxu0 %v5418
  %v6258 = vpop.f32.mrf.mxu0
  %v6259 = vadd.f32 %v6240, %v6258
  %v6260 = vpop.f32.mrf.mxu0
  %v6261 = vadd.f32 %v6242, %v6260
  %6262 = vdwg.mxu0
  %6263 = vmatpush.bf16.msra.mxu0 %v5960
  %6264 = vmatpush.bf16.msra.mxu0 %v5956
  %6265 = vmatpush.bf16.msra.mxu0 %v5952
  %6266 = vmatpush.bf16.msra.mxu0 %v5948
  %6267 = vmatpush.bf16.msra.mxu0 %v5944
  %6268 = vmatpush.bf16.msra.mxu0 %v5940
  %6269 = vmatpush.bf16.msra.mxu0 %v5936
  %6270 = vmatpush.bf16.msra.mxu0 %v5932
  %6271 = vmatmul.bf16.gmra.mxu0 %v5411
  %v6272 = vpop.f32.mrf.mxu0
  %v6273 = vadd.f32 0.0, %v6272
  %v6274 = vpop.f32.mrf.mxu0
  %v6275 = vadd.f32 0.0, %v6274
  %6276 = vmatmul.bf16.gmra.mxu0 %v5415
  %v6277 = vpop.f32.mrf.mxu0
  %v6278 = vadd.f32 0.0, %v6277
  %v6279 = vpop.f32.mrf.mxu0
  %v6280 = vadd.f32 0.0, %v6279
  %6281 = vdwg.mxu0
  %6282 = vmatpush.bf16.msra.mxu0 %v5992
  %6283 = vmatpush.bf16.msra.mxu0 %v5988
  %6284 = vmatpush.bf16.msra.mxu0 %v5984
  %6285 = vmatpush.bf16.msra.mxu0 %v5980
  %6286 = vmatpush.bf16.msra.mxu0 %v5976
  %6287 = vmatpush.bf16.msra.mxu0 %v5972
  %6288 = vmatpush.bf16.msra.mxu0 %v5968
  %6289 = vmatpush.bf16.msra.mxu0 %v5964
  %6290 = vmatmul.bf16.gmra.mxu0 %v5412
  %v6291 = vpop.f32.mrf.mxu0
  %v6292 = vadd.f32 %v6273, %v6291
  %v6293 = vpop.f32.mrf.mxu0
  %v6294 = vadd.f32 %v6275, %v6293
  %6295 = vmatmul.bf16.gmra.mxu0 %v5416
  %v6296 = vpop.f32.mrf.mxu0
  %v6297 = vadd.f32 %v6278, %v6296
  %v6298 = vpop.f32.mrf.mxu0
  %v6299 = vadd.f32 %v6280, %v6298
  %6300 = vdwg.mxu0
  %6301 = vmatpush.bf16.msra.mxu0 %v6024
  %6302 = vmatpush.bf16.msra.mxu0 %v6020
  %6303 = vmatpush.bf16.msra.mxu0 %v6016
  %6304 = vmatpush.bf16.msra.mxu0 %v6012
  %6305 = vmatpush.bf16.msra.mxu0 %v6008
  %6306 = vmatpush.bf16.msra.mxu0 %v6004
  %6307 = vmatpush.bf16.msra.mxu0 %v6000
  %6308 = vmatpush.bf16.msra.mxu0 %v5996
  %6309 = vmatmul.bf16.gmra.mxu0 %v5413
  %v6310 = vpop.f32.mrf.mxu0
  %v6311 = vadd.f32 %v6292, %v6310
  %v6312 = vpop.f32.mrf.mxu0
  %v6313 = vadd.f32 %v6294, %v6312
  %6314 = vmatmul.bf16.gmra.mxu0 %v5417
  %v6315 = vpop.f32.mrf.mxu0
  %v6316 = vadd.f32 %v6297, %v6315
  %v6317 = vpop.f32.mrf.mxu0
  %v6318 = vadd.f32 %v6299, %v6317
  %6319 = vdwg.mxu0
  %6320 = vmatpush.bf16.msra.mxu0 %v6056
  %6321 = vmatpush.bf16.msra.mxu0 %v6052
  %6322 = vmatpush.bf16.msra.mxu0 %v6048
  %6323 = vmatpush.bf16.msra.mxu0 %v6044
  %6324 = vmatpush.bf16.msra.mxu0 %v6040
  %6325 = vmatpush.bf16.msra.mxu0 %v6036
  %6326 = vmatpush.bf16.msra.mxu0 %v6032
  %6327 = vmatpush.bf16.msra.mxu0 %v6028
  %6328 = vmatmul.bf16.gmra.mxu0 %v5414
  %v6329 = vpop.f32.mrf.mxu0
  %v6330 = vadd.f32 %v6311, %v6329
  %v6331 = vpop.f32.mrf.mxu0
  %v6332 = vadd.f32 %v6313, %v6331
  %6333 = vmatmul.bf16.gmra.mxu0 %v5418
  %v6334 = vpop.f32.mrf.mxu0
  %v6335 = vadd.f32 %v6316, %v6334
  %v6336 = vpop.f32.mrf.mxu0
  %v6337 = vadd.f32 %v6318, %v6336
  %6338 = vdwg.mxu0
  %6339 = vmatpush.bf16.msra.mxu0 %v5961
  %6340 = vmatpush.bf16.msra.mxu0 %v5957
  %6341 = vmatpush.bf16.msra.mxu0 %v5953
  %6342 = vmatpush.bf16.msra.mxu0 %v5949
  %6343 = vmatpush.bf16.msra.mxu0 %v5945
  %6344 = vmatpush.bf16.msra.mxu0 %v5941
  %6345 = vmatpush.bf16.msra.mxu0 %v5937
  %6346 = vmatpush.bf16.msra.mxu0 %v5933
  %6347 = vmatmul.bf16.gmra.mxu0 %v5411
  %v6348 = vpop.f32.mrf.mxu0
  %v6349 = vadd.f32 0.0, %v6348
  %v6350 = vpop.f32.mrf.mxu0
  %v6351 = vadd.f32 0.0, %v6350
  %6352 = vmatmul.bf16.gmra.mxu0 %v5415
  %v6353 = vpop.f32.mrf.mxu0
  %v6354 = vadd.f32 0.0, %v6353
  %v6355 = vpop.f32.mrf.mxu0
  %v6356 = vadd.f32 0.0, %v6355
  %6357 = vdwg.mxu0
  %6358 = vmatpush.bf16.msra.mxu0 %v5993
  %6359 = vmatpush.bf16.msra.mxu0 %v5989
  %6360 = vmatpush.bf16.msra.mxu0 %v5985
  %6361 = vmatpush.bf16.msra.mxu0 %v5981
  %6362 = vmatpush.bf16.msra.mxu0 %v5977
  %6363 = vmatpush.bf16.msra.mxu0 %v5973
  %6364 = vmatpush.bf16.msra.mxu0 %v5969
  %6365 = vmatpush.bf16.msra.mxu0 %v5965
  %6366 = vmatmul.bf16.gmra.mxu0 %v5412
  %v6367 = vpop.f32.mrf.mxu0
  %v6368 = vadd.f32 %v6349, %v6367
  %v6369 = vpop.f32.mrf.mxu0
  %v6370 = vadd.f32 %v6351, %v6369
  %6371 = vmatmul.bf16.gmra.mxu0 %v5416
  %v6372 = vpop.f32.mrf.mxu0
  %v6373 = vadd.f32 %v6354, %v6372
  %v6374 = vpop.f32.mrf.mxu0
  %v6375 = vadd.f32 %v6356, %v6374
  %6376 = vdwg.mxu0
  %6377 = vmatpush.bf16.msra.mxu0 %v6025
  %6378 = vmatpush.bf16.msra.mxu0 %v6021
  %6379 = vmatpush.bf16.msra.mxu0 %v6017
  %6380 = vmatpush.bf16.msra.mxu0 %v6013
  %6381 = vmatpush.bf16.msra.mxu0 %v6009
  %6382 = vmatpush.bf16.msra.mxu0 %v6005
  %6383 = vmatpush.bf16.msra.mxu0 %v6001
  %6384 = vmatpush.bf16.msra.mxu0 %v5997
  %6385 = vmatmul.bf16.gmra.mxu0 %v5413
  %v6386 = vpop.f32.mrf.mxu0
  %v6387 = vadd.f32 %v6368, %v6386
  %v6388 = vpop.f32.mrf.mxu0
  %v6389 = vadd.f32 %v6370, %v6388
  %6390 = vmatmul.bf16.gmra.mxu0 %v5417
  %v6391 = vpop.f32.mrf.mxu0
  %v6392 = vadd.f32 %v6373, %v6391
  %v6393 = vpop.f32.mrf.mxu0
  %v6394 = vadd.f32 %v6375, %v6393
  %6395 = vdwg.mxu0
  %6396 = vmatpush.bf16.msra.mxu0 %v6057
  %6397 = vmatpush.bf16.msra.mxu0 %v6053
  %6398 = vmatpush.bf16.msra.mxu0 %v6049
  %6399 = vmatpush.bf16.msra.mxu0 %v6045
  %6400 = vmatpush.bf16.msra.mxu0 %v6041
  %6401 = vmatpush.bf16.msra.mxu0 %v6037
  %6402 = vmatpush.bf16.msra.mxu0 %v6033
  %6403 = vmatpush.bf16.msra.mxu0 %v6029
  %6404 = vmatmul.bf16.gmra.mxu0 %v5414
  %v6405 = vpop.f32.mrf.mxu0
  %v6406 = vadd.f32 %v6387, %v6405
  %v6407 = vpop.f32.mrf.mxu0
  %v6408 = vadd.f32 %v6389, %v6407
  %6409 = vmatmul.bf16.gmra.mxu0 %v5418
  %v6410 = vpop.f32.mrf.mxu0
  %v6411 = vadd.f32 %v6392, %v6410
  %v6412 = vpop.f32.mrf.mxu0
  %v6413 = vadd.f32 %v6394, %v6412
  %6414 = vdwg.mxu0
  %6415 = vmatpush.bf16.msra.mxu0 %v5962
  %6416 = vmatpush.bf16.msra.mxu0 %v5958
  %6417 = vmatpush.bf16.msra.mxu0 %v5954
  %6418 = vmatpush.bf16.msra.mxu0 %v5950
  %6419 = vmatpush.bf16.msra.mxu0 %v5946
  %6420 = vmatpush.bf16.msra.mxu0 %v5942
  %6421 = vmatpush.bf16.msra.mxu0 %v5938
  %6422 = vmatpush.bf16.msra.mxu0 %v5934
  %6423 = vmatmul.bf16.gmra.mxu0 %v5411
  %v6424 = vpop.f32.mrf.mxu0
  %v6425 = vadd.f32 0.0, %v6424
  %v6426 = vpop.f32.mrf.mxu0
  %v6427 = vadd.f32 0.0, %v6426
  %6428 = vmatmul.bf16.gmra.mxu0 %v5415
  %v6429 = vpop.f32.mrf.mxu0
  %v6430 = vadd.f32 0.0, %v6429
  %v6431 = vpop.f32.mrf.mxu0
  %v6432 = vadd.f32 0.0, %v6431
  %6433 = vdwg.mxu0
  %6434 = vmatpush.bf16.msra.mxu0 %v5994
  %6435 = vmatpush.bf16.msra.mxu0 %v5990
  %6436 = vmatpush.bf16.msra.mxu0 %v5986
  %6437 = vmatpush.bf16.msra.mxu0 %v5982
  %6438 = vmatpush.bf16.msra.mxu0 %v5978
  %6439 = vmatpush.bf16.msra.mxu0 %v5974
  %6440 = vmatpush.bf16.msra.mxu0 %v5970
  %6441 = vmatpush.bf16.msra.mxu0 %v5966
  %6442 = vmatmul.bf16.gmra.mxu0 %v5412
  %v6443 = vpop.f32.mrf.mxu0
  %v6444 = vadd.f32 %v6425, %v6443
  %v6445 = vpop.f32.mrf.mxu0
  %v6446 = vadd.f32 %v6427, %v6445
  %6447 = vmatmul.bf16.gmra.mxu0 %v5416
  %v6448 = vpop.f32.mrf.mxu0
  %v6449 = vadd.f32 %v6430, %v6448
  %v6450 = vpop.f32.mrf.mxu0
  %v6451 = vadd.f32 %v6432, %v6450
  %6452 = vdwg.mxu0
  %6453 = vmatpush.bf16.msra.mxu0 %v6026
  %6454 = vmatpush.bf16.msra.mxu0 %v6022
  %6455 = vmatpush.bf16.msra.mxu0 %v6018
  %6456 = vmatpush.bf16.msra.mxu0 %v6014
  %6457 = vmatpush.bf16.msra.mxu0 %v6010
  %6458 = vmatpush.bf16.msra.mxu0 %v6006
  %6459 = vmatpush.bf16.msra.mxu0 %v6002
  %6460 = vmatpush.bf16.msra.mxu0 %v5998
  %6461 = vmatmul.bf16.gmra.mxu0 %v5413
  %v6462 = vpop.f32.mrf.mxu0
  %v6463 = vadd.f32 %v6444, %v6462
  %v6464 = vpop.f32.mrf.mxu0
  %v6465 = vadd.f32 %v6446, %v6464
  %6466 = vmatmul.bf16.gmra.mxu0 %v5417
  %v6467 = vpop.f32.mrf.mxu0
  %v6468 = vadd.f32 %v6449, %v6467
  %v6469 = vpop.f32.mrf.mxu0
  %v6470 = vadd.f32 %v6451, %v6469
  %6471 = vdwg.mxu0
  %6472 = vmatpush.bf16.msra.mxu0 %v6058
  %6473 = vmatpush.bf16.msra.mxu0 %v6054
  %6474 = vmatpush.bf16.msra.mxu0 %v6050
  %6475 = vmatpush.bf16.msra.mxu0 %v6046
  %6476 = vmatpush.bf16.msra.mxu0 %v6042
  %6477 = vmatpush.bf16.msra.mxu0 %v6038
  %6478 = vmatpush.bf16.msra.mxu0 %v6034
  %6479 = vmatpush.bf16.msra.mxu0 %v6030
  %6480 = vmatmul.bf16.gmra.mxu0 %v5414
  %v6481 = vpop.f32.mrf.mxu0
  %v6482 = vadd.f32 %v6463, %v6481
  %v6483 = vpop.f32.mrf.mxu0
  %v6484 = vadd.f32 %v6465, %v6483
  %6485 = vmatmul.bf16.gmra.mxu0 %v5418
  %v6486 = vpop.f32.mrf.mxu0
  %v6487 = vadd.f32 %v6468, %v6486
  %v6488 = vpop.f32.mrf.mxu0
  %v6489 = vadd.f32 %v6470, %v6488
  %6490 = vdwg.mxu0
  %v6491 = vadd.f32 %v5338, %v6254
  %v6492 = vadd.f32 %v5339, %v6330
  %v6493 = vadd.f32 %v5340, %v6406
  %v6494 = vadd.f32 %v5341, %v6482
  %v6495 = vadd.f32 %v5342, %v6256
  %v6496 = vadd.f32 %v5343, %v6332
  %v6497 = vadd.f32 %v5344, %v6408
  %v6498 = vadd.f32 %v5345, %v6484
  %v6499 = vadd.f32 %v5346, %v6259
  %v6500 = vadd.f32 %v5347, %v6335
  %v6501 = vadd.f32 %v5348, %v6411
  %v6502 = vadd.f32 %v5349, %v6487
  %v6503 = vadd.f32 %v5350, %v6261
  %v6504 = vadd.f32 %v5351, %v6337
  %v6505 = vadd.f32 %v5352, %v6413
  %v6506 = vadd.f32 %v5353, %v6489
  %v6507 = vtanh.pop %v6491
  %v6508 = vtanh.pop %v6492
  %v6509 = vtanh.pop %v6493
  %v6510 = vtanh.pop %v6494
  %v6511 = vtanh.pop %v6495
  %v6512 = vtanh.pop %v6496
  %v6513 = vtanh.pop %v6497
  %v6514 = vtanh.pop %v6498
  %v6515 = vtanh.pop %v6499
  %v6516 = vtanh.pop %v6500
  %v6517 = vtanh.pop %v6501
  %v6518 = vtanh.pop %v6502
  %v6519 = vtanh.pop %v6503
  %v6520 = vtanh.pop %v6504
  %v6521 = vtanh.pop %v6505
  %v6522 = vtanh.pop %v6506
  %v6523 = vsub.f32 1.0, %v156
  %v6524 = vsub.f32 1.0, %v171
  %v6525 = vsub.f32 1.0, %v186
  %v6526 = vsub.f32 1.0, %v201
  %v6527 = vsub.f32 1.0, %v216
  %v6528 = vsub.f32 1.0, %v231
  %v6529 = vsub.f32 1.0, %v246
  %v6530 = vsub.f32 1.0, %v261
  %v6531 = vsub.f32 1.0, %v276
  %v6532 = vsub.f32 1.0, %v291
  %v6533 = vsub.f32 1.0, %v306
  %v6534 = vsub.f32 1.0, %v321
  %v6535 = vsub.f32 1.0, %v336
  %v6536 = vsub.f32 1.0, %v351
  %v6537 = vsub.f32 1.0, %v366
  %v6538 = vsub.f32 1.0, %v381
  %v6539 = vmul.f32 %v6523, %v62
  %v6540 = vmul.f32 %v6524, %v63
  %v6541 = vmul.f32 %v6525, %v64
  %v6542 = vmul.f32 %v6526, %v65
  %v6543 = vmul.f32 %v6527, %v66
  %v6544 = vmul.f32 %v6528, %v67
  %v6545 = vmul.f32 %v6529, %v68
  %v6546 = vmul.f32 %v6530, %v69
  %v6547 = vmul.f32 %v6531, %v70
  %v6548 = vmul.f32 %v6532, %v71
  %v6549 = vmul.f32 %v6533, %v72
  %v6550 = vmul.f32 %v6534, %v73
  %v6551 = vmul.f32 %v6535, %v74
  %v6552 = vmul.f32 %v6536, %v75
  %v6553 = vmul.f32 %v6537, %v76
  %v6554 = vmul.f32 %v6538, %v77
  %v6555 = vmul.f32 %v156, %v6507
  %v6556 = vmul.f32 %v171, %v6508
  %v6557 = vmul.f32 %v186, %v6509
  %v6558 = vmul.f32 %v201, %v6510
  %v6559 = vmul.f32 %v216, %v6511
  %v6560 = vmul.f32 %v231, %v6512
  %v6561 = vmul.f32 %v246, %v6513
  %v6562 = vmul.f32 %v261, %v6514
  %v6563 = vmul.f32 %v276, %v6515
  %v6564 = vmul.f32 %v291, %v6516
  %v6565 = vmul.f32 %v306, %v6517
  %v6566 = vmul.f32 %v321, %v6518
  %v6567 = vmul.f32 %v336, %v6519
  %v6568 = vmul.f32 %v351, %v6520
  %v6569 = vmul.f32 %v366, %v6521
  %v6570 = vmul.f32 %v381, %v6522
  %v6571 = vadd.f32 %v6539, %v6555
  %v6572 = vadd.f32 %v6540, %v6556
  %v6573 = vadd.f32 %v6541, %v6557
  %v6574 = vadd.f32 %v6542, %v6558
  %v6575 = vadd.f32 %v6543, %v6559
  %v6576 = vadd.f32 %v6544, %v6560
  %v6577 = vadd.f32 %v6545, %v6561
  %v6578 = vadd.f32 %v6546, %v6562
  %v6579 = vadd.f32 %v6547, %v6563
  %v6580 = vadd.f32 %v6548, %v6564
  %v6581 = vadd.f32 %v6549, %v6565
  %v6582 = vadd.f32 %v6550, %v6566
  %v6583 = vadd.f32 %v6551, %v6567
  %v6584 = vadd.f32 %v6552, %v6568
  %v6585 = vadd.f32 %v6553, %v6569
  %v6586 = vadd.f32 %v6554, %v6570
  %6587 = vst [vmem:[%s3] sm:$0xff] %v6571
  %6588 = vst [vmem:[%s3 + $0x8] sm:$0xff] %v6572
  %6589 = vst [vmem:[%s3 + $0x10] sm:$0xff] %v6573
  %6590 = vst [vmem:[%s3 + $0x18] sm:$0xff] %v6574
  %6591 = vst [vmem:[%s3 + $0x20] sm:$0xff] %v6575
  %6592 = vst [vmem:[%s3 + $0x28] sm:$0xff] %v6576
  %6593 = vst [vmem:[%s3 + $0x30] sm:$0xff] %v6577
  %6594 = vst [vmem:[%s3 + $0x38] sm:$0xff] %v6578
  %6595 = vst [vmem:[%s3 + $0x40] sm:$0xff] %v6579
  %6596 = vst [vmem:[%s3 + $0x48] sm:$0xff] %v6580
  %6597 = vst [vmem:[%s3 + $0x50] sm:$0xff] %v6581
  %6598 = vst [vmem:[%s3 + $0x58] sm:$0xff] %v6582
  %6599 = vst [vmem:[%s3 + $0x60] sm:$0xff] %v6583
  %6600 = vst [vmem:[%s3 + $0x68] sm:$0xff] %v6584
  %6601 = vst [vmem:[%s3 + $0x70] sm:$0xff] %v6585
  %6602 = vst [vmem:[%s3 + $0x78] sm:$0xff] %v6586
  // Predicated region
  $region14: #{gru_forward.1} parent=0 // pred_check
    _
  $region15: #{gru_forward.1} parent=0 // pred_check_branch
    %6604 = sbr.rel (0) target = $region17
  $region16: #{gru_forward.1} parent=0 // pred_region
    _
  $region17: #{gru_forward.1} parent=0 // pred_fallthru
    _
  // Predicated region
  $region18: #{gru_forward.1} parent=0 // pred_check
    _
  $region19: #{gru_forward.1} parent=0 // pred_check_branch
    %6606 = sbr.rel (0) target = $region21
  $region20: #{gru_forward.1} parent=0 // pred_region
    _
  $region21: #{gru_forward.1} parent=0 // pred_fallthru
    _

</llo_original>
